<compile_context>
chip_gen: v6e
topology: v6e:2x2x1
jax: 0.10.0
libtpu: 0.0.40
codegen_flags: <defaults>
</compile_context>

<pallas_src>
import functools

import jax
import jax.numpy as jnp
from jax.experimental import pallas as pl
from jax.experimental.pallas import tpu as pltpu


# ---------------------------------------------------------------------------
# Kernel
# ---------------------------------------------------------------------------
def _fusion_kernel(x_ref, p_ref, wq_ref, wk_ref, wv_ref, wo_ref, o_ref,
                   q_sc, kt_sc, v_sc, fused_sc, *,
                   num_heads, hoist_kv, approx_recip):
    Bb, NXb, C = x_ref.shape
    _, NPb, _ = p_ref.shape
    D = C // num_heads
    cdt = x_ref.dtype  # compute dtype for MXU inputs (bf16 or f32)

    # ---- K/V projections (depend only on the batch-block grid axis) -------
    def compute_kv():
        p2 = p_ref[...].reshape(Bb * NPb, C)
        k = jnp.dot(p2, wk_ref[...], preferred_element_type=jnp.float32)
        v = jnp.dot(p2, wv_ref[...], preferred_element_type=jnp.float32)
        v_sc[...] = v.astype(cdt).reshape(Bb, NPb, C)
        k3 = k.astype(cdt).reshape(Bb, NPb, C)
        # One full-width XLU transpose per batch element; the per-head scores
        # matmul then needs no transpose at all.
        for b in range(Bb):
            kt_sc[b] = k3[b].T                              # (C, NPb)

    if hoist_kv:
        @pl.when(pl.program_id(1) == 0)
        def _():
            compute_kv()
    else:
        compute_kv()

    # ---- Q projection: batch-folded M dimension, f32 MXU accumulation -----
    x2 = x_ref[...].reshape(Bb * NXb, C)
    q = jnp.dot(x2, wq_ref[...], preferred_element_type=jnp.float32)
    q_sc[...] = q.astype(cdt).reshape(Bb, NXb, C)           # scale folded in wq

    # ---- Per-batch, per-head attention into the lane-sliced fused buffer --
    def attend(b):
        qb = q_sc[b]                                        # (NXb, C)
        ktb = kt_sc[b]                                      # (C, NPb)
        vb = v_sc[b]                                        # (NPb, C)
        for h in range(num_heads):
            sl = slice(h * D, (h + 1) * D)
            s = jnp.dot(qb[:, sl], ktb[sl, :],
                        preferred_element_type=jnp.float32)  # (NXb, NPb) f32
            s = s - jnp.max(s, axis=-1, keepdims=True)
            e = jnp.exp(s)
            inv = pl.reciprocal(jnp.sum(e, axis=-1, keepdims=True),
                                approx=approx_recip)
            probs = e * inv
            # attn_drop / proj_drop are Dropout(p=0.0) -> identity.
            ho = jnp.dot(probs.astype(cdt), vb[:, sl],
                         preferred_element_type=jnp.float32)  # (NXb, D)
            fused_sc[b, :, sl] = ho.astype(cdt)

    if Bb <= 2:
        for b in range(Bb):                                  # tiny: static loop
            attend(b)
    else:
        def _body(b, carry):
            attend(b)
            return carry
        jax.lax.fori_loop(0, Bb, _body, 0)                   # bounds liveness

    # ---- Single fused output projection: full C-wide MXU contraction ------
    fused = fused_sc[...].reshape(Bb * NXb, C)
    out = jnp.dot(fused, wo_ref[...], preferred_element_type=jnp.float32)
    o_ref[...] = out.reshape(Bb, NXb, C).astype(o_ref.dtype)


# ---------------------------------------------------------------------------
# Host-side helpers
# ---------------------------------------------------------------------------
def prepare_fusion_params(wf, wp1, wp2, wproj, *, num_heads, dtype=None):
    """One-time (outside the hot path) weight prep.

    Takes PyTorch nn.Linear layout (out_features, in_features) and returns
    (in, out)-layout weights in the compute dtype, with the attention scale
    folded into the query projection.
    """
    C = wf.shape[0]
    head_dim = C // num_heads
    scale = head_dim ** (-0.5)
    dtype = dtype if dtype is not None else wf.dtype
    wq_t = (wf.T * scale).astype(dtype)
    wk_t = wp1.T.astype(dtype)
    wv_t = wp2.T.astype(dtype)
    wo_t = wproj.T.astype(dtype)
    return wq_t, wk_t, wv_t, wo_t


def _vmem_capacity_bytes(default=64 * 1024 * 1024):
    """Trace-time VMEM capacity query; conservative fallback (v7x = 64 MiB)."""
    try:
        cap = int(pltpu.get_tpu_info().vmem_capacity_bytes)
        if cap > 0:
            return cap
    except Exception:
        pass
    return default


def _largest_divisor_leq(n, cap):
    cap = max(1, min(n, cap))
    for d in range(cap, 0, -1):
        if n % d == 0:
            return d
    return 1


def _auto_b_block(B, NX, target_rows=512):
    """Batches per grid step so B_blk*NX fills MXU rows, but keep >= 2 grid
    steps on the batch axis whenever B >= 2 (megacore / 2-TC sharding)."""
    b_blk = _largest_divisor_leq(B, max(1, target_rows // max(NX, 1)))
    if B >= 2 and B // b_blk < 2:
        b_blk = _largest_divisor_leq(B, max(1, b_blk // 2))
    return b_blk


def _auto_nx_block(b_blk, NX, NP, C, num_heads, itemsize, budget_bytes):
    """Per-grid-step VMEM estimate including scratch, f32 scores and matmul
    temporaries; shrink the NX block until it fits the budget."""
    D = C // num_heads
    sub = 16 if itemsize == 2 else 8    # bf16 sublane tile is (16, 128)

    def est(nxb):
        dbl = 2                                             # double-buffering
        x_out = dbl * 2 * b_blk * nxb * C * itemsize        # x + out blocks
        p_blk = dbl * b_blk * NP * C * itemsize             # p block
        w = dbl * 4 * C * C * itemsize                      # 4 resident weights
        scr = (b_blk * C * NP + b_blk * NP * C
               + 2 * b_blk * nxb * C) * itemsize            # kT, v, q, fused
        f32_tmp = 4 * (b_blk * nxb * C + b_blk * NP * C)    # f32 proj results
        per_b = 4 * (3 * nxb * NP + 2 * nxb * D)            # scores/exp/probs+ho
        outp = 4 * b_blk * nxb * C                          # f32 out-proj result
        return x_out + p_blk + w + scr + f32_tmp + per_b + outp

    cands = [d for d in range(NX, 0, -1)
             if NX % d == 0 and (d == NX or d % sub == 0)]
    for d in cands:
        if est(d) <= budget_bytes:
            return d
    return cands[-1]


def fusion_block(x, p, params, *, num_heads, b_block=None, nx_block=None,
                 hoist_kv=None, vmem_limit_bytes=None, budget_bytes=None):
    """x: (B, NX, C), p: (B, NP, C); params from prepare_fusion_params()."""
    wq, wk, wv, wo = params
    B, NX, C = x.shape
    _, NP, _ = p.shape
    assert C % num_heads == 0
    assert p.shape[0] == B and p.shape[2] == C

    vmem_cap = _vmem_capacity_bytes()
    if vmem_limit_bytes is None:
        # ~48 MiB on 64-MiB parts (v7x), ~96 MiB on 128-MiB parts (v5e/v6e).
        vmem_limit_bytes = min(vmem_cap * 3 // 4, 100 * 1024 * 1024)
    if budget_bytes is None:
        # ~25 MiB on v7x, ~50 MiB on v5e/v6e.
        budget_bytes = min(vmem_cap * 2 // 5, 56 * 1024 * 1024)

    if b_block is None:
        b_block = _auto_b_block(B, NX)
    assert B % b_block == 0, "b_block must divide B"

    itemsize = jnp.dtype(x.dtype).itemsize
    if nx_block is None:
        nx_block = _auto_nx_block(b_block, NX, NP, C, num_heads, itemsize,
                                  budget_bytes)
    assert NX % nx_block == 0, "nx_block must divide NX"

    grid_i = B // b_block
    grid_j = NX // nx_block
    if hoist_kv is None:
        # Hoist K/V over the NX axis only when the batch axis still provides
        # >= 2 parallel grid steps (keeps both v7x TensorCores busy).  On
        # single-TC chips with grid_i == 1 you may pass hoist_kv=True.
        hoist_kv = (grid_j > 1) and (grid_i >= 2)
    dims = ("parallel", "arbitrary") if hoist_kv else ("parallel", "parallel")

    kernel = functools.partial(_fusion_kernel,
                               num_heads=num_heads,
                               hoist_kv=hoist_kv,
                               approx_recip=(itemsize < 4))
    cdt = x.dtype

    return pl.pallas_call(
        kernel,
        out_shape=jax.ShapeDtypeStruct((B, NX, C), x.dtype),
        grid_spec=pltpu.PrefetchScalarGridSpec(
            num_scalar_prefetch=0,
            grid=(grid_i, grid_j),
            in_specs=[
                pl.BlockSpec((b_block, nx_block, C), lambda i, j: (i, j, 0)),  # x
                pl.BlockSpec((b_block, NP, C),       lambda i, j: (i, 0, 0)),  # p
                pl.BlockSpec((C, C), lambda i, j: (0, 0)),                     # wq
                pl.BlockSpec((C, C), lambda i, j: (0, 0)),                     # wk
                pl.BlockSpec((C, C), lambda i, j: (0, 0)),                     # wv
                pl.BlockSpec((C, C), lambda i, j: (0, 0)),                     # wo
            ],
            out_specs=pl.BlockSpec((b_block, nx_block, C),
                                   lambda i, j: (i, j, 0)),
            scratch_shapes=[
                pltpu.VMEM((b_block, nx_block, C), cdt),   # q
                pltpu.VMEM((b_block, C, NP), cdt),         # k^T (persistent)
                pltpu.VMEM((b_block, NP, C), cdt),         # v   (persistent)
                pltpu.VMEM((b_block, nx_block, C), cdt),   # fused per-head out
            ]),
        compiler_params=pltpu.CompilerParams(
            dimension_semantics=dims,
            vmem_limit_bytes=vmem_limit_bytes),
    )(x, p, wq, wk, wv, wo)


# ---------------------------------------------------------------------------
# Pure-JAX reference (matches the PyTorch forward exactly, f32 math)
# ---------------------------------------------------------------------------
def fusion_block_ref(x, p, wf, wp1, wp2, wproj, *, num_heads):
    B, NX, C = x.shape
    _, NP, _ = p.shape
    D = C // num_heads
    scale = D ** (-0.5)

    q = (x @ wf.T).reshape(B, NX, num_heads, D).transpose(0, 2, 1, 3)
    k = (p @ wp1.T).reshape(B, NP, num_heads, D).transpose(0, 2, 1, 3)
    v = (p @ wp2.T).reshape(B, NP, num_heads, D).transpose(0, 2, 1, 3)

    attn = jnp.einsum("bhqd,bhkd->bhqk", q, k) * scale
    attn = jax.nn.softmax(attn, axis=-1)
    out = jnp.einsum("bhqk,bhkd->bhqd", attn, v)
    out = out.transpose(0, 2, 1, 3).reshape(B, NX, C)
    return out @ wproj.T


if __name__ == "__main__":
    # Small but lane-dense shapes (C = 128) so the real layout regime is hit.
    B, NX, NP, C, H = 4, 32, 16, 128, 4

    key = jax.random.PRNGKey(0)
    kx, kp, k1, k2, k3, k4 = jax.random.split(key, 6)

    x = jax.random.normal(kx, (B, NX, C), dtype=jnp.float32)
    p = jax.random.normal(kp, (B, NP, C), dtype=jnp.float32)

    # PyTorch nn.Linear layout: (out_features, in_features), bias=False.
    wf = jax.random.normal(k1, (C, C), dtype=jnp.float32) * 0.05
    wp1 = jax.random.normal(k2, (C, C), dtype=jnp.float32) * 0.05
    wp2 = jax.random.normal(k3, (C, C), dtype=jnp.float32) * 0.05
    wproj = jax.random.normal(k4, (C, C), dtype=jnp.float32) * 0.05

    ref = fusion_block_ref(x, p, wf, wp1, wp2, wproj, num_heads=H)

    params_f32 = prepare_fusion_params(wf, wp1, wp2, wproj, num_heads=H,
                                       dtype=jnp.float32)

    # 1) Auto-tiled f32 path (exact softmax reciprocal).
    out1 = jax.block_until_ready(fusion_block(x, p, params_f32, num_heads=H))
    assert out1.shape == (B, NX, C)
    assert jnp.allclose(out1, ref, atol=2e-3, rtol=2e-3), \
        "f32 kernel (auto tiling) mismatch vs reference"

    # 2) Forced multi-step NX grid: exercises the hoisted-K/V pl.when path
    #    with the NX axis marked 'arbitrary'.
    out2 = jax.block_until_ready(
        fusion_block(x, p, params_f32, num_heads=H, b_block=1, nx_block=16))
    assert jnp.allclose(out2, ref, atol=2e-3, rtol=2e-3), \
        "f32 kernel (hoisted K/V) mismatch vs reference"

    # 3) Batch-folded single-step grid: exercises the in-kernel fori_loop
    #    (Bb > 2) with dynamic ref indexing.
    out3 = jax.block_until_ready(
        fusion_block(x, p, params_f32, num_heads=H, b_block=4, nx_block=32))
    assert jnp.allclose(out3, ref, atol=2e-3, rtol=2e-3), \
        "f32 kernel (fori batch loop) mismatch vs reference"

    # 4) bf16 path (recommended on TPU: MXU-native inputs, f32 accumulation,
    #    approx EUP reciprocal in the softmax).
    params_bf16 = prepare_fusion_params(wf, wp1, wp2, wproj, num_heads=H,
                                        dtype=jnp.bfloat16)
    out_bf16 = jax.block_until_ready(
        fusion_block(x.astype(jnp.bfloat16), p.astype(jnp.bfloat16),
                     params_bf16, num_heads=H))
    assert out_bf16.shape == (B, NX, C)
    assert jnp.allclose(out_bf16.astype(jnp.float32), ref,
                        atol=6e-2, rtol=6e-2), \
        "bf16 kernel mismatch vs reference"

    print("KERNEL_OK")
</pallas_src>

<mosaic_0001>
module attributes {stable_mosaic.version = 11 : i64} {
  func.func @_fusion_kernel(%arg0: i32, %arg1: i32, %arg2: memref<2x32x128xf32, #tpu.memory_space<vmem>>, %arg3: memref<2x16x128xf32, #tpu.memory_space<vmem>>, %arg4: memref<128x128xf32, #tpu.memory_space<vmem>>, %arg5: memref<128x128xf32, #tpu.memory_space<vmem>>, %arg6: memref<128x128xf32, #tpu.memory_space<vmem>>, %arg7: memref<128x128xf32, #tpu.memory_space<vmem>>, %arg8: memref<2x32x128xf32, #tpu.memory_space<vmem>>, %arg9: memref<2x32x128xf32, #tpu.memory_space<vmem>>, %arg10: memref<2x128x16xf32, #tpu.memory_space<vmem>>, %arg11: memref<2x16x128xf32, #tpu.memory_space<vmem>>, %arg12: memref<2x32x128xf32, #tpu.memory_space<vmem>>) attributes {dimension_semantics = [#tpu.dimension_semantics<parallel>, #tpu.dimension_semantics<parallel>], iteration_bounds = array<i64: 2, 1>, scalar_prefetch = 0 : i64, scratch_operands = 4 : i64, tpu.core_type = #tpu.core_type<tc>, window_params = [{transform_indices = @transform_0, window_bounds = array<i64: 2, 32, 128>}, {transform_indices = @transform_1, window_bounds = array<i64: 2, 16, 128>}, {pipeline_mode = #tpu.pipeline_mode<synchronous>, transform_indices = @transform_2, window_bounds = array<i64: 128, 128>}, {pipeline_mode = #tpu.pipeline_mode<synchronous>, transform_indices = @transform_3, window_bounds = array<i64: 128, 128>}, {pipeline_mode = #tpu.pipeline_mode<synchronous>, transform_indices = @transform_4, window_bounds = array<i64: 128, 128>}, {pipeline_mode = #tpu.pipeline_mode<synchronous>, transform_indices = @transform_5, window_bounds = array<i64: 128, 128>}, {transform_indices = @transform_6, window_bounds = array<i64: 2, 32, 128>}]} {
    %c0 = arith.constant 0 : index
    %c0_0 = arith.constant 0 : index
    %c0_1 = arith.constant 0 : index
    %0 = vector.load %arg3[%c0, %c0_0, %c0_1] : memref<2x16x128xf32, #tpu.memory_space<vmem>>, vector<2x16x128xf32>
    %1 = vector.shape_cast %0 : vector<2x16x128xf32> to vector<32x128xf32>
    %c0_2 = arith.constant 0 : index
    %c0_3 = arith.constant 0 : index
    %2 = vector.load %arg5[%c0_2, %c0_3] : memref<128x128xf32, #tpu.memory_space<vmem>>, vector<128x128xf32>
    %cst = arith.constant dense<0.000000e+00> : vector<32x128xf32>
    %3 = tpu.matmul %1, %2, %cst {dimension_numbers = #tpu.dot_dimension_numbers<[1], [0], [0], [1], [0, 0, 1, 1], [], []>} : vector<32x128xf32>, vector<128x128xf32>, vector<32x128xf32> -> vector<32x128xf32>
    %c0_4 = arith.constant 0 : index
    %c0_5 = arith.constant 0 : index
    %4 = vector.load %arg6[%c0_4, %c0_5] : memref<128x128xf32, #tpu.memory_space<vmem>>, vector<128x128xf32>
    %cst_6 = arith.constant dense<0.000000e+00> : vector<32x128xf32>
    %5 = tpu.matmul %1, %4, %cst_6 {dimension_numbers = #tpu.dot_dimension_numbers<[1], [0], [0], [1], [0, 0, 1, 1], [], []>} : vector<32x128xf32>, vector<128x128xf32>, vector<32x128xf32> -> vector<32x128xf32>
    %6 = vector.shape_cast %5 : vector<32x128xf32> to vector<2x16x128xf32>
    %c0_7 = arith.constant 0 : index
    %c0_8 = arith.constant 0 : index
    %c0_9 = arith.constant 0 : index
    %7 = vector.load %arg11[%c0_7, %c0_8, %c0_9] : memref<2x16x128xf32, #tpu.memory_space<vmem>>, vector<2x16x128xf32>
    tpu.vector_store %arg11[%c0_7, %c0_8, %c0_9], %6 {strides = array<i32>} : memref<2x16x128xf32, #tpu.memory_space<vmem>>, vector<2x16x128xf32>,
    %8 = vector.shape_cast %3 : vector<32x128xf32> to vector<2x16x128xf32>
    %9 = vector.extract_strided_slice %8 {offsets = [0, 0, 0], sizes = [1, 16, 128], strides = [1, 1, 1]} : vector<2x16x128xf32> to vector<1x16x128xf32>
    %10 = vector.shape_cast %9 : vector<1x16x128xf32> to vector<16x128xf32>
    %11 = tpu.transpose %10, [1, 0] : vector<16x128xf32> -> vector<128x16xf32>
    %c0_10 = arith.constant 0 : index
    %c0_11 = arith.constant 0 : index
    %c0_12 = arith.constant 0 : index
    %12 = vector.load %arg10[%c0_10, %c0_11, %c0_12] : memref<2x128x16xf32, #tpu.memory_space<vmem>>, vector<1x128x16xf32>
    %13 = vector.shape_cast %12 : vector<1x128x16xf32> to vector<128x16xf32>
    %14 = vector.shape_cast %11 : vector<128x16xf32> to vector<1x128x16xf32>
    tpu.vector_store %arg10[%c0_10, %c0_11, %c0_12], %14 {strides = array<i32>} : memref<2x128x16xf32, #tpu.memory_space<vmem>>, vector<1x128x16xf32>,
    %15 = vector.extract_strided_slice %8 {offsets = [1, 0, 0], sizes = [1, 16, 128], strides = [1, 1, 1]} : vector<2x16x128xf32> to vector<1x16x128xf32>
    %16 = vector.shape_cast %15 : vector<1x16x128xf32> to vector<16x128xf32>
    %17 = tpu.transpose %16, [1, 0] : vector<16x128xf32> -> vector<128x16xf32>
    %c1 = arith.constant 1 : index
    %c0_13 = arith.constant 0 : index
    %c0_14 = arith.constant 0 : index
    %18 = vector.load %arg10[%c1, %c0_13, %c0_14] : memref<2x128x16xf32, #tpu.memory_space<vmem>>, vector<1x128x16xf32>
    %19 = vector.shape_cast %18 : vector<1x128x16xf32> to vector<128x16xf32>
    %20 = vector.shape_cast %17 : vector<128x16xf32> to vector<1x128x16xf32>
    tpu.vector_store %arg10[%c1, %c0_13, %c0_14], %20 {strides = array<i32>} : memref<2x128x16xf32, #tpu.memory_space<vmem>>, vector<1x128x16xf32>,
    %c0_15 = arith.constant 0 : index
    %c0_16 = arith.constant 0 : index
    %c0_17 = arith.constant 0 : index
    %21 = vector.load %arg2[%c0_15, %c0_16, %c0_17] : memref<2x32x128xf32, #tpu.memory_space<vmem>>, vector<2x32x128xf32>
    %22 = vector.shape_cast %21 : vector<2x32x128xf32> to vector<64x128xf32>
    %c0_18 = arith.constant 0 : index
    %c0_19 = arith.constant 0 : index
    %23 = vector.load %arg4[%c0_18, %c0_19] : memref<128x128xf32, #tpu.memory_space<vmem>>, vector<128x128xf32>
    %cst_20 = arith.constant dense<0.000000e+00> : vector<64x128xf32>
    %24 = tpu.matmul %22, %23, %cst_20 {dimension_numbers = #tpu.dot_dimension_numbers<[1], [0], [0], [1], [0, 0, 1, 1], [], []>} : vector<64x128xf32>, vector<128x128xf32>, vector<64x128xf32> -> vector<64x128xf32>
    %25 = vector.shape_cast %24 : vector<64x128xf32> to vector<2x32x128xf32>
    %c0_21 = arith.constant 0 : index
    %c0_22 = arith.constant 0 : index
    %c0_23 = arith.constant 0 : index
    %26 = vector.load %arg9[%c0_21, %c0_22, %c0_23] : memref<2x32x128xf32, #tpu.memory_space<vmem>>, vector<2x32x128xf32>
    tpu.vector_store %arg9[%c0_21, %c0_22, %c0_23], %25 {strides = array<i32>} : memref<2x32x128xf32, #tpu.memory_space<vmem>>, vector<2x32x128xf32>,
    %c0_24 = arith.constant 0 : index
    %c0_25 = arith.constant 0 : index
    %c0_26 = arith.constant 0 : index
    %27 = vector.load %arg9[%c0_24, %c0_25, %c0_26] : memref<2x32x128xf32, #tpu.memory_space<vmem>>, vector<1x32x128xf32>
    %28 = vector.shape_cast %27 : vector<1x32x128xf32> to vector<32x128xf32>
    %c0_27 = arith.constant 0 : index
    %c0_28 = arith.constant 0 : index
    %c0_29 = arith.constant 0 : index
    %29 = vector.load %arg10[%c0_27, %c0_28, %c0_29] : memref<2x128x16xf32, #tpu.memory_space<vmem>>, vector<1x128x16xf32>
    %30 = vector.shape_cast %29 : vector<1x128x16xf32> to vector<128x16xf32>
    %c0_30 = arith.constant 0 : index
    %c0_31 = arith.constant 0 : index
    %c0_32 = arith.constant 0 : index
    %31 = vector.load %arg11[%c0_30, %c0_31, %c0_32] : memref<2x16x128xf32, #tpu.memory_space<vmem>>, vector<1x16x128xf32>
    %32 = vector.shape_cast %31 : vector<1x16x128xf32> to vector<16x128xf32>
    %33 = vector.extract_strided_slice %28 {offsets = [0, 0], sizes = [32, 32], strides = [1, 1]} : vector<32x128xf32> to vector<32x32xf32>
    %34 = vector.extract_strided_slice %30 {offsets = [0, 0], sizes = [32, 16], strides = [1, 1]} : vector<128x16xf32> to vector<32x16xf32>
    %cst_33 = arith.constant dense<0.000000e+00> : vector<32x16xf32>
    %35 = tpu.matmul %33, %34, %cst_33 {dimension_numbers = #tpu.dot_dimension_numbers<[1], [0], [0], [1], [0, 0, 1, 1], [], []>} : vector<32x32xf32>, vector<32x16xf32>, vector<32x16xf32> -> vector<32x16xf32>
    %cst_34 = arith.constant dense<0xFF800000> : vector<32xf32>
    %36 = vector.multi_reduction <maximumf>, %35, %cst_34 [1] : vector<32x16xf32> to vector<32xf32>
    %37 = vector.shape_cast %36 : vector<32xf32> to vector<32x1xf32>
    %38 = vector.broadcast %37 : vector<32x1xf32> to vector<32x16xf32>
    %39 = arith.subf %35, %38 : vector<32x16xf32>
    %40 = math.exp %39 : vector<32x16xf32>
    %cst_35 = arith.constant dense<0.000000e+00> : vector<32xf32>
    %41 = vector.multi_reduction <add>, %40, %cst_35 [1] : vector<32x16xf32> to vector<32xf32>
    %42 = vector.shape_cast %41 : vector<32xf32> to vector<32x1xf32>
    %43 = tpu.reciprocal %42 : vector<32x1xf32> -> vector<32x1xf32>
    %44 = vector.broadcast %43 : vector<32x1xf32> to vector<32x16xf32>
    %45 = arith.mulf %40, %44 : vector<32x16xf32>
    %46 = vector.extract_strided_slice %32 {offsets = [0, 0], sizes = [16, 32], strides = [1, 1]} : vector<16x128xf32> to vector<16x32xf32>
    %cst_36 = arith.constant dense<0.000000e+00> : vector<32x32xf32>
    %47 = tpu.matmul %45, %46, %cst_36 {dimension_numbers = #tpu.dot_dimension_numbers<[1], [0], [0], [1], [0, 0, 1, 1], [], []>} : vector<32x16xf32>, vector<16x32xf32>, vector<32x32xf32> -> vector<32x32xf32>
    %c0_37 = arith.constant 0 : index
    %c0_38 = arith.constant 0 : index
    %c0_39 = arith.constant 0 : index
    %48 = vector.load %arg12[%c0_37, %c0_38, %c0_39] : memref<2x32x128xf32, #tpu.memory_space<vmem>>, vector<1x32x32xf32>
    %49 = vector.shape_cast %48 : vector<1x32x32xf32> to vector<32x32xf32>
    %50 = vector.shape_cast %47 : vector<32x32xf32> to vector<1x32x32xf32>
    tpu.vector_store %arg12[%c0_37, %c0_38, %c0_39], %50 {strides = array<i32>} : memref<2x32x128xf32, #tpu.memory_space<vmem>>, vector<1x32x32xf32>,
    %51 = vector.extract_strided_slice %28 {offsets = [0, 32], sizes = [32, 32], strides = [1, 1]} : vector<32x128xf32> to vector<32x32xf32>
    %52 = vector.extract_strided_slice %30 {offsets = [32, 0], sizes = [32, 16], strides = [1, 1]} : vector<128x16xf32> to vector<32x16xf32>
    %cst_40 = arith.constant dense<0.000000e+00> : vector<32x16xf32>
    %53 = tpu.matmul %51, %52, %cst_40 {dimension_numbers = #tpu.dot_dimension_numbers<[1], [0], [0], [1], [0, 0, 1, 1], [], []>} : vector<32x32xf32>, vector<32x16xf32>, vector<32x16xf32> -> vector<32x16xf32>
    %cst_41 = arith.constant dense<0xFF800000> : vector<32xf32>
    %54 = vector.multi_reduction <maximumf>, %53, %cst_41 [1] : vector<32x16xf32> to vector<32xf32>
    %55 = vector.shape_cast %54 : vector<32xf32> to vector<32x1xf32>
    %56 = vector.broadcast %55 : vector<32x1xf32> to vector<32x16xf32>
    %57 = arith.subf %53, %56 : vector<32x16xf32>
    %58 = math.exp %57 : vector<32x16xf32>
    %cst_42 = arith.constant dense<0.000000e+00> : vector<32xf32>
    %59 = vector.multi_reduction <add>, %58, %cst_42 [1] : vector<32x16xf32> to vector<32xf32>
    %60 = vector.shape_cast %59 : vector<32xf32> to vector<32x1xf32>
    %61 = tpu.reciprocal %60 : vector<32x1xf32> -> vector<32x1xf32>
    %62 = vector.broadcast %61 : vector<32x1xf32> to vector<32x16xf32>
    %63 = arith.mulf %58, %62 : vector<32x16xf32>
    %64 = vector.extract_strided_slice %32 {offsets = [0, 32], sizes = [16, 32], strides = [1, 1]} : vector<16x128xf32> to vector<16x32xf32>
    %cst_43 = arith.constant dense<0.000000e+00> : vector<32x32xf32>
    %65 = tpu.matmul %63, %64, %cst_43 {dimension_numbers = #tpu.dot_dimension_numbers<[1], [0], [0], [1], [0, 0, 1, 1], [], []>} : vector<32x16xf32>, vector<16x32xf32>, vector<32x32xf32> -> vector<32x32xf32>
    %c0_44 = arith.constant 0 : index
    %c0_45 = arith.constant 0 : index
    %c32 = arith.constant 32 : index
    %66 = vector.load %arg12[%c0_44, %c0_45, %c32] : memref<2x32x128xf32, #tpu.memory_space<vmem>>, vector<1x32x32xf32>
    %67 = vector.shape_cast %66 : vector<1x32x32xf32> to vector<32x32xf32>
    %68 = vector.shape_cast %65 : vector<32x32xf32> to vector<1x32x32xf32>
    tpu.vector_store %arg12[%c0_44, %c0_45, %c32], %68 {strides = array<i32>} : memref<2x32x128xf32, #tpu.memory_space<vmem>>, vector<1x32x32xf32>,
    %69 = vector.extract_strided_slice %28 {offsets = [0, 64], sizes = [32, 32], strides = [1, 1]} : vector<32x128xf32> to vector<32x32xf32>
    %70 = vector.extract_strided_slice %30 {offsets = [64, 0], sizes = [32, 16], strides = [1, 1]} : vector<128x16xf32> to vector<32x16xf32>
    %cst_46 = arith.constant dense<0.000000e+00> : vector<32x16xf32>
    %71 = tpu.matmul %69, %70, %cst_46 {dimension_numbers = #tpu.dot_dimension_numbers<[1], [0], [0], [1], [0, 0, 1, 1], [], []>} : vector<32x32xf32>, vector<32x16xf32>, vector<32x16xf32> -> vector<32x16xf32>
    %cst_47 = arith.constant dense<0xFF800000> : vector<32xf32>
    %72 = vector.multi_reduction <maximumf>, %71, %cst_47 [1] : vector<32x16xf32> to vector<32xf32>
    %73 = vector.shape_cast %72 : vector<32xf32> to vector<32x1xf32>
    %74 = vector.broadcast %73 : vector<32x1xf32> to vector<32x16xf32>
    %75 = arith.subf %71, %74 : vector<32x16xf32>
    %76 = math.exp %75 : vector<32x16xf32>
    %cst_48 = arith.constant dense<0.000000e+00> : vector<32xf32>
    %77 = vector.multi_reduction <add>, %76, %cst_48 [1] : vector<32x16xf32> to vector<32xf32>
    %78 = vector.shape_cast %77 : vector<32xf32> to vector<32x1xf32>
    %79 = tpu.reciprocal %78 : vector<32x1xf32> -> vector<32x1xf32>
    %80 = vector.broadcast %79 : vector<32x1xf32> to vector<32x16xf32>
    %81 = arith.mulf %76, %80 : vector<32x16xf32>
    %82 = vector.extract_strided_slice %32 {offsets = [0, 64], sizes = [16, 32], strides = [1, 1]} : vector<16x128xf32> to vector<16x32xf32>
    %cst_49 = arith.constant dense<0.000000e+00> : vector<32x32xf32>
    %83 = tpu.matmul %81, %82, %cst_49 {dimension_numbers = #tpu.dot_dimension_numbers<[1], [0], [0], [1], [0, 0, 1, 1], [], []>} : vector<32x16xf32>, vector<16x32xf32>, vector<32x32xf32> -> vector<32x32xf32>
    %c0_50 = arith.constant 0 : index
    %c0_51 = arith.constant 0 : index
    %c64 = arith.constant 64 : index
    %84 = vector.load %arg12[%c0_50, %c0_51, %c64] : memref<2x32x128xf32, #tpu.memory_space<vmem>>, vector<1x32x32xf32>
    %85 = vector.shape_cast %84 : vector<1x32x32xf32> to vector<32x32xf32>
    %86 = vector.shape_cast %83 : vector<32x32xf32> to vector<1x32x32xf32>
    tpu.vector_store %arg12[%c0_50, %c0_51, %c64], %86 {strides = array<i32>} : memref<2x32x128xf32, #tpu.memory_space<vmem>>, vector<1x32x32xf32>,
    %87 = vector.extract_strided_slice %28 {offsets = [0, 96], sizes = [32, 32], strides = [1, 1]} : vector<32x128xf32> to vector<32x32xf32>
    %88 = vector.extract_strided_slice %30 {offsets = [96, 0], sizes = [32, 16], strides = [1, 1]} : vector<128x16xf32> to vector<32x16xf32>
    %cst_52 = arith.constant dense<0.000000e+00> : vector<32x16xf32>
    %89 = tpu.matmul %87, %88, %cst_52 {dimension_numbers = #tpu.dot_dimension_numbers<[1], [0], [0], [1], [0, 0, 1, 1], [], []>} : vector<32x32xf32>, vector<32x16xf32>, vector<32x16xf32> -> vector<32x16xf32>
    %cst_53 = arith.constant dense<0xFF800000> : vector<32xf32>
    %90 = vector.multi_reduction <maximumf>, %89, %cst_53 [1] : vector<32x16xf32> to vector<32xf32>
    %91 = vector.shape_cast %90 : vector<32xf32> to vector<32x1xf32>
    %92 = vector.broadcast %91 : vector<32x1xf32> to vector<32x16xf32>
    %93 = arith.subf %89, %92 : vector<32x16xf32>
    %94 = math.exp %93 : vector<32x16xf32>
    %cst_54 = arith.constant dense<0.000000e+00> : vector<32xf32>
    %95 = vector.multi_reduction <add>, %94, %cst_54 [1] : vector<32x16xf32> to vector<32xf32>
    %96 = vector.shape_cast %95 : vector<32xf32> to vector<32x1xf32>
    %97 = tpu.reciprocal %96 : vector<32x1xf32> -> vector<32x1xf32>
    %98 = vector.broadcast %97 : vector<32x1xf32> to vector<32x16xf32>
    %99 = arith.mulf %94, %98 : vector<32x16xf32>
    %100 = vector.extract_strided_slice %32 {offsets = [0, 96], sizes = [16, 32], strides = [1, 1]} : vector<16x128xf32> to vector<16x32xf32>
    %cst_55 = arith.constant dense<0.000000e+00> : vector<32x32xf32>
    %101 = tpu.matmul %99, %100, %cst_55 {dimension_numbers = #tpu.dot_dimension_numbers<[1], [0], [0], [1], [0, 0, 1, 1], [], []>} : vector<32x16xf32>, vector<16x32xf32>, vector<32x32xf32> -> vector<32x32xf32>
    %c0_56 = arith.constant 0 : index
    %c0_57 = arith.constant 0 : index
    %c96 = arith.constant 96 : index
    %102 = vector.load %arg12[%c0_56, %c0_57, %c96] : memref<2x32x128xf32, #tpu.memory_space<vmem>>, vector<1x32x32xf32>
    %103 = vector.shape_cast %102 : vector<1x32x32xf32> to vector<32x32xf32>
    %104 = vector.shape_cast %101 : vector<32x32xf32> to vector<1x32x32xf32>
    tpu.vector_store %arg12[%c0_56, %c0_57, %c96], %104 {strides = array<i32>} : memref<2x32x128xf32, #tpu.memory_space<vmem>>, vector<1x32x32xf32>,
    %c1_58 = arith.constant 1 : index
    %c0_59 = arith.constant 0 : index
    %c0_60 = arith.constant 0 : index
    %105 = vector.load %arg9[%c1_58, %c0_59, %c0_60] : memref<2x32x128xf32, #tpu.memory_space<vmem>>, vector<1x32x128xf32>
    %106 = vector.shape_cast %105 : vector<1x32x128xf32> to vector<32x128xf32>
    %c1_61 = arith.constant 1 : index
    %c0_62 = arith.constant 0 : index
    %c0_63 = arith.constant 0 : index
    %107 = vector.load %arg10[%c1_61, %c0_62, %c0_63] : memref<2x128x16xf32, #tpu.memory_space<vmem>>, vector<1x128x16xf32>
    %108 = vector.shape_cast %107 : vector<1x128x16xf32> to vector<128x16xf32>
    %c1_64 = arith.constant 1 : index
    %c0_65 = arith.constant 0 : index
    %c0_66 = arith.constant 0 : index
    %109 = vector.load %arg11[%c1_64, %c0_65, %c0_66] : memref<2x16x128xf32, #tpu.memory_space<vmem>>, vector<1x16x128xf32>
    %110 = vector.shape_cast %109 : vector<1x16x128xf32> to vector<16x128xf32>
    %111 = vector.extract_strided_slice %106 {offsets = [0, 0], sizes = [32, 32], strides = [1, 1]} : vector<32x128xf32> to vector<32x32xf32>
    %112 = vector.extract_strided_slice %108 {offsets = [0, 0], sizes = [32, 16], strides = [1, 1]} : vector<128x16xf32> to vector<32x16xf32>
    %cst_67 = arith.constant dense<0.000000e+00> : vector<32x16xf32>
    %113 = tpu.matmul %111, %112, %cst_67 {dimension_numbers = #tpu.dot_dimension_numbers<[1], [0], [0], [1], [0, 0, 1, 1], [], []>} : vector<32x32xf32>, vector<32x16xf32>, vector<32x16xf32> -> vector<32x16xf32>
    %cst_68 = arith.constant dense<0xFF800000> : vector<32xf32>
    %114 = vector.multi_reduction <maximumf>, %113, %cst_68 [1] : vector<32x16xf32> to vector<32xf32>
    %115 = vector.shape_cast %114 : vector<32xf32> to vector<32x1xf32>
    %116 = vector.broadcast %115 : vector<32x1xf32> to vector<32x16xf32>
    %117 = arith.subf %113, %116 : vector<32x16xf32>
    %118 = math.exp %117 : vector<32x16xf32>
    %cst_69 = arith.constant dense<0.000000e+00> : vector<32xf32>
    %119 = vector.multi_reduction <add>, %118, %cst_69 [1] : vector<32x16xf32> to vector<32xf32>
    %120 = vector.shape_cast %119 : vector<32xf32> to vector<32x1xf32>
    %121 = tpu.reciprocal %120 : vector<32x1xf32> -> vector<32x1xf32>
    %122 = vector.broadcast %121 : vector<32x1xf32> to vector<32x16xf32>
    %123 = arith.mulf %118, %122 : vector<32x16xf32>
    %124 = vector.extract_strided_slice %110 {offsets = [0, 0], sizes = [16, 32], strides = [1, 1]} : vector<16x128xf32> to vector<16x32xf32>
    %cst_70 = arith.constant dense<0.000000e+00> : vector<32x32xf32>
    %125 = tpu.matmul %123, %124, %cst_70 {dimension_numbers = #tpu.dot_dimension_numbers<[1], [0], [0], [1], [0, 0, 1, 1], [], []>} : vector<32x16xf32>, vector<16x32xf32>, vector<32x32xf32> -> vector<32x32xf32>
    %c1_71 = arith.constant 1 : index
    %c0_72 = arith.constant 0 : index
    %c0_73 = arith.constant 0 : index
    %126 = vector.load %arg12[%c1_71, %c0_72, %c0_73] : memref<2x32x128xf32, #tpu.memory_space<vmem>>, vector<1x32x32xf32>
    %127 = vector.shape_cast %126 : vector<1x32x32xf32> to vector<32x32xf32>
    %128 = vector.shape_cast %125 : vector<32x32xf32> to vector<1x32x32xf32>
    tpu.vector_store %arg12[%c1_71, %c0_72, %c0_73], %128 {strides = array<i32>} : memref<2x32x128xf32, #tpu.memory_space<vmem>>, vector<1x32x32xf32>,
    %129 = vector.extract_strided_slice %106 {offsets = [0, 32], sizes = [32, 32], strides = [1, 1]} : vector<32x128xf32> to vector<32x32xf32>
    %130 = vector.extract_strided_slice %108 {offsets = [32, 0], sizes = [32, 16], strides = [1, 1]} : vector<128x16xf32> to vector<32x16xf32>
    %cst_74 = arith.constant dense<0.000000e+00> : vector<32x16xf32>
    %131 = tpu.matmul %129, %130, %cst_74 {dimension_numbers = #tpu.dot_dimension_numbers<[1], [0], [0], [1], [0, 0, 1, 1], [], []>} : vector<32x32xf32>, vector<32x16xf32>, vector<32x16xf32> -> vector<32x16xf32>
    %cst_75 = arith.constant dense<0xFF800000> : vector<32xf32>
    %132 = vector.multi_reduction <maximumf>, %131, %cst_75 [1] : vector<32x16xf32> to vector<32xf32>
    %133 = vector.shape_cast %132 : vector<32xf32> to vector<32x1xf32>
    %134 = vector.broadcast %133 : vector<32x1xf32> to vector<32x16xf32>
    %135 = arith.subf %131, %134 : vector<32x16xf32>
    %136 = math.exp %135 : vector<32x16xf32>
    %cst_76 = arith.constant dense<0.000000e+00> : vector<32xf32>
    %137 = vector.multi_reduction <add>, %136, %cst_76 [1] : vector<32x16xf32> to vector<32xf32>
    %138 = vector.shape_cast %137 : vector<32xf32> to vector<32x1xf32>
    %139 = tpu.reciprocal %138 : vector<32x1xf32> -> vector<32x1xf32>
    %140 = vector.broadcast %139 : vector<32x1xf32> to vector<32x16xf32>
    %141 = arith.mulf %136, %140 : vector<32x16xf32>
    %142 = vector.extract_strided_slice %110 {offsets = [0, 32], sizes = [16, 32], strides = [1, 1]} : vector<16x128xf32> to vector<16x32xf32>
    %cst_77 = arith.constant dense<0.000000e+00> : vector<32x32xf32>
    %143 = tpu.matmul %141, %142, %cst_77 {dimension_numbers = #tpu.dot_dimension_numbers<[1], [0], [0], [1], [0, 0, 1, 1], [], []>} : vector<32x16xf32>, vector<16x32xf32>, vector<32x32xf32> -> vector<32x32xf32>
    %c1_78 = arith.constant 1 : index
    %c0_79 = arith.constant 0 : index
    %c32_80 = arith.constant 32 : index
    %144 = vector.load %arg12[%c1_78, %c0_79, %c32_80] : memref<2x32x128xf32, #tpu.memory_space<vmem>>, vector<1x32x32xf32>
    %145 = vector.shape_cast %144 : vector<1x32x32xf32> to vector<32x32xf32>
    %146 = vector.shape_cast %143 : vector<32x32xf32> to vector<1x32x32xf32>
    tpu.vector_store %arg12[%c1_78, %c0_79, %c32_80], %146 {strides = array<i32>} : memref<2x32x128xf32, #tpu.memory_space<vmem>>, vector<1x32x32xf32>,
    %147 = vector.extract_strided_slice %106 {offsets = [0, 64], sizes = [32, 32], strides = [1, 1]} : vector<32x128xf32> to vector<32x32xf32>
    %148 = vector.extract_strided_slice %108 {offsets = [64, 0], sizes = [32, 16], strides = [1, 1]} : vector<128x16xf32> to vector<32x16xf32>
    %cst_81 = arith.constant dense<0.000000e+00> : vector<32x16xf32>
    %149 = tpu.matmul %147, %148, %cst_81 {dimension_numbers = #tpu.dot_dimension_numbers<[1], [0], [0], [1], [0, 0, 1, 1], [], []>} : vector<32x32xf32>, vector<32x16xf32>, vector<32x16xf32> -> vector<32x16xf32>
    %cst_82 = arith.constant dense<0xFF800000> : vector<32xf32>
    %150 = vector.multi_reduction <maximumf>, %149, %cst_82 [1] : vector<32x16xf32> to vector<32xf32>
    %151 = vector.shape_cast %150 : vector<32xf32> to vector<32x1xf32>
    %152 = vector.broadcast %151 : vector<32x1xf32> to vector<32x16xf32>
    %153 = arith.subf %149, %152 : vector<32x16xf32>
    %154 = math.exp %153 : vector<32x16xf32>
    %cst_83 = arith.constant dense<0.000000e+00> : vector<32xf32>
    %155 = vector.multi_reduction <add>, %154, %cst_83 [1] : vector<32x16xf32> to vector<32xf32>
    %156 = vector.shape_cast %155 : vector<32xf32> to vector<32x1xf32>
    %157 = tpu.reciprocal %156 : vector<32x1xf32> -> vector<32x1xf32>
    %158 = vector.broadcast %157 : vector<32x1xf32> to vector<32x16xf32>
    %159 = arith.mulf %154, %158 : vector<32x16xf32>
    %160 = vector.extract_strided_slice %110 {offsets = [0, 64], sizes = [16, 32], strides = [1, 1]} : vector<16x128xf32> to vector<16x32xf32>
    %cst_84 = arith.constant dense<0.000000e+00> : vector<32x32xf32>
    %161 = tpu.matmul %159, %160, %cst_84 {dimension_numbers = #tpu.dot_dimension_numbers<[1], [0], [0], [1], [0, 0, 1, 1], [], []>} : vector<32x16xf32>, vector<16x32xf32>, vector<32x32xf32> -> vector<32x32xf32>
    %c1_85 = arith.constant 1 : index
    %c0_86 = arith.constant 0 : index
    %c64_87 = arith.constant 64 : index
    %162 = vector.load %arg12[%c1_85, %c0_86, %c64_87] : memref<2x32x128xf32, #tpu.memory_space<vmem>>, vector<1x32x32xf32>
    %163 = vector.shape_cast %162 : vector<1x32x32xf32> to vector<32x32xf32>
    %164 = vector.shape_cast %161 : vector<32x32xf32> to vector<1x32x32xf32>
    tpu.vector_store %arg12[%c1_85, %c0_86, %c64_87], %164 {strides = array<i32>} : memref<2x32x128xf32, #tpu.memory_space<vmem>>, vector<1x32x32xf32>,
    %165 = vector.extract_strided_slice %106 {offsets = [0, 96], sizes = [32, 32], strides = [1, 1]} : vector<32x128xf32> to vector<32x32xf32>
    %166 = vector.extract_strided_slice %108 {offsets = [96, 0], sizes = [32, 16], strides = [1, 1]} : vector<128x16xf32> to vector<32x16xf32>
    %cst_88 = arith.constant dense<0.000000e+00> : vector<32x16xf32>
    %167 = tpu.matmul %165, %166, %cst_88 {dimension_numbers = #tpu.dot_dimension_numbers<[1], [0], [0], [1], [0, 0, 1, 1], [], []>} : vector<32x32xf32>, vector<32x16xf32>, vector<32x16xf32> -> vector<32x16xf32>
    %cst_89 = arith.constant dense<0xFF800000> : vector<32xf32>
    %168 = vector.multi_reduction <maximumf>, %167, %cst_89 [1] : vector<32x16xf32> to vector<32xf32>
    %169 = vector.shape_cast %168 : vector<32xf32> to vector<32x1xf32>
    %170 = vector.broadcast %169 : vector<32x1xf32> to vector<32x16xf32>
    %171 = arith.subf %167, %170 : vector<32x16xf32>
    %172 = math.exp %171 : vector<32x16xf32>
    %cst_90 = arith.constant dense<0.000000e+00> : vector<32xf32>
    %173 = vector.multi_reduction <add>, %172, %cst_90 [1] : vector<32x16xf32> to vector<32xf32>
    %174 = vector.shape_cast %173 : vector<32xf32> to vector<32x1xf32>
    %175 = tpu.reciprocal %174 : vector<32x1xf32> -> vector<32x1xf32>
    %176 = vector.broadcast %175 : vector<32x1xf32> to vector<32x16xf32>
    %177 = arith.mulf %172, %176 : vector<32x16xf32>
    %178 = vector.extract_strided_slice %110 {offsets = [0, 96], sizes = [16, 32], strides = [1, 1]} : vector<16x128xf32> to vector<16x32xf32>
    %cst_91 = arith.constant dense<0.000000e+00> : vector<32x32xf32>
    %179 = tpu.matmul %177, %178, %cst_91 {dimension_numbers = #tpu.dot_dimension_numbers<[1], [0], [0], [1], [0, 0, 1, 1], [], []>} : vector<32x16xf32>, vector<16x32xf32>, vector<32x32xf32> -> vector<32x32xf32>
    %c1_92 = arith.constant 1 : index
    %c0_93 = arith.constant 0 : index
    %c96_94 = arith.constant 96 : index
    %180 = vector.load %arg12[%c1_92, %c0_93, %c96_94] : memref<2x32x128xf32, #tpu.memory_space<vmem>>, vector<1x32x32xf32>
    %181 = vector.shape_cast %180 : vector<1x32x32xf32> to vector<32x32xf32>
    %182 = vector.shape_cast %179 : vector<32x32xf32> to vector<1x32x32xf32>
    tpu.vector_store %arg12[%c1_92, %c0_93, %c96_94], %182 {strides = array<i32>} : memref<2x32x128xf32, #tpu.memory_space<vmem>>, vector<1x32x32xf32>,
    %c0_95 = arith.constant 0 : index
    %c0_96 = arith.constant 0 : index
    %c0_97 = arith.constant 0 : index
    %183 = vector.load %arg12[%c0_95, %c0_96, %c0_97] : memref<2x32x128xf32, #tpu.memory_space<vmem>>, vector<2x32x128xf32>
    %184 = vector.shape_cast %183 : vector<2x32x128xf32> to vector<64x128xf32>
    %c0_98 = arith.constant 0 : index
    %c0_99 = arith.constant 0 : index
    %185 = vector.load %arg7[%c0_98, %c0_99] : memref<128x128xf32, #tpu.memory_space<vmem>>, vector<128x128xf32>
    %cst_100 = arith.constant dense<0.000000e+00> : vector<64x128xf32>
    %186 = tpu.matmul %184, %185, %cst_100 {dimension_numbers = #tpu.dot_dimension_numbers<[1], [0], [0], [1], [0, 0, 1, 1], [], []>} : vector<64x128xf32>, vector<128x128xf32>, vector<64x128xf32> -> vector<64x128xf32>
    %187 = vector.shape_cast %186 : vector<64x128xf32> to vector<2x32x128xf32>
    %c0_101 = arith.constant 0 : index
    %c0_102 = arith.constant 0 : index
    %c0_103 = arith.constant 0 : index
    %188 = vector.load %arg8[%c0_101, %c0_102, %c0_103] : memref<2x32x128xf32, #tpu.memory_space<vmem>>, vector<2x32x128xf32>
    tpu.vector_store %arg8[%c0_101, %c0_102, %c0_103], %187 {strides = array<i32>} : memref<2x32x128xf32, #tpu.memory_space<vmem>>, vector<2x32x128xf32>,
    return
  }
  func.func @transform_0(%arg0: i32, %arg1: i32) -> (i32, i32, i32) {
    %c0_i32 = arith.constant 0 : i32
    %c0_i32_0 = arith.constant 0 : i32
    return %arg0, %arg1, %c0_i32 : i32, i32, i32
  }
  func.func @transform_1(%arg0: i32, %arg1: i32) -> (i32, i32, i32) {
    %c0_i32 = arith.constant 0 : i32
    %c0_i32_0 = arith.constant 0 : i32
    %c0_i32_1 = arith.constant 0 : i32
    return %arg0, %c0_i32, %c0_i32_0 : i32, i32, i32
  }
  func.func @transform_2(%arg0: i32, %arg1: i32) -> (i32, i32) {
    %c0_i32 = arith.constant 0 : i32
    %c0_i32_0 = arith.constant 0 : i32
    %c0_i32_1 = arith.constant 0 : i32
    return %c0_i32, %c0_i32_0 : i32, i32
  }
  func.func @transform_3(%arg0: i32, %arg1: i32) -> (i32, i32) {
    %c0_i32 = arith.constant 0 : i32
    %c0_i32_0 = arith.constant 0 : i32
    %c0_i32_1 = arith.constant 0 : i32
    return %c0_i32, %c0_i32_0 : i32, i32
  }
  func.func @transform_4(%arg0: i32, %arg1: i32) -> (i32, i32) {
    %c0_i32 = arith.constant 0 : i32
    %c0_i32_0 = arith.constant 0 : i32
    %c0_i32_1 = arith.constant 0 : i32
    return %c0_i32, %c0_i32_0 : i32, i32
  }
  func.func @transform_5(%arg0: i32, %arg1: i32) -> (i32, i32) {
    %c0_i32 = arith.constant 0 : i32
    %c0_i32_0 = arith.constant 0 : i32
    %c0_i32_1 = arith.constant 0 : i32
    return %c0_i32, %c0_i32_0 : i32, i32
  }
  func.func @transform_6(%arg0: i32, %arg1: i32) -> (i32, i32, i32) {
    %c0_i32 = arith.constant 0 : i32
    %c0_i32_0 = arith.constant 0 : i32
    return %arg0, %arg1, %c0_i32 : i32, i32, i32
  }
}

</mosaic_0001>

<llo_original>
// kernel: tpu_custom_call.1
$region0: #{tpu_custom_call.1}
  #allocation0 [shape = 'u32[]', space=smem, size = 0x4, offset = 0x4, fixed_abs, tag = 'smem constant byte address 0x4 - core index']
  #allocation1 [shape = 'u32[144,128]{1,0:T(1,128)}', space=vmem, size = 0x12000, scoped, tag = 'internal scratch']
  #allocation2 [shape = 'f32[2,32,128]{2,1,0:T(8,128)}', space=vmem, size = 0x8000, scoped, tag = 'scratch operand']
  #allocation3 [shape = 'f32[2,128,16]{2,1,0:T(8,128)}', space=vmem, size = 0x20000, scoped, tag = 'scratch operand']
  #allocation4 [shape = 'f32[2,16,128]{2,1,0:T(8,128)}', space=vmem, size = 0x4000, scoped, tag = 'scratch operand']
  #allocation5 [shape = 'f32[2,32,128]{2,1,0:T(8,128)}', space=vmem, size = 0x8000, scoped, tag = 'scratch operand']
  %s0 = inlined_call_operand.hbm [shape: f32[4,32,128], index: 0, kind: input, shape index: {}]
  %s1 = inlined_call_operand.hbm [shape: f32[4,16,128], index: 1, kind: input, shape index: {}]
  %s2 = inlined_call_operand.hbm [shape: f32[128,128], index: 2, kind: input, shape index: {}]
  %s3 = inlined_call_operand.hbm [shape: f32[128,128], index: 3, kind: input, shape index: {}]
  %s4 = inlined_call_operand.hbm [shape: f32[128,128], index: 4, kind: input, shape index: {}]
  %s5 = inlined_call_operand.hbm [shape: f32[128,128], index: 5, kind: input, shape index: {}]
  %s6 = inlined_call_operand.hbm [shape: f32[4,32,128], index: 6, kind: output, shape index: {}]
  %s7 = sld [smem:[#allocation0]]
  $region81: #{tpu_custom_call.1} parent=0
    _
  %s9 = ssub.s32 1, %s7
  %s10 = scalar_select 0, %s9, %s7
  $region1: #{tpu_custom_call.1} parent=0
    #allocation6 [shape = 'u8[65536]{0}', space=vmem, size = 0x10000, scoped, tag = 'input window, operand 0']
    #allocation7 [shape = 's32[2]{0}', space=sflag, size = 0x8, scoped, tag = 'scoped memory for tpu_custom_call.1']
    #allocation8 [shape = 's32[2]{0}', space=sflag, size = 0x8, scoped, tag = 'scoped memory for tpu_custom_call.1']
    #allocation9 [shape = 'u8[32768]{0}', space=vmem, size = 0x8000, scoped, tag = 'input window, operand 1']
    #allocation10 [shape = 's32[2]{0}', space=sflag, size = 0x8, scoped, tag = 'scoped memory for tpu_custom_call.1']
    #allocation11 [shape = 'u8[65536]{0}', space=vmem, size = 0x10000, scoped, tag = 'input window, operand 2, single buffered']
    #allocation12 [shape = 'u8[65536]{0}', space=vmem, size = 0x10000, scoped, tag = 'input window, operand 3, single buffered']
    #allocation13 [shape = 's32[1]{0}', space=sflag, size = 0x4, scoped, tag = 'scoped memory for tpu_custom_call.1']
    #allocation14 [shape = 'u8[65536]{0}', space=vmem, size = 0x10000, scoped, tag = 'input window, operand 4, single buffered']
    #allocation15 [shape = 'u8[65536]{0}', space=vmem, size = 0x10000, scoped, tag = 'input window, operand 5, single buffered']
    #allocation16 [shape = 's32[1]{0}', space=sflag, size = 0x4, scoped, tag = 'scoped memory for tpu_custom_call.1']
    #allocation17 [shape = 'u8[65536]{0}', space=vmem, size = 0x10000, scoped, tag = 'output window, operand 0']
    %11 = vsyncpa [#allocation7], 0
    %s12 = scalar_lea.sflag [#allocation7], 1
    %13 = vsyncpa %s12, 0
    %14 = vsyncpa [#allocation10], 0
    %s15 = scalar_lea.sflag [#allocation10], 1
    %16 = vsyncpa %s15, 0
    %17 = vsyncpa [#allocation13], 0
    %18 = vsyncpa [#allocation16], 0
    %19 = vsyncpa [#allocation8], 0
    %s20 = scalar_lea.sflag [#allocation8], 1
    %21 = vsyncpa %s20, 0
    loop: start=0, step=1, limit=4
    $region2: #{tpu_custom_call.1} parent=1 // loop_pre_header
      _
    $region3: #{tpu_custom_call.1} parent=1 // loop_header
      %s23 = sphi 0, %s27
      %p24 = scmp.ge.s32.totalorder %s23, 4
      %s30 = sphi 0, %s42
      %s31 = sphi 0, %s38
      %s32 = sphi 0, %s30
      %s33 = sphi 0, %s31
      %s34 = sphi 0, %s32
      %s35 = sphi 0, %s33
      %s47 = sphi 0, %s49
      %s50 = sphi 0, %s47
      %s51 = sphi 0, %s50
      %s67 = sphi 0, %s51
      %s73 = sphi 0, %s75
      %s76 = sphi 0, %s73
      %s77 = sphi 0, %s76
      %s93 = sphi 0, %s77
      %s97 = sphi 0, %s97
      %s99 = sphi 0, %s97
      %s100 = sphi 0, %s99
      %s114 = sphi 0, %s100
      %s118 = sphi 0, %s118
      %s120 = sphi 0, %s118
      %s121 = sphi 0, %s120
      %s135 = sphi 0, %s121
      %s139 = sphi 0, %s139
      %s141 = sphi 0, %s139
      %s142 = sphi 0, %s141
      %s156 = sphi 0, %s142
      %s160 = sphi 0, %s160
      %s162 = sphi 0, %s160
      %s163 = sphi 0, %s162
      %s177 = sphi 0, %s163
      %s185 = sphi 0, %s187
      %s188 = sphi 0, %s185
      %s189 = sphi 0, %s188
      %s205 = sphi 0, %s189
    $region4: #{tpu_custom_call.1} parent=1 // loop_header_branch
      %26 = sbr.rel (%p24) target = $region8
    $region5: #{tpu_custom_call.1} parent=1 // loop_body
      %s28 = ssub.s32 %s23, 1
      %s29 = ssub.s32 %s23, 2
      %s36 = sadd.s32 1, %s31
      %p37 = scmp.ge.s32.totalorder %s36, 1
      %s38 = scalar_select %p37, 0, %s36
      %s39 = sadd.s32 1, %s30
      %s40 = scalar_select %p37, %s39, %s30
      %p41 = scmp.ge.s32.totalorder %s40, 2
      %s42 = scalar_select %p41, 0, %s40
      %s43 = ssub.s32 %s30, %s42
      %s44 = ssub.s32 %s31, %s38
      %s45 = sor.u32 %s43, %s44
      %p46 = scmp.eq.s32.totalorder %s45, 0
      %s48 = sadd.s32 %s47, 1
      %s49 = scalar_select %p46, %s47, %s48
      %p52 = pneg %p46
      %p53 = scmp.eq.s32.totalorder %s23, 1
      %p54 = por %p52, %p53
      %p55 = scmp.ne.s32.totalorder %s47, %s50
      %p56 = scmp.eq.s32.totalorder %s23, 0
      %p57 = por %p55, %p56
      %p58 = scmp.ne.s32.totalorder %s47, %s50
      %p59 = scmp.eq.s32.totalorder %s28, 1
      %p60 = por %p58, %p59
      %p61 = scmp.ne.s32.totalorder %s50, %s51
      %p62 = scmp.eq.s32.totalorder %s28, 0
      %p63 = por %p61, %p62
      %p64 = scmp.ne.s32.totalorder %s50, %s51
      %p65 = scmp.eq.s32.totalorder %s29, 1
      %p66 = por %p64, %p65
      %p68 = scmp.ne.s32.totalorder %s51, %s67
      %p69 = scmp.eq.s32.totalorder %s29, 0
      %p70 = por %p68, %p69
      %s71 = ssub.s32 %s30, %s42
      %p72 = scmp.eq.s32.totalorder %s71, 0
      %s74 = sadd.s32 %s73, 1
      %s75 = scalar_select %p72, %s73, %s74
      %p78 = pneg %p72
      %p79 = scmp.eq.s32.totalorder %s23, 1
      %p80 = por %p78, %p79
      %p81 = scmp.ne.s32.totalorder %s73, %s76
      %p82 = scmp.eq.s32.totalorder %s23, 0
      %p83 = por %p81, %p82
      %p84 = scmp.ne.s32.totalorder %s73, %s76
      %p85 = scmp.eq.s32.totalorder %s28, 1
      %p86 = por %p84, %p85
      %p87 = scmp.ne.s32.totalorder %s76, %s77
      %p88 = scmp.eq.s32.totalorder %s28, 0
      %p89 = por %p87, %p88
      %p90 = scmp.ne.s32.totalorder %s76, %s77
      %p91 = scmp.eq.s32.totalorder %s29, 1
      %p92 = por %p90, %p91
      %p94 = scmp.ne.s32.totalorder %s77, %s93
      %p95 = scmp.eq.s32.totalorder %s29, 0
      %p96 = por %p94, %p95
      %s98 = sadd.s32 %s97, 1
      %p101 = scmp.eq.s32.totalorder %s23, 1
      %p102 = scmp.ne.s32.totalorder %s97, %s99
      %p103 = scmp.eq.s32.totalorder %s23, 0
      %p104 = por %p102, %p103
      %p105 = scmp.ne.s32.totalorder %s97, %s99
      %p106 = scmp.eq.s32.totalorder %s28, 1
      %p107 = por %p105, %p106
      %p108 = scmp.ne.s32.totalorder %s99, %s100
      %p109 = scmp.eq.s32.totalorder %s28, 0
      %p110 = por %p108, %p109
      %p111 = scmp.ne.s32.totalorder %s99, %s100
      %p112 = scmp.eq.s32.totalorder %s29, 1
      %p113 = por %p111, %p112
      %p115 = scmp.ne.s32.totalorder %s100, %s114
      %p116 = scmp.eq.s32.totalorder %s29, 0
      %p117 = por %p115, %p116
      %s119 = sadd.s32 %s118, 1
      %p122 = scmp.eq.s32.totalorder %s23, 1
      %p123 = scmp.ne.s32.totalorder %s118, %s120
      %p124 = scmp.eq.s32.totalorder %s23, 0
      %p125 = por %p123, %p124
      %p126 = scmp.ne.s32.totalorder %s118, %s120
      %p127 = scmp.eq.s32.totalorder %s28, 1
      %p128 = por %p126, %p127
      %p129 = scmp.ne.s32.totalorder %s120, %s121
      %p130 = scmp.eq.s32.totalorder %s28, 0
      %p131 = por %p129, %p130
      %p132 = scmp.ne.s32.totalorder %s120, %s121
      %p133 = scmp.eq.s32.totalorder %s29, 1
      %p134 = por %p132, %p133
      %p136 = scmp.ne.s32.totalorder %s121, %s135
      %p137 = scmp.eq.s32.totalorder %s29, 0
      %p138 = por %p136, %p137
      %s140 = sadd.s32 %s139, 1
      %p143 = scmp.eq.s32.totalorder %s23, 1
      %p144 = scmp.ne.s32.totalorder %s139, %s141
      %p145 = scmp.eq.s32.totalorder %s23, 0
      %p146 = por %p144, %p145
      %p147 = scmp.ne.s32.totalorder %s139, %s141
      %p148 = scmp.eq.s32.totalorder %s28, 1
      %p149 = por %p147, %p148
      %p150 = scmp.ne.s32.totalorder %s141, %s142
      %p151 = scmp.eq.s32.totalorder %s28, 0
      %p152 = por %p150, %p151
      %p153 = scmp.ne.s32.totalorder %s141, %s142
      %p154 = scmp.eq.s32.totalorder %s29, 1
      %p155 = por %p153, %p154
      %p157 = scmp.ne.s32.totalorder %s142, %s156
      %p158 = scmp.eq.s32.totalorder %s29, 0
      %p159 = por %p157, %p158
      %s161 = sadd.s32 %s160, 1
      %p164 = scmp.eq.s32.totalorder %s23, 1
      %p165 = scmp.ne.s32.totalorder %s160, %s162
      %p166 = scmp.eq.s32.totalorder %s23, 0
      %p167 = por %p165, %p166
      %p168 = scmp.ne.s32.totalorder %s160, %s162
      %p169 = scmp.eq.s32.totalorder %s28, 1
      %p170 = por %p168, %p169
      %p171 = scmp.ne.s32.totalorder %s162, %s163
      %p172 = scmp.eq.s32.totalorder %s28, 0
      %p173 = por %p171, %p172
      %p174 = scmp.ne.s32.totalorder %s162, %s163
      %p175 = scmp.eq.s32.totalorder %s29, 1
      %p176 = por %p174, %p175
      %p178 = scmp.ne.s32.totalorder %s163, %s177
      %p179 = scmp.eq.s32.totalorder %s29, 0
      %p180 = por %p178, %p179
      %s181 = ssub.s32 %s30, %s42
      %s182 = ssub.s32 %s31, %s38
      %s183 = sor.u32 %s181, %s182
      %p184 = scmp.eq.s32.totalorder %s183, 0
      %s186 = sadd.s32 %s185, 1
      %s187 = scalar_select %p184, %s185, %s186
      %p190 = pneg %p184
      %p191 = scmp.eq.s32.totalorder %s23, 1
      %p192 = por %p190, %p191
      %p193 = scmp.ne.s32.totalorder %s185, %s188
      %p194 = scmp.eq.s32.totalorder %s23, 0
      %p195 = por %p193, %p194
      %p196 = scmp.ne.s32.totalorder %s185, %s188
      %p197 = scmp.eq.s32.totalorder %s28, 1
      %p198 = por %p196, %p197
      %p199 = scmp.ne.s32.totalorder %s188, %s189
      %p200 = scmp.eq.s32.totalorder %s28, 0
      %p201 = por %p199, %p200
      %p202 = scmp.ne.s32.totalorder %s188, %s189
      %p203 = scmp.eq.s32.totalorder %s29, 1
      %p204 = por %p202, %p203
      %p206 = scmp.ne.s32.totalorder %s189, %s205
      %p207 = scmp.eq.s32.totalorder %s29, 0
      %p208 = por %p206, %p207
      %p209 = scmp.le.s32.totalorder 1, %s23
      %p210 = scmp.lt.s32.totalorder %s23, 3
      %p211 = pnand %p209, %p210
      %p212 = pneg %p211
      // Predicated region
      $region9: #{tpu_custom_call.1} parent=5 // pred_check
        _
      $region10: #{tpu_custom_call.1} parent=5 // pred_check_branch
        %214 = sbr.rel (%p211) target = $region12
      $region11: #{tpu_custom_call.1} parent=5 // pred_region
        %s215 = ssub.s32 %s23, 1
        // Predicated region
        $region13: #{tpu_custom_call.1} parent=11 // pred_check
          %p216 = pneg %p110
        $region14: #{tpu_custom_call.1} parent=11 // pred_check_branch
          %218 = sbr.rel (%p216) target = $region16
        $region15: #{tpu_custom_call.1} parent=11 // pred_region
          %s220 = ssub.s32 2048, 2048
          %221 = vsyncadd [#allocation10], %s220
          %s222 = sshll.u32 [#allocation11], 4
          %s223 = int_to_ptr.vmem [resolvable:$true] %s222
          %228 = dma.hbm_to_vmem [thread:$0]  %s2, 2048, %s223, [#allocation10], 128, 128, 8
        $region16: #{tpu_custom_call.1} parent=11 // pred_fallthru
          _
        // Predicated region
        $region17: #{tpu_custom_call.1} parent=11 // pred_check
          %p229 = pneg %p131
        $region18: #{tpu_custom_call.1} parent=11 // pred_check_branch
          %231 = sbr.rel (%p229) target = $region20
        $region19: #{tpu_custom_call.1} parent=11 // pred_region
          %s233 = ssub.s32 2048, 2048
          %234 = vsyncadd [#allocation13], %s233
          %s235 = sshll.u32 [#allocation12], 4
          %s236 = int_to_ptr.vmem [resolvable:$true] %s235
          %241 = dma.hbm_to_vmem [thread:$0]  %s3, 2048, %s236, [#allocation13], 128, 128, 8
        $region20: #{tpu_custom_call.1} parent=11 // pred_fallthru
          _
        // Predicated region
        $region21: #{tpu_custom_call.1} parent=11 // pred_check
          %p242 = pneg %p152
        $region22: #{tpu_custom_call.1} parent=11 // pred_check_branch
          %244 = sbr.rel (%p242) target = $region24
        $region23: #{tpu_custom_call.1} parent=11 // pred_region
          %s246 = ssub.s32 2048, 2048
          %247 = vsyncadd [#allocation13], %s246
          %s248 = sshll.u32 [#allocation14], 4
          %s249 = int_to_ptr.vmem [resolvable:$true] %s248
          %254 = dma.hbm_to_vmem [thread:$0]  %s4, 2048, %s249, [#allocation13], 128, 128, 8
        $region24: #{tpu_custom_call.1} parent=11 // pred_fallthru
          _
        // Predicated region
        $region25: #{tpu_custom_call.1} parent=11 // pred_check
          %p255 = pneg %p173
        $region26: #{tpu_custom_call.1} parent=11 // pred_check_branch
          %257 = sbr.rel (%p255) target = $region28
        $region27: #{tpu_custom_call.1} parent=11 // pred_region
          %s259 = ssub.s32 2048, 2048
          %260 = vsyncadd [#allocation16], %s259
          %s261 = sshll.u32 [#allocation15], 4
          %s262 = int_to_ptr.vmem [resolvable:$true] %s261
          %267 = dma.hbm_to_vmem [thread:$0]  %s5, 2048, %s262, [#allocation16], 128, 128, 8
        $region28: #{tpu_custom_call.1} parent=11 // pred_fallthru
          _
      $region12: #{tpu_custom_call.1} parent=5 // pred_fallthru
        _
      %p268 = scmp.lt.s32.totalorder %s23, 2
      // Predicated region
      $region29: #{tpu_custom_call.1} parent=5 // pred_check
        %p269 = pneg %p268
      $region30: #{tpu_custom_call.1} parent=5 // pred_check_branch
        %271 = sbr.rel (%p269) target = $region32
      $region31: #{tpu_custom_call.1} parent=5 // pred_region
        // Predicated region
        $region33: #{tpu_custom_call.1} parent=31 // pred_check
          %p272 = pneg %p57
        $region34: #{tpu_custom_call.1} parent=31 // pred_check_branch
          %274 = sbr.rel (%p272) target = $region36
        $region35: #{tpu_custom_call.1} parent=31 // pred_region
          %s275 = sand.u32 %s47, 1
          %s276 = scalar_lea.sflag [#allocation7], %s275
          %s277 = sand.u32 %s47, 1
          %s278 = smul.addr %s277, 64
          %s279 = scalar_lea.vmem [#allocation6], %s278
          %s280 = smul.u32 2, %s30
          %s281 = smul.u32 4, %s31
          %s283 = ssub.s32 1024, 1024
          %284 = vsyncadd %s276, %s283
          %s285 = smul.addr %s280, 4
          %s286 = sadd.s32 %s281, %s285
          %s287 = smul.addr %s286, 128
          %s288 = scalar_lea.hbm %s0, %s287
          %s289 = sshll.u32 %s279, 4
          %s290 = int_to_ptr.vmem [resolvable:$true] %s289
          %295 = dma.hbm_to_vmem [thread:$0]  %s288, 1024, %s290, %s276, 128, 128, 8
        $region36: #{tpu_custom_call.1} parent=31 // pred_fallthru
          _
        // Predicated region
        $region37: #{tpu_custom_call.1} parent=31 // pred_check
          %p296 = pneg %p83
        $region38: #{tpu_custom_call.1} parent=31 // pred_check_branch
          %298 = sbr.rel (%p296) target = $region40
        $region39: #{tpu_custom_call.1} parent=31 // pred_region
          %s299 = sand.u32 %s23, 1
          %s300 = scalar_lea.sflag [#allocation10], %s299
          %s301 = sand.u32 %s73, 1
          %s302 = smul.addr %s301, 32
          %s303 = scalar_lea.vmem [#allocation9], %s302
          %s304 = smul.u32 2, %s30
          %s306 = ssub.s32 512, 512
          %307 = vsyncadd %s300, %s306
          %s308 = smul.addr %s304, 2
          %s309 = smul.addr %s308, 128
          %s310 = scalar_lea.hbm %s1, %s309
          %s311 = sshll.u32 %s303, 4
          %s312 = int_to_ptr.vmem [resolvable:$true] %s311
          %317 = dma.hbm_to_vmem [thread:$0]  %s310, 512, %s312, %s300, 128, 128, 8
        $region40: #{tpu_custom_call.1} parent=31 // pred_fallthru
          _
      $region32: #{tpu_custom_call.1} parent=5 // pred_fallthru
        _
      %p318 = scmp.le.s32.totalorder 1, %s23
      %p319 = scmp.lt.s32.totalorder %s23, 3
      %p320 = pnand %p318, %p319
      %p321 = pneg %p320
      // Predicated region
      $region41: #{tpu_custom_call.1} parent=5 // pred_check
        _
      $region42: #{tpu_custom_call.1} parent=5 // pred_check_branch
        %323 = sbr.rel (%p320) target = $region44
      $region43: #{tpu_custom_call.1} parent=5 // pred_region
        %s324 = ssub.s32 %s23, 1
        %s325 = sand.u32 %s50, 1
        %s326 = scalar_lea.sflag [#allocation7], %s325
        %s327 = sand.u32 %s50, 1
        %s328 = smul.addr %s327, 64
        %s329 = scalar_lea.vmem [#allocation6], %s328
        // Predicated region
        $region45: #{tpu_custom_call.1} parent=43 // pred_check
          %p330 = pneg %p63
        $region46: #{tpu_custom_call.1} parent=43 // pred_check_branch
          %332 = sbr.rel (%p330) target = $region48
        $region47: #{tpu_custom_call.1} parent=43 // pred_region
          %333 = dma.done %s326, 1024
        $region48: #{tpu_custom_call.1} parent=43 // pred_fallthru
          _
        %s334 = sand.u32 %s28, 1
        %s335 = scalar_lea.sflag [#allocation10], %s334
        %s336 = sand.u32 %s76, 1
        %s337 = smul.addr %s336, 32
        %s338 = scalar_lea.vmem [#allocation9], %s337
        // Predicated region
        $region49: #{tpu_custom_call.1} parent=43 // pred_check
          %p339 = pneg %p89
        $region50: #{tpu_custom_call.1} parent=43 // pred_check_branch
          %341 = sbr.rel (%p339) target = $region52
        $region51: #{tpu_custom_call.1} parent=43 // pred_region
          %342 = dma.done %s335, 512
        $region52: #{tpu_custom_call.1} parent=43 // pred_fallthru
          _
        // Predicated region
        $region53: #{tpu_custom_call.1} parent=43 // pred_check
          %p343 = pneg %p110
        $region54: #{tpu_custom_call.1} parent=43 // pred_check_branch
          %345 = sbr.rel (%p343) target = $region56
        $region55: #{tpu_custom_call.1} parent=43 // pred_region
          %346 = dma.done [#allocation10], 2048
        $region56: #{tpu_custom_call.1} parent=43 // pred_fallthru
          _
        // Predicated region
        $region57: #{tpu_custom_call.1} parent=43 // pred_check
          %p347 = pneg %p131
        $region58: #{tpu_custom_call.1} parent=43 // pred_check_branch
          %349 = sbr.rel (%p347) target = $region60
        $region59: #{tpu_custom_call.1} parent=43 // pred_region
          %350 = dma.done [#allocation13], 2048
        $region60: #{tpu_custom_call.1} parent=43 // pred_fallthru
          _
        // Predicated region
        $region61: #{tpu_custom_call.1} parent=43 // pred_check
          %p351 = pneg %p152
        $region62: #{tpu_custom_call.1} parent=43 // pred_check_branch
          %353 = sbr.rel (%p351) target = $region64
        $region63: #{tpu_custom_call.1} parent=43 // pred_region
          %354 = dma.done [#allocation13], 2048
        $region64: #{tpu_custom_call.1} parent=43 // pred_fallthru
          _
        // Predicated region
        $region65: #{tpu_custom_call.1} parent=43 // pred_check
          %p355 = pneg %p173
        $region66: #{tpu_custom_call.1} parent=43 // pred_check_branch
          %357 = sbr.rel (%p355) target = $region68
        $region67: #{tpu_custom_call.1} parent=43 // pred_region
          %358 = dma.done [#allocation16], 2048
        $region68: #{tpu_custom_call.1} parent=43 // pred_fallthru
          _
        %s359 = sand.u32 %s50, 1
        %s360 = scalar_lea.sflag [#allocation7], %s359
        %s361 = sand.u32 %s50, 1
        %s362 = smul.addr %s361, 64
        %s363 = scalar_lea.vmem [#allocation6], %s362
        %p364 = pneg %p63
        %p365 = pneg %p60
        %s366 = sand.u32 %s28, 1
        %s367 = scalar_lea.sflag [#allocation10], %s366
        %s368 = sand.u32 %s76, 1
        %s369 = smul.addr %s368, 32
        %s370 = scalar_lea.vmem [#allocation9], %s369
        %p371 = pneg %p89
        %p372 = pneg %p86
        %p373 = pneg %p110
        %p374 = pneg %p107
        %p375 = pneg %p131
        %p376 = pneg %p128
        %p377 = pneg %p152
        %p378 = pneg %p149
        %p379 = pneg %p173
        %p380 = pneg %p170
        %p381 = pneg %p201
        %p382 = pneg %p198
        %s383 = sand.u32 %s188, 1
        %s384 = scalar_lea.sflag [#allocation8], %s383
        %s385 = sand.u32 %s188, 1
        %s386 = smul.addr %s385, 64
        %s387 = scalar_lea.vmem [#allocation17], %s386
        %s388 = smul.u32 2, %s32
        %s389 = smul.u32 4, %s33
        %s390 = smul.u32 2, %s32
        %s391 = smul.u32 2, %s32
        %s392 = smul.u32 4, %s33
        %v393 = vld [vmem:[%s338] sm:$0xff]
        %v394 = vld [vmem:[%s338 + $0x8] sm:$0xff]
        %v395 = vld [vmem:[%s338 + $0x10] sm:$0xff]
        %v396 = vld [vmem:[%s338 + $0x18] sm:$0xff]
        %v397 = vld [vmem:[#allocation12] sm:$0xff]
        %v398 = vld [vmem:[#allocation12 + $0x8] sm:$0xff]
        %v399 = vld [vmem:[#allocation12 + $0x10] sm:$0xff]
        %v400 = vld [vmem:[#allocation12 + $0x18] sm:$0xff]
        %v401 = vld [vmem:[#allocation12 + $0x20] sm:$0xff]
        %v402 = vld [vmem:[#allocation12 + $0x28] sm:$0xff]
        %v403 = vld [vmem:[#allocation12 + $0x30] sm:$0xff]
        %v404 = vld [vmem:[#allocation12 + $0x38] sm:$0xff]
        %v405 = vld [vmem:[#allocation12 + $0x40] sm:$0xff]
        %v406 = vld [vmem:[#allocation12 + $0x48] sm:$0xff]
        %v407 = vld [vmem:[#allocation12 + $0x50] sm:$0xff]
        %v408 = vld [vmem:[#allocation12 + $0x58] sm:$0xff]
        %v409 = vld [vmem:[#allocation12 + $0x60] sm:$0xff]
        %v410 = vld [vmem:[#allocation12 + $0x68] sm:$0xff]
        %v411 = vld [vmem:[#allocation12 + $0x70] sm:$0xff]
        %v412 = vld [vmem:[#allocation12 + $0x78] sm:$0xff]
        %413 = vmatprep.subr.mxu0 0.0
        %414 = vmatpush1.msra.mxu0 %v412
        %415 = vmatprep.subr.mxu0 0.0
        %416 = vmatpush1.msra.mxu0 %v411
        %417 = vmatprep.subr.mxu0 0.0
        %418 = vmatpush1.msra.mxu0 %v410
        %419 = vmatprep.subr.mxu0 0.0
        %420 = vmatpush1.msra.mxu0 %v409
        %421 = vmatprep.subr.mxu0 0.0
        %422 = vmatpush1.msra.mxu0 %v408
        %423 = vmatprep.subr.mxu0 0.0
        %424 = vmatpush1.msra.mxu0 %v407
        %425 = vmatprep.subr.mxu0 0.0
        %426 = vmatpush1.msra.mxu0 %v406
        %427 = vmatprep.subr.mxu0 0.0
        %428 = vmatpush1.msra.mxu0 %v405
        %429 = vmatprep.subr.mxu0 0.0
        %430 = vmatpush1.msra.mxu0 %v404
        %431 = vmatprep.subr.mxu0 0.0
        %432 = vmatpush1.msra.mxu0 %v403
        %433 = vmatprep.subr.mxu0 0.0
        %434 = vmatpush1.msra.mxu0 %v402
        %435 = vmatprep.subr.mxu0 0.0
        %436 = vmatpush1.msra.mxu0 %v401
        %437 = vmatprep.subr.mxu0 0.0
        %438 = vmatpush1.msra.mxu0 %v400
        %439 = vmatprep.subr.mxu0 0.0
        %440 = vmatpush1.msra.mxu0 %v399
        %441 = vmatprep.subr.mxu0 0.0
        %442 = vmatpush1.msra.mxu0 %v398
        %443 = vmatprep.subr.mxu0 0.0
        %444 = vmatpush1.msra.mxu0 %v397
        %445 = vmatprep.subr.mxu0 0.0
        %446 = vmatpush2.msra.mxu0 0.0
        %447 = vmatprep.subr.mxu0 0.0
        %448 = vmatpush2.msra.mxu0 0.0
        %449 = vmatprep.subr.mxu0 0.0
        %450 = vmatpush2.msra.mxu0 0.0
        %451 = vmatprep.subr.mxu0 0.0
        %452 = vmatpush2.msra.mxu0 0.0
        %453 = vmatprep.subr.mxu0 0.0
        %454 = vmatpush2.msra.mxu0 0.0
        %455 = vmatprep.subr.mxu0 0.0
        %456 = vmatpush2.msra.mxu0 0.0
        %457 = vmatprep.subr.mxu0 0.0
        %458 = vmatpush2.msra.mxu0 0.0
        %459 = vmatprep.subr.mxu0 0.0
        %460 = vmatpush2.msra.mxu0 0.0
        %461 = vmatprep.subr.mxu0 0.0
        %462 = vmatpush2.msra.mxu0 0.0
        %463 = vmatprep.subr.mxu0 0.0
        %464 = vmatpush2.msra.mxu0 0.0
        %465 = vmatprep.subr.mxu0 0.0
        %466 = vmatpush2.msra.mxu0 0.0
        %467 = vmatprep.subr.mxu0 0.0
        %468 = vmatpush2.msra.mxu0 0.0
        %469 = vmatprep.subr.mxu0 0.0
        %470 = vmatpush2.msra.mxu0 0.0
        %471 = vmatprep.subr.mxu0 0.0
        %472 = vmatpush2.msra.mxu0 0.0
        %473 = vmatprep.subr.mxu0 0.0
        %474 = vmatpush2.msra.mxu0 0.0
        %475 = vmatprep.subr.mxu0 0.0
        %476 = vmatpush2.msra.mxu0 0.0
        %477 = vmatprep.mubr.f32.mxu0 0.0
        %478 = vmatmul.mubr.f32.gmra.mxu0 %v393
        %v479 = vpop.f32.mrf.mxu0
        %v480 = vadd.f32 0.0, %v479
        %v481 = vpop.f32.mrf.mxu0
        %482 = vmatprep.mubr.f32.mxu0 0.0
        %483 = vmatmul.mubr.f32.gmra.mxu0 %v394
        %v484 = vpop.f32.mrf.mxu0
        %v485 = vadd.f32 0.0, %v484
        %v486 = vpop.f32.mrf.mxu0
        %487 = vmatprep.mubr.f32.mxu0 0.0
        %488 = vmatmul.mubr.f32.gmra.mxu0 %v395
        %v489 = vpop.f32.mrf.mxu0
        %v490 = vadd.f32 0.0, %v489
        %v491 = vpop.f32.mrf.mxu0
        %492 = vmatprep.mubr.f32.mxu0 0.0
        %493 = vmatmul.mubr.f32.gmra.mxu0 %v396
        %v494 = vpop.f32.mrf.mxu0
        %v495 = vadd.f32 0.0, %v494
        %v496 = vpop.f32.mrf.mxu0
        %497 = vdwg.mxu0
        %v498 = vld [vmem:[#allocation14] sm:$0xff]
        %v499 = vld [vmem:[#allocation14 + $0x8] sm:$0xff]
        %v500 = vld [vmem:[#allocation14 + $0x10] sm:$0xff]
        %v501 = vld [vmem:[#allocation14 + $0x18] sm:$0xff]
        %v502 = vld [vmem:[#allocation14 + $0x20] sm:$0xff]
        %v503 = vld [vmem:[#allocation14 + $0x28] sm:$0xff]
        %v504 = vld [vmem:[#allocation14 + $0x30] sm:$0xff]
        %v505 = vld [vmem:[#allocation14 + $0x38] sm:$0xff]
        %v506 = vld [vmem:[#allocation14 + $0x40] sm:$0xff]
        %v507 = vld [vmem:[#allocation14 + $0x48] sm:$0xff]
        %v508 = vld [vmem:[#allocation14 + $0x50] sm:$0xff]
        %v509 = vld [vmem:[#allocation14 + $0x58] sm:$0xff]
        %v510 = vld [vmem:[#allocation14 + $0x60] sm:$0xff]
        %v511 = vld [vmem:[#allocation14 + $0x68] sm:$0xff]
        %v512 = vld [vmem:[#allocation14 + $0x70] sm:$0xff]
        %v513 = vld [vmem:[#allocation14 + $0x78] sm:$0xff]
        %514 = vmatprep.subr.mxu0 0.0
        %515 = vmatpush1.msra.mxu0 %v513
        %516 = vmatprep.subr.mxu0 0.0
        %517 = vmatpush1.msra.mxu0 %v512
        %518 = vmatprep.subr.mxu0 0.0
        %519 = vmatpush1.msra.mxu0 %v511
        %520 = vmatprep.subr.mxu0 0.0
        %521 = vmatpush1.msra.mxu0 %v510
        %522 = vmatprep.subr.mxu0 0.0
        %523 = vmatpush1.msra.mxu0 %v509
        %524 = vmatprep.subr.mxu0 0.0
        %525 = vmatpush1.msra.mxu0 %v508
        %526 = vmatprep.subr.mxu0 0.0
        %527 = vmatpush1.msra.mxu0 %v507
        %528 = vmatprep.subr.mxu0 0.0
        %529 = vmatpush1.msra.mxu0 %v506
        %530 = vmatprep.subr.mxu0 0.0
        %531 = vmatpush1.msra.mxu0 %v505
        %532 = vmatprep.subr.mxu0 0.0
        %533 = vmatpush1.msra.mxu0 %v504
        %534 = vmatprep.subr.mxu0 0.0
        %535 = vmatpush1.msra.mxu0 %v503
        %536 = vmatprep.subr.mxu0 0.0
        %537 = vmatpush1.msra.mxu0 %v502
        %538 = vmatprep.subr.mxu0 0.0
        %539 = vmatpush1.msra.mxu0 %v501
        %540 = vmatprep.subr.mxu0 0.0
        %541 = vmatpush1.msra.mxu0 %v500
        %542 = vmatprep.subr.mxu0 0.0
        %543 = vmatpush1.msra.mxu0 %v499
        %544 = vmatprep.subr.mxu0 0.0
        %545 = vmatpush1.msra.mxu0 %v498
        %546 = vmatprep.subr.mxu0 0.0
        %547 = vmatpush2.msra.mxu0 0.0
        %548 = vmatprep.subr.mxu0 0.0
        %549 = vmatpush2.msra.mxu0 0.0
        %550 = vmatprep.subr.mxu0 0.0
        %551 = vmatpush2.msra.mxu0 0.0
        %552 = vmatprep.subr.mxu0 0.0
        %553 = vmatpush2.msra.mxu0 0.0
        %554 = vmatprep.subr.mxu0 0.0
        %555 = vmatpush2.msra.mxu0 0.0
        %556 = vmatprep.subr.mxu0 0.0
        %557 = vmatpush2.msra.mxu0 0.0
        %558 = vmatprep.subr.mxu0 0.0
        %559 = vmatpush2.msra.mxu0 0.0
        %560 = vmatprep.subr.mxu0 0.0
        %561 = vmatpush2.msra.mxu0 0.0
        %562 = vmatprep.subr.mxu0 0.0
        %563 = vmatpush2.msra.mxu0 0.0
        %564 = vmatprep.subr.mxu0 0.0
        %565 = vmatpush2.msra.mxu0 0.0
        %566 = vmatprep.subr.mxu0 0.0
        %567 = vmatpush2.msra.mxu0 0.0
        %568 = vmatprep.subr.mxu0 0.0
        %569 = vmatpush2.msra.mxu0 0.0
        %570 = vmatprep.subr.mxu0 0.0
        %571 = vmatpush2.msra.mxu0 0.0
        %572 = vmatprep.subr.mxu0 0.0
        %573 = vmatpush2.msra.mxu0 0.0
        %574 = vmatprep.subr.mxu0 0.0
        %575 = vmatpush2.msra.mxu0 0.0
        %576 = vmatprep.subr.mxu0 0.0
        %577 = vmatpush2.msra.mxu0 0.0
        %578 = vmatprep.mubr.f32.mxu0 0.0
        %579 = vmatmul.mubr.f32.gmra.mxu0 %v393
        %v580 = vpop.f32.mrf.mxu0
        %v581 = vadd.f32 0.0, %v580
        %v582 = vpop.f32.mrf.mxu0
        %583 = vmatprep.mubr.f32.mxu0 0.0
        %584 = vmatmul.mubr.f32.gmra.mxu0 %v394
        %v585 = vpop.f32.mrf.mxu0
        %v586 = vadd.f32 0.0, %v585
        %v587 = vpop.f32.mrf.mxu0
        %588 = vmatprep.mubr.f32.mxu0 0.0
        %589 = vmatmul.mubr.f32.gmra.mxu0 %v395
        %v590 = vpop.f32.mrf.mxu0
        %v591 = vadd.f32 0.0, %v590
        %v592 = vpop.f32.mrf.mxu0
        %593 = vmatprep.mubr.f32.mxu0 0.0
        %594 = vmatmul.mubr.f32.gmra.mxu0 %v396
        %v595 = vpop.f32.mrf.mxu0
        %v596 = vadd.f32 0.0, %v595
        %v597 = vpop.f32.mrf.mxu0
        %598 = vdwg.mxu0
        %599 = vst [vmem:[#allocation4] sm:$0xff] %v581
        %600 = vst [vmem:[#allocation4 + $0x8] sm:$0xff] %v586
        %601 = vst [vmem:[#allocation4 + $0x10] sm:$0xff] %v591
        %602 = vst [vmem:[#allocation4 + $0x18] sm:$0xff] %v596
        %603 = vxpose.xlu0.b32.start [1/16] %v480, 128
        %604 = vxpose.xlu0.b32.cont [2/16] %v485, 128
        %605 = vxpose.xlu0.b32.cont [3/16] 0.0, 128
        %606 = vxpose.xlu0.b32.cont [4/16] 0.0, 128
        %607 = vxpose.xlu0.b32.cont [5/16] 0.0, 128
        %608 = vxpose.xlu0.b32.cont [6/16] 0.0, 128
        %609 = vxpose.xlu0.b32.cont [7/16] 0.0, 128
        %610 = vxpose.xlu0.b32.cont [8/16] 0.0, 128
        %611 = vxpose.xlu0.b32.cont [9/16] 0.0, 128
        %612 = vxpose.xlu0.b32.cont [10/16] 0.0, 128
        %613 = vxpose.xlu0.b32.cont [11/16] 0.0, 128
        %614 = vxpose.xlu0.b32.cont [12/16] 0.0, 128
        %615 = vxpose.xlu0.b32.cont [13/16] 0.0, 128
        %616 = vxpose.xlu0.b32.cont [14/16] 0.0, 128
        %617 = vxpose.xlu0.b32.cont [15/16] 0.0, 128
        %618 = vxpose.xlu0.b32.end [16/16] 0.0, 128
        %v619 = vpop.trf.xlu0
        %v620 = vpop.trf.xlu0
        %v621 = vpop.trf.xlu0
        %v622 = vpop.trf.xlu0
        %v623 = vpop.trf.xlu0
        %v624 = vpop.trf.xlu0
        %v625 = vpop.trf.xlu0
        %v626 = vpop.trf.xlu0
        %v627 = vpop.trf.xlu0
        %v628 = vpop.trf.xlu0
        %v629 = vpop.trf.xlu0
        %v630 = vpop.trf.xlu0
        %v631 = vpop.trf.xlu0
        %v632 = vpop.trf.xlu0
        %v633 = vpop.trf.xlu0
        %v634 = vpop.trf.xlu0
        %vm635 = vcmask 130048
        %636 = vst.msk [vmem:[#allocation3] sm:$0xff] %vm635, %v619
        %637 = vst.msk [vmem:[#allocation3 + $0x8] sm:$0xff] %vm635, %v620
        %638 = vst.msk [vmem:[#allocation3 + $0x10] sm:$0xff] %vm635, %v621
        %639 = vst.msk [vmem:[#allocation3 + $0x18] sm:$0xff] %vm635, %v622
        %640 = vst.msk [vmem:[#allocation3 + $0x20] sm:$0xff] %vm635, %v623
        %641 = vst.msk [vmem:[#allocation3 + $0x28] sm:$0xff] %vm635, %v624
        %642 = vst.msk [vmem:[#allocation3 + $0x30] sm:$0xff] %vm635, %v625
        %643 = vst.msk [vmem:[#allocation3 + $0x38] sm:$0xff] %vm635, %v626
        %644 = vst.msk [vmem:[#allocation3 + $0x40] sm:$0xff] %vm635, %v627
        %645 = vst.msk [vmem:[#allocation3 + $0x48] sm:$0xff] %vm635, %v628
        %646 = vst.msk [vmem:[#allocation3 + $0x50] sm:$0xff] %vm635, %v629
        %647 = vst.msk [vmem:[#allocation3 + $0x58] sm:$0xff] %vm635, %v630
        %648 = vst.msk [vmem:[#allocation3 + $0x60] sm:$0xff] %vm635, %v631
        %649 = vst.msk [vmem:[#allocation3 + $0x68] sm:$0xff] %vm635, %v632
        %650 = vst.msk [vmem:[#allocation3 + $0x70] sm:$0xff] %vm635, %v633
        %651 = vst.msk [vmem:[#allocation3 + $0x78] sm:$0xff] %vm635, %v634
        %652 = vxpose.xlu0.b32.start [1/16] %v490, 128
        %653 = vxpose.xlu0.b32.cont [2/16] %v495, 128
        %654 = vxpose.xlu0.b32.cont [3/16] 0.0, 128
        %655 = vxpose.xlu0.b32.cont [4/16] 0.0, 128
        %656 = vxpose.xlu0.b32.cont [5/16] 0.0, 128
        %657 = vxpose.xlu0.b32.cont [6/16] 0.0, 128
        %658 = vxpose.xlu0.b32.cont [7/16] 0.0, 128
        %659 = vxpose.xlu0.b32.cont [8/16] 0.0, 128
        %660 = vxpose.xlu0.b32.cont [9/16] 0.0, 128
        %661 = vxpose.xlu0.b32.cont [10/16] 0.0, 128
        %662 = vxpose.xlu0.b32.cont [11/16] 0.0, 128
        %663 = vxpose.xlu0.b32.cont [12/16] 0.0, 128
        %664 = vxpose.xlu0.b32.cont [13/16] 0.0, 128
        %665 = vxpose.xlu0.b32.cont [14/16] 0.0, 128
        %666 = vxpose.xlu0.b32.cont [15/16] 0.0, 128
        %667 = vxpose.xlu0.b32.end [16/16] 0.0, 128
        %v668 = vpop.trf.xlu0
        %v669 = vpop.trf.xlu0
        %v670 = vpop.trf.xlu0
        %v671 = vpop.trf.xlu0
        %v672 = vpop.trf.xlu0
        %v673 = vpop.trf.xlu0
        %v674 = vpop.trf.xlu0
        %v675 = vpop.trf.xlu0
        %v676 = vpop.trf.xlu0
        %v677 = vpop.trf.xlu0
        %v678 = vpop.trf.xlu0
        %v679 = vpop.trf.xlu0
        %v680 = vpop.trf.xlu0
        %v681 = vpop.trf.xlu0
        %v682 = vpop.trf.xlu0
        %v683 = vpop.trf.xlu0
        %s684 = scalar_lea.vmem [#allocation3], 128
        %685 = vst.msk [vmem:[%s684] sm:$0xff] %vm635, %v668
        %686 = vst.msk [vmem:[%s684 + $0x8] sm:$0xff] %vm635, %v669
        %687 = vst.msk [vmem:[%s684 + $0x10] sm:$0xff] %vm635, %v670
        %688 = vst.msk [vmem:[%s684 + $0x18] sm:$0xff] %vm635, %v671
        %689 = vst.msk [vmem:[%s684 + $0x20] sm:$0xff] %vm635, %v672
        %690 = vst.msk [vmem:[%s684 + $0x28] sm:$0xff] %vm635, %v673
        %691 = vst.msk [vmem:[%s684 + $0x30] sm:$0xff] %vm635, %v674
        %692 = vst.msk [vmem:[%s684 + $0x38] sm:$0xff] %vm635, %v675
        %693 = vst.msk [vmem:[%s684 + $0x40] sm:$0xff] %vm635, %v676
        %694 = vst.msk [vmem:[%s684 + $0x48] sm:$0xff] %vm635, %v677
        %695 = vst.msk [vmem:[%s684 + $0x50] sm:$0xff] %vm635, %v678
        %696 = vst.msk [vmem:[%s684 + $0x58] sm:$0xff] %vm635, %v679
        %697 = vst.msk [vmem:[%s684 + $0x60] sm:$0xff] %vm635, %v680
        %698 = vst.msk [vmem:[%s684 + $0x68] sm:$0xff] %vm635, %v681
        %699 = vst.msk [vmem:[%s684 + $0x70] sm:$0xff] %vm635, %v682
        %700 = vst.msk [vmem:[%s684 + $0x78] sm:$0xff] %vm635, %v683
        %v701 = vld [vmem:[%s329] sm:$0xff]
        %v702 = vld [vmem:[%s329 + $0x8] sm:$0xff]
        %v703 = vld [vmem:[%s329 + $0x10] sm:$0xff]
        %v704 = vld [vmem:[%s329 + $0x18] sm:$0xff]
        %v705 = vld [vmem:[%s329 + $0x20] sm:$0xff]
        %v706 = vld [vmem:[%s329 + $0x28] sm:$0xff]
        %v707 = vld [vmem:[%s329 + $0x30] sm:$0xff]
        %v708 = vld [vmem:[%s329 + $0x38] sm:$0xff]
        %v709 = vld [vmem:[#allocation11] sm:$0xff]
        %v710 = vld [vmem:[#allocation11 + $0x8] sm:$0xff]
        %v711 = vld [vmem:[#allocation11 + $0x10] sm:$0xff]
        %v712 = vld [vmem:[#allocation11 + $0x18] sm:$0xff]
        %v713 = vld [vmem:[#allocation11 + $0x20] sm:$0xff]
        %v714 = vld [vmem:[#allocation11 + $0x28] sm:$0xff]
        %v715 = vld [vmem:[#allocation11 + $0x30] sm:$0xff]
        %v716 = vld [vmem:[#allocation11 + $0x38] sm:$0xff]
        %v717 = vld [vmem:[#allocation11 + $0x40] sm:$0xff]
        %v718 = vld [vmem:[#allocation11 + $0x48] sm:$0xff]
        %v719 = vld [vmem:[#allocation11 + $0x50] sm:$0xff]
        %v720 = vld [vmem:[#allocation11 + $0x58] sm:$0xff]
        %v721 = vld [vmem:[#allocation11 + $0x60] sm:$0xff]
        %v722 = vld [vmem:[#allocation11 + $0x68] sm:$0xff]
        %v723 = vld [vmem:[#allocation11 + $0x70] sm:$0xff]
        %v724 = vld [vmem:[#allocation11 + $0x78] sm:$0xff]
        %725 = vmatprep.subr.mxu0 0.0
        %726 = vmatpush1.msra.mxu0 %v724
        %727 = vmatprep.subr.mxu0 0.0
        %728 = vmatpush1.msra.mxu0 %v723
        %729 = vmatprep.subr.mxu0 0.0
        %730 = vmatpush1.msra.mxu0 %v722
        %731 = vmatprep.subr.mxu0 0.0
        %732 = vmatpush1.msra.mxu0 %v721
        %733 = vmatprep.subr.mxu0 0.0
        %734 = vmatpush1.msra.mxu0 %v720
        %735 = vmatprep.subr.mxu0 0.0
        %736 = vmatpush1.msra.mxu0 %v719
        %737 = vmatprep.subr.mxu0 0.0
        %738 = vmatpush1.msra.mxu0 %v718
        %739 = vmatprep.subr.mxu0 0.0
        %740 = vmatpush1.msra.mxu0 %v717
        %741 = vmatprep.subr.mxu0 0.0
        %742 = vmatpush1.msra.mxu0 %v716
        %743 = vmatprep.subr.mxu0 0.0
        %744 = vmatpush1.msra.mxu0 %v715
        %745 = vmatprep.subr.mxu0 0.0
        %746 = vmatpush1.msra.mxu0 %v714
        %747 = vmatprep.subr.mxu0 0.0
        %748 = vmatpush1.msra.mxu0 %v713
        %749 = vmatprep.subr.mxu0 0.0
        %750 = vmatpush1.msra.mxu0 %v712
        %751 = vmatprep.subr.mxu0 0.0
        %752 = vmatpush1.msra.mxu0 %v711
        %753 = vmatprep.subr.mxu0 0.0
        %754 = vmatpush1.msra.mxu0 %v710
        %755 = vmatprep.subr.mxu0 0.0
        %756 = vmatpush1.msra.mxu0 %v709
        %757 = vmatprep.subr.mxu0 0.0
        %758 = vmatpush2.msra.mxu0 0.0
        %759 = vmatprep.subr.mxu0 0.0
        %760 = vmatpush2.msra.mxu0 0.0
        %761 = vmatprep.subr.mxu0 0.0
        %762 = vmatpush2.msra.mxu0 0.0
        %763 = vmatprep.subr.mxu0 0.0
        %764 = vmatpush2.msra.mxu0 0.0
        %765 = vmatprep.subr.mxu0 0.0
        %766 = vmatpush2.msra.mxu0 0.0
        %767 = vmatprep.subr.mxu0 0.0
        %768 = vmatpush2.msra.mxu0 0.0
        %769 = vmatprep.subr.mxu0 0.0
        %770 = vmatpush2.msra.mxu0 0.0
        %771 = vmatprep.subr.mxu0 0.0
        %772 = vmatpush2.msra.mxu0 0.0
        %773 = vmatprep.subr.mxu0 0.0
        %774 = vmatpush2.msra.mxu0 0.0
        %775 = vmatprep.subr.mxu0 0.0
        %776 = vmatpush2.msra.mxu0 0.0
        %777 = vmatprep.subr.mxu0 0.0
        %778 = vmatpush2.msra.mxu0 0.0
        %779 = vmatprep.subr.mxu0 0.0
        %780 = vmatpush2.msra.mxu0 0.0
        %781 = vmatprep.subr.mxu0 0.0
        %782 = vmatpush2.msra.mxu0 0.0
        %783 = vmatprep.subr.mxu0 0.0
        %784 = vmatpush2.msra.mxu0 0.0
        %785 = vmatprep.subr.mxu0 0.0
        %786 = vmatpush2.msra.mxu0 0.0
        %787 = vmatprep.subr.mxu0 0.0
        %788 = vmatpush2.msra.mxu0 0.0
        %789 = vmatprep.mubr.f32.mxu0 0.0
        %790 = vmatmul.mubr.f32.gmra.mxu0 %v701
        %v791 = vpop.f32.mrf.mxu0
        %v792 = vadd.f32 0.0, %v791
        %v793 = vpop.f32.mrf.mxu0
        %794 = vmatprep.mubr.f32.mxu0 0.0
        %795 = vmatmul.mubr.f32.gmra.mxu0 %v702
        %v796 = vpop.f32.mrf.mxu0
        %v797 = vadd.f32 0.0, %v796
        %v798 = vpop.f32.mrf.mxu0
        %799 = vmatprep.mubr.f32.mxu0 0.0
        %800 = vmatmul.mubr.f32.gmra.mxu0 %v703
        %v801 = vpop.f32.mrf.mxu0
        %v802 = vadd.f32 0.0, %v801
        %v803 = vpop.f32.mrf.mxu0
        %804 = vmatprep.mubr.f32.mxu0 0.0
        %805 = vmatmul.mubr.f32.gmra.mxu0 %v704
        %v806 = vpop.f32.mrf.mxu0
        %v807 = vadd.f32 0.0, %v806
        %v808 = vpop.f32.mrf.mxu0
        %809 = vmatprep.mubr.f32.mxu0 0.0
        %810 = vmatmul.mubr.f32.gmra.mxu0 %v705
        %v811 = vpop.f32.mrf.mxu0
        %v812 = vadd.f32 0.0, %v811
        %v813 = vpop.f32.mrf.mxu0
        %814 = vmatprep.mubr.f32.mxu0 0.0
        %815 = vmatmul.mubr.f32.gmra.mxu0 %v706
        %v816 = vpop.f32.mrf.mxu0
        %v817 = vadd.f32 0.0, %v816
        %v818 = vpop.f32.mrf.mxu0
        %819 = vmatprep.mubr.f32.mxu0 0.0
        %820 = vmatmul.mubr.f32.gmra.mxu0 %v707
        %v821 = vpop.f32.mrf.mxu0
        %v822 = vadd.f32 0.0, %v821
        %v823 = vpop.f32.mrf.mxu0
        %824 = vmatprep.mubr.f32.mxu0 0.0
        %825 = vmatmul.mubr.f32.gmra.mxu0 %v708
        %v826 = vpop.f32.mrf.mxu0
        %v827 = vadd.f32 0.0, %v826
        %v828 = vpop.f32.mrf.mxu0
        %829 = vdwg.mxu0
        %830 = vst [vmem:[#allocation2] sm:$0xff] %v792
        %831 = vst [vmem:[#allocation2 + $0x8] sm:$0xff] %v797
        %832 = vst [vmem:[#allocation2 + $0x10] sm:$0xff] %v802
        %833 = vst [vmem:[#allocation2 + $0x18] sm:$0xff] %v807
        %834 = vst [vmem:[#allocation2 + $0x20] sm:$0xff] %v812
        %835 = vst [vmem:[#allocation2 + $0x28] sm:$0xff] %v817
        %836 = vst [vmem:[#allocation2 + $0x30] sm:$0xff] %v822
        %837 = vst [vmem:[#allocation2 + $0x38] sm:$0xff] %v827
        %v838 = vld [vmem:[#allocation2] sm:$0xff]
        %v839 = vld [vmem:[#allocation2 + $0x8] sm:$0xff]
        %v840 = vld [vmem:[#allocation2 + $0x10] sm:$0xff]
        %v841 = vld [vmem:[#allocation2 + $0x18] sm:$0xff]
        %v842 = vld [vmem:[#allocation3] sm:$0xff]
        %v843 = vld [vmem:[#allocation3 + $0x8] sm:$0xff]
        %v844 = vld [vmem:[#allocation3 + $0x10] sm:$0xff]
        %v845 = vld [vmem:[#allocation3 + $0x18] sm:$0xff]
        %v846 = vld [vmem:[#allocation3 + $0x20] sm:$0xff]
        %v847 = vld [vmem:[#allocation3 + $0x28] sm:$0xff]
        %v848 = vld [vmem:[#allocation3 + $0x30] sm:$0xff]
        %v849 = vld [vmem:[#allocation3 + $0x38] sm:$0xff]
        %v850 = vld [vmem:[#allocation3 + $0x40] sm:$0xff]
        %v851 = vld [vmem:[#allocation3 + $0x48] sm:$0xff]
        %v852 = vld [vmem:[#allocation3 + $0x50] sm:$0xff]
        %v853 = vld [vmem:[#allocation3 + $0x58] sm:$0xff]
        %v854 = vld [vmem:[#allocation3 + $0x60] sm:$0xff]
        %v855 = vld [vmem:[#allocation3 + $0x68] sm:$0xff]
        %v856 = vld [vmem:[#allocation3 + $0x70] sm:$0xff]
        %v857 = vld [vmem:[#allocation3 + $0x78] sm:$0xff]
        %v858 = vld [vmem:[#allocation4] sm:$0xff]
        %v859 = vld [vmem:[#allocation4 + $0x8] sm:$0xff]
        %vm860 = vcmask 261120
        %v862 = vsel %vm860, %v838, 0
        %v865 = vsel %vm860, %v839, 0
        %v868 = vsel %vm860, %v840, 0
        %v871 = vsel %vm860, %v841, 0
        %873 = vmatprep.subr.mxu0 0.0
        %874 = vmatpush1.msra.mxu0 0.0
        %875 = vmatprep.subr.mxu0 0.0
        %876 = vmatpush1.msra.mxu0 0.0
        %877 = vmatprep.subr.mxu0 0.0
        %878 = vmatpush1.msra.mxu0 0.0
        %879 = vmatprep.subr.mxu0 0.0
        %880 = vmatpush1.msra.mxu0 0.0
        %881 = vmatprep.subr.mxu0 0.0
        %882 = vmatpush1.msra.mxu0 0.0
        %883 = vmatprep.subr.mxu0 0.0
        %884 = vmatpush1.msra.mxu0 0.0
        %885 = vmatprep.subr.mxu0 0.0
        %886 = vmatpush1.msra.mxu0 0.0
        %887 = vmatprep.subr.mxu0 0.0
        %888 = vmatpush1.msra.mxu0 0.0
        %889 = vmatprep.subr.mxu0 0.0
        %890 = vmatpush1.msra.mxu0 0.0
        %891 = vmatprep.subr.mxu0 0.0
        %892 = vmatpush1.msra.mxu0 0.0
        %893 = vmatprep.subr.mxu0 0.0
        %894 = vmatpush1.msra.mxu0 0.0
        %895 = vmatprep.subr.mxu0 0.0
        %896 = vmatpush1.msra.mxu0 0.0
        %897 = vmatprep.subr.mxu0 0.0
        %898 = vmatpush1.msra.mxu0 %v845
        %899 = vmatprep.subr.mxu0 0.0
        %900 = vmatpush1.msra.mxu0 %v844
        %901 = vmatprep.subr.mxu0 0.0
        %902 = vmatpush1.msra.mxu0 %v843
        %903 = vmatprep.subr.mxu0 0.0
        %904 = vmatpush1.msra.mxu0 %v842
        %905 = vmatprep.subr.mxu0 0.0
        %906 = vmatpush2.msra.mxu0 0.0
        %907 = vmatprep.subr.mxu0 0.0
        %908 = vmatpush2.msra.mxu0 0.0
        %909 = vmatprep.subr.mxu0 0.0
        %910 = vmatpush2.msra.mxu0 0.0
        %911 = vmatprep.subr.mxu0 0.0
        %912 = vmatpush2.msra.mxu0 0.0
        %913 = vmatprep.subr.mxu0 0.0
        %914 = vmatpush2.msra.mxu0 0.0
        %915 = vmatprep.subr.mxu0 0.0
        %916 = vmatpush2.msra.mxu0 0.0
        %917 = vmatprep.subr.mxu0 0.0
        %918 = vmatpush2.msra.mxu0 0.0
        %919 = vmatprep.subr.mxu0 0.0
        %920 = vmatpush2.msra.mxu0 0.0
        %921 = vmatprep.subr.mxu0 0.0
        %922 = vmatpush2.msra.mxu0 0.0
        %923 = vmatprep.subr.mxu0 0.0
        %924 = vmatpush2.msra.mxu0 0.0
        %925 = vmatprep.subr.mxu0 0.0
        %926 = vmatpush2.msra.mxu0 0.0
        %927 = vmatprep.subr.mxu0 0.0
        %928 = vmatpush2.msra.mxu0 0.0
        %929 = vmatprep.subr.mxu0 0.0
        %930 = vmatpush2.msra.mxu0 0.0
        %931 = vmatprep.subr.mxu0 0.0
        %932 = vmatpush2.msra.mxu0 0.0
        %933 = vmatprep.subr.mxu0 0.0
        %934 = vmatpush2.msra.mxu0 0.0
        %935 = vmatprep.subr.mxu0 0.0
        %936 = vmatpush2.msra.mxu0 0.0
        %937 = vmatprep.mubr.f32.mxu0 0.0
        %938 = vmatmul.mubr.f32.gmra.mxu0 %v862
        %v939 = vpop.f32.mrf.mxu0
        %v940 = vadd.f32 0.0, %v939
        %v941 = vpop.f32.mrf.mxu0
        %942 = vmatprep.mubr.f32.mxu0 0.0
        %943 = vmatmul.mubr.f32.gmra.mxu0 %v865
        %v944 = vpop.f32.mrf.mxu0
        %v945 = vadd.f32 0.0, %v944
        %v946 = vpop.f32.mrf.mxu0
        %947 = vmatprep.mubr.f32.mxu0 0.0
        %948 = vmatmul.mubr.f32.gmra.mxu0 %v868
        %v949 = vpop.f32.mrf.mxu0
        %v950 = vadd.f32 0.0, %v949
        %v951 = vpop.f32.mrf.mxu0
        %952 = vmatprep.mubr.f32.mxu0 0.0
        %953 = vmatmul.mubr.f32.gmra.mxu0 %v871
        %v954 = vpop.f32.mrf.mxu0
        %v955 = vadd.f32 0.0, %v954
        %v956 = vpop.f32.mrf.mxu0
        %957 = vdwg.mxu0
        %v958 = vsel %vm635, %v940, -inf
        %959 = vmax.xlane.f32.xlu0 %v958
        %v960 = vpop.xlane.xlu0 %959
        %v961 = vsel %vm635, %v945, -inf
        %962 = vmax.xlane.f32.xlu0 %v961
        %v963 = vpop.xlane.xlu0 %962
        %v964 = vsel %vm635, %v950, -inf
        %965 = vmax.xlane.f32.xlu0 %v964
        %v966 = vpop.xlane.xlu0 %965
        %v967 = vsel %vm635, %v955, -inf
        %968 = vmax.xlane.f32.xlu0 %v967
        %v969 = vpop.xlane.xlu0 %968
        %v970 = vsub.f32 %v940, %v960
        %v971 = vsub.f32 %v945, %v963
        %v972 = vsub.f32 %v950, %v966
        %v973 = vsub.f32 %v955, %v969
        %v974 = vmul.f32 %v970, 1.442695
        %v975 = vpow.pop %v974
        %v976 = vmul.f32 %v971, 1.442695
        %v977 = vpow.pop %v976
        %v978 = vmul.f32 %v972, 1.442695
        %v979 = vpow.pop %v978
        %v980 = vmul.f32 %v973, 1.442695
        %v981 = vpow.pop %v980
        %v982 = vsel %vm635, %v975, 0.0
        %983 = vadd.xlane.f32.xlu0 %v982
        %v984 = vpop.xlane.xlu0 %983
        %v985 = vsel %vm635, %v977, 0.0
        %986 = vadd.xlane.f32.xlu0 %v985
        %v987 = vpop.xlane.xlu0 %986
        %v988 = vsel %vm635, %v979, 0.0
        %989 = vadd.xlane.f32.xlu0 %v988
        %v990 = vpop.xlane.xlu0 %989
        %v991 = vsel %vm635, %v981, 0.0
        %992 = vadd.xlane.f32.xlu0 %v991
        %v993 = vpop.xlane.xlu0 %992
        %v994 = vrcp.pop %v984
        %v995 = vrcp.pop %v987
        %v996 = vrcp.pop %v990
        %v997 = vrcp.pop %v993
        %v998 = vmul.f32 %v975, %v994
        %v999 = vmul.f32 %v977, %v995
        %v1000 = vmul.f32 %v979, %v996
        %v1001 = vmul.f32 %v981, %v997
        %v1003 = vsel %vm635, %v998, 0
        %v1006 = vsel %vm635, %v999, 0
        %v1009 = vsel %vm635, %v1000, 0
        %v1012 = vsel %vm635, %v1001, 0
        %1014 = vmatprep.subr.mxu0 0.0
        %1015 = vmatpush1.msra.mxu0 0.0
        %1016 = vmatprep.subr.mxu0 0.0
        %1017 = vmatpush1.msra.mxu0 0.0
        %1018 = vmatprep.subr.mxu0 0.0
        %1019 = vmatpush1.msra.mxu0 0.0
        %1020 = vmatprep.subr.mxu0 0.0
        %1021 = vmatpush1.msra.mxu0 0.0
        %1022 = vmatprep.subr.mxu0 0.0
        %1023 = vmatpush1.msra.mxu0 0.0
        %1024 = vmatprep.subr.mxu0 0.0
        %1025 = vmatpush1.msra.mxu0 0.0
        %1026 = vmatprep.subr.mxu0 0.0
        %1027 = vmatpush1.msra.mxu0 0.0
        %1028 = vmatprep.subr.mxu0 0.0
        %1029 = vmatpush1.msra.mxu0 0.0
        %1030 = vmatprep.subr.mxu0 0.0
        %1031 = vmatpush1.msra.mxu0 0.0
        %1032 = vmatprep.subr.mxu0 0.0
        %1033 = vmatpush1.msra.mxu0 0.0
        %1034 = vmatprep.subr.mxu0 0.0
        %1035 = vmatpush1.msra.mxu0 0.0
        %1036 = vmatprep.subr.mxu0 0.0
        %1037 = vmatpush1.msra.mxu0 0.0
        %1038 = vmatprep.subr.mxu0 0.0
        %1039 = vmatpush1.msra.mxu0 0.0
        %1040 = vmatprep.subr.mxu0 0.0
        %1041 = vmatpush1.msra.mxu0 0.0
        %1042 = vmatprep.subr.mxu0 0.0
        %1043 = vmatpush1.msra.mxu0 %v859
        %1044 = vmatprep.subr.mxu0 0.0
        %1045 = vmatpush1.msra.mxu0 %v858
        %1046 = vmatprep.subr.mxu0 0.0
        %1047 = vmatpush2.msra.mxu0 0.0
        %1048 = vmatprep.subr.mxu0 0.0
        %1049 = vmatpush2.msra.mxu0 0.0
        %1050 = vmatprep.subr.mxu0 0.0
        %1051 = vmatpush2.msra.mxu0 0.0
        %1052 = vmatprep.subr.mxu0 0.0
        %1053 = vmatpush2.msra.mxu0 0.0
        %1054 = vmatprep.subr.mxu0 0.0
        %1055 = vmatpush2.msra.mxu0 0.0
        %1056 = vmatprep.subr.mxu0 0.0
        %1057 = vmatpush2.msra.mxu0 0.0
        %1058 = vmatprep.subr.mxu0 0.0
        %1059 = vmatpush2.msra.mxu0 0.0
        %1060 = vmatprep.subr.mxu0 0.0
        %1061 = vmatpush2.msra.mxu0 0.0
        %1062 = vmatprep.subr.mxu0 0.0
        %1063 = vmatpush2.msra.mxu0 0.0
        %1064 = vmatprep.subr.mxu0 0.0
        %1065 = vmatpush2.msra.mxu0 0.0
        %1066 = vmatprep.subr.mxu0 0.0
        %1067 = vmatpush2.msra.mxu0 0.0
        %1068 = vmatprep.subr.mxu0 0.0
        %1069 = vmatpush2.msra.mxu0 0.0
        %1070 = vmatprep.subr.mxu0 0.0
        %1071 = vmatpush2.msra.mxu0 0.0
        %1072 = vmatprep.subr.mxu0 0.0
        %1073 = vmatpush2.msra.mxu0 0.0
        %1074 = vmatprep.subr.mxu0 0.0
        %1075 = vmatpush2.msra.mxu0 0.0
        %1076 = vmatprep.subr.mxu0 0.0
        %1077 = vmatpush2.msra.mxu0 0.0
        %1078 = vmatprep.mubr.f32.mxu0 0.0
        %1079 = vmatmul.mubr.f32.gmra.mxu0 %v1003
        %v1080 = vpop.f32.mrf.mxu0
        %v1081 = vadd.f32 0.0, %v1080
        %v1082 = vpop.f32.mrf.mxu0
        %1083 = vmatprep.mubr.f32.mxu0 0.0
        %1084 = vmatmul.mubr.f32.gmra.mxu0 %v1006
        %v1085 = vpop.f32.mrf.mxu0
        %v1086 = vadd.f32 0.0, %v1085
        %v1087 = vpop.f32.mrf.mxu0
        %1088 = vmatprep.mubr.f32.mxu0 0.0
        %1089 = vmatmul.mubr.f32.gmra.mxu0 %v1009
        %v1090 = vpop.f32.mrf.mxu0
        %v1091 = vadd.f32 0.0, %v1090
        %v1092 = vpop.f32.mrf.mxu0
        %1093 = vmatprep.mubr.f32.mxu0 0.0
        %1094 = vmatmul.mubr.f32.gmra.mxu0 %v1012
        %v1095 = vpop.f32.mrf.mxu0
        %v1096 = vadd.f32 0.0, %v1095
        %v1097 = vpop.f32.mrf.mxu0
        %1098 = vdwg.mxu0
        %1099 = vst.msk [vmem:[#allocation5] sm:$0xff] %vm860, %v1081
        %1100 = vst.msk [vmem:[#allocation5 + $0x8] sm:$0xff] %vm860, %v1086
        %1101 = vst.msk [vmem:[#allocation5 + $0x10] sm:$0xff] %vm860, %v1091
        %1102 = vst.msk [vmem:[#allocation5 + $0x18] sm:$0xff] %vm860, %v1096
        %1103 = vrot.lane.b32.xlu0 %v838, 96
        %v1104 = vpop.permute.xlu0 %1103
        %1105 = vrot.lane.b32.xlu0 %v839, 96
        %v1106 = vpop.permute.xlu0 %1105
        %1107 = vrot.lane.b32.xlu0 %v840, 96
        %v1108 = vpop.permute.xlu0 %1107
        %1109 = vrot.lane.b32.xlu0 %v841, 96
        %v1110 = vpop.permute.xlu0 %1109
        %v1111 = vsel %vm860, %v1104, 0
        %v1113 = vsel %vm860, %v1106, 0
        %v1115 = vsel %vm860, %v1108, 0
        %v1117 = vsel %vm860, %v1110, 0
        %1119 = vmatprep.subr.mxu0 0.0
        %1120 = vmatpush1.msra.mxu0 0.0
        %1121 = vmatprep.subr.mxu0 0.0
        %1122 = vmatpush1.msra.mxu0 0.0
        %1123 = vmatprep.subr.mxu0 0.0
        %1124 = vmatpush1.msra.mxu0 0.0
        %1125 = vmatprep.subr.mxu0 0.0
        %1126 = vmatpush1.msra.mxu0 0.0
        %1127 = vmatprep.subr.mxu0 0.0
        %1128 = vmatpush1.msra.mxu0 0.0
        %1129 = vmatprep.subr.mxu0 0.0
        %1130 = vmatpush1.msra.mxu0 0.0
        %1131 = vmatprep.subr.mxu0 0.0
        %1132 = vmatpush1.msra.mxu0 0.0
        %1133 = vmatprep.subr.mxu0 0.0
        %1134 = vmatpush1.msra.mxu0 0.0
        %1135 = vmatprep.subr.mxu0 0.0
        %1136 = vmatpush1.msra.mxu0 0.0
        %1137 = vmatprep.subr.mxu0 0.0
        %1138 = vmatpush1.msra.mxu0 0.0
        %1139 = vmatprep.subr.mxu0 0.0
        %1140 = vmatpush1.msra.mxu0 0.0
        %1141 = vmatprep.subr.mxu0 0.0
        %1142 = vmatpush1.msra.mxu0 0.0
        %1143 = vmatprep.subr.mxu0 0.0
        %1144 = vmatpush1.msra.mxu0 %v849
        %1145 = vmatprep.subr.mxu0 0.0
        %1146 = vmatpush1.msra.mxu0 %v848
        %1147 = vmatprep.subr.mxu0 0.0
        %1148 = vmatpush1.msra.mxu0 %v847
        %1149 = vmatprep.subr.mxu0 0.0
        %1150 = vmatpush1.msra.mxu0 %v846
        %1151 = vmatprep.subr.mxu0 0.0
        %1152 = vmatpush2.msra.mxu0 0.0
        %1153 = vmatprep.subr.mxu0 0.0
        %1154 = vmatpush2.msra.mxu0 0.0
        %1155 = vmatprep.subr.mxu0 0.0
        %1156 = vmatpush2.msra.mxu0 0.0
        %1157 = vmatprep.subr.mxu0 0.0
        %1158 = vmatpush2.msra.mxu0 0.0
        %1159 = vmatprep.subr.mxu0 0.0
        %1160 = vmatpush2.msra.mxu0 0.0
        %1161 = vmatprep.subr.mxu0 0.0
        %1162 = vmatpush2.msra.mxu0 0.0
        %1163 = vmatprep.subr.mxu0 0.0
        %1164 = vmatpush2.msra.mxu0 0.0
        %1165 = vmatprep.subr.mxu0 0.0
        %1166 = vmatpush2.msra.mxu0 0.0
        %1167 = vmatprep.subr.mxu0 0.0
        %1168 = vmatpush2.msra.mxu0 0.0
        %1169 = vmatprep.subr.mxu0 0.0
        %1170 = vmatpush2.msra.mxu0 0.0
        %1171 = vmatprep.subr.mxu0 0.0
        %1172 = vmatpush2.msra.mxu0 0.0
        %1173 = vmatprep.subr.mxu0 0.0
        %1174 = vmatpush2.msra.mxu0 0.0
        %1175 = vmatprep.subr.mxu0 0.0
        %1176 = vmatpush2.msra.mxu0 0.0
        %1177 = vmatprep.subr.mxu0 0.0
        %1178 = vmatpush2.msra.mxu0 0.0
        %1179 = vmatprep.subr.mxu0 0.0
        %1180 = vmatpush2.msra.mxu0 0.0
        %1181 = vmatprep.subr.mxu0 0.0
        %1182 = vmatpush2.msra.mxu0 0.0
        %1183 = vmatprep.mubr.f32.mxu0 0.0
        %1184 = vmatmul.mubr.f32.gmra.mxu0 %v1111
        %v1185 = vpop.f32.mrf.mxu0
        %v1186 = vadd.f32 0.0, %v1185
        %v1187 = vpop.f32.mrf.mxu0
        %1188 = vmatprep.mubr.f32.mxu0 0.0
        %1189 = vmatmul.mubr.f32.gmra.mxu0 %v1113
        %v1190 = vpop.f32.mrf.mxu0
        %v1191 = vadd.f32 0.0, %v1190
        %v1192 = vpop.f32.mrf.mxu0
        %1193 = vmatprep.mubr.f32.mxu0 0.0
        %1194 = vmatmul.mubr.f32.gmra.mxu0 %v1115
        %v1195 = vpop.f32.mrf.mxu0
        %v1196 = vadd.f32 0.0, %v1195
        %v1197 = vpop.f32.mrf.mxu0
        %1198 = vmatprep.mubr.f32.mxu0 0.0
        %1199 = vmatmul.mubr.f32.gmra.mxu0 %v1117
        %v1200 = vpop.f32.mrf.mxu0
        %v1201 = vadd.f32 0.0, %v1200
        %v1202 = vpop.f32.mrf.mxu0
        %1203 = vdwg.mxu0
        %v1204 = vsel %vm635, %v1186, -inf
        %1205 = vmax.xlane.f32.xlu0 %v1204
        %v1206 = vpop.xlane.xlu0 %1205
        %v1207 = vsel %vm635, %v1191, -inf
        %1208 = vmax.xlane.f32.xlu0 %v1207
        %v1209 = vpop.xlane.xlu0 %1208
        %v1210 = vsel %vm635, %v1196, -inf
        %1211 = vmax.xlane.f32.xlu0 %v1210
        %v1212 = vpop.xlane.xlu0 %1211
        %v1213 = vsel %vm635, %v1201, -inf
        %1214 = vmax.xlane.f32.xlu0 %v1213
        %v1215 = vpop.xlane.xlu0 %1214
        %v1216 = vsub.f32 %v1186, %v1206
        %v1217 = vsub.f32 %v1191, %v1209
        %v1218 = vsub.f32 %v1196, %v1212
        %v1219 = vsub.f32 %v1201, %v1215
        %v1220 = vmul.f32 %v1216, 1.442695
        %v1221 = vpow.pop %v1220
        %v1222 = vmul.f32 %v1217, 1.442695
        %v1223 = vpow.pop %v1222
        %v1224 = vmul.f32 %v1218, 1.442695
        %v1225 = vpow.pop %v1224
        %v1226 = vmul.f32 %v1219, 1.442695
        %v1227 = vpow.pop %v1226
        %v1228 = vsel %vm635, %v1221, 0.0
        %1229 = vadd.xlane.f32.xlu0 %v1228
        %v1230 = vpop.xlane.xlu0 %1229
        %v1231 = vsel %vm635, %v1223, 0.0
        %1232 = vadd.xlane.f32.xlu0 %v1231
        %v1233 = vpop.xlane.xlu0 %1232
        %v1234 = vsel %vm635, %v1225, 0.0
        %1235 = vadd.xlane.f32.xlu0 %v1234
        %v1236 = vpop.xlane.xlu0 %1235
        %v1237 = vsel %vm635, %v1227, 0.0
        %1238 = vadd.xlane.f32.xlu0 %v1237
        %v1239 = vpop.xlane.xlu0 %1238
        %v1240 = vrcp.pop %v1230
        %v1241 = vrcp.pop %v1233
        %v1242 = vrcp.pop %v1236
        %v1243 = vrcp.pop %v1239
        %v1244 = vmul.f32 %v1221, %v1240
        %v1245 = vmul.f32 %v1223, %v1241
        %v1246 = vmul.f32 %v1225, %v1242
        %v1247 = vmul.f32 %v1227, %v1243
        %1250 = vrot.lane.b32.xlu0 %v858, 96
        %v1251 = vpop.permute.xlu0 %1250
        %1252 = vrot.lane.b32.xlu0 %v859, 96
        %v1253 = vpop.permute.xlu0 %1252
        %v1257 = vsel %vm635, %v1244, 0
        %v1260 = vsel %vm635, %v1245, 0
        %v1263 = vsel %vm635, %v1246, 0
        %v1266 = vsel %vm635, %v1247, 0
        %1268 = vmatprep.subr.mxu0 0.0
        %1269 = vmatpush1.msra.mxu0 0.0
        %1270 = vmatprep.subr.mxu0 0.0
        %1271 = vmatpush1.msra.mxu0 0.0
        %1272 = vmatprep.subr.mxu0 0.0
        %1273 = vmatpush1.msra.mxu0 0.0
        %1274 = vmatprep.subr.mxu0 0.0
        %1275 = vmatpush1.msra.mxu0 0.0
        %1276 = vmatprep.subr.mxu0 0.0
        %1277 = vmatpush1.msra.mxu0 0.0
        %1278 = vmatprep.subr.mxu0 0.0
        %1279 = vmatpush1.msra.mxu0 0.0
        %1280 = vmatprep.subr.mxu0 0.0
        %1281 = vmatpush1.msra.mxu0 0.0
        %1282 = vmatprep.subr.mxu0 0.0
        %1283 = vmatpush1.msra.mxu0 0.0
        %1284 = vmatprep.subr.mxu0 0.0
        %1285 = vmatpush1.msra.mxu0 0.0
        %1286 = vmatprep.subr.mxu0 0.0
        %1287 = vmatpush1.msra.mxu0 0.0
        %1288 = vmatprep.subr.mxu0 0.0
        %1289 = vmatpush1.msra.mxu0 0.0
        %1290 = vmatprep.subr.mxu0 0.0
        %1291 = vmatpush1.msra.mxu0 0.0
        %1292 = vmatprep.subr.mxu0 0.0
        %1293 = vmatpush1.msra.mxu0 0.0
        %1294 = vmatprep.subr.mxu0 0.0
        %1295 = vmatpush1.msra.mxu0 0.0
        %1296 = vmatprep.subr.mxu0 0.0
        %1297 = vmatpush1.msra.mxu0 %v1253
        %1298 = vmatprep.subr.mxu0 0.0
        %1299 = vmatpush1.msra.mxu0 %v1251
        %1300 = vmatprep.subr.mxu0 0.0
        %1301 = vmatpush2.msra.mxu0 0.0
        %1302 = vmatprep.subr.mxu0 0.0
        %1303 = vmatpush2.msra.mxu0 0.0
        %1304 = vmatprep.subr.mxu0 0.0
        %1305 = vmatpush2.msra.mxu0 0.0
        %1306 = vmatprep.subr.mxu0 0.0
        %1307 = vmatpush2.msra.mxu0 0.0
        %1308 = vmatprep.subr.mxu0 0.0
        %1309 = vmatpush2.msra.mxu0 0.0
        %1310 = vmatprep.subr.mxu0 0.0
        %1311 = vmatpush2.msra.mxu0 0.0
        %1312 = vmatprep.subr.mxu0 0.0
        %1313 = vmatpush2.msra.mxu0 0.0
        %1314 = vmatprep.subr.mxu0 0.0
        %1315 = vmatpush2.msra.mxu0 0.0
        %1316 = vmatprep.subr.mxu0 0.0
        %1317 = vmatpush2.msra.mxu0 0.0
        %1318 = vmatprep.subr.mxu0 0.0
        %1319 = vmatpush2.msra.mxu0 0.0
        %1320 = vmatprep.subr.mxu0 0.0
        %1321 = vmatpush2.msra.mxu0 0.0
        %1322 = vmatprep.subr.mxu0 0.0
        %1323 = vmatpush2.msra.mxu0 0.0
        %1324 = vmatprep.subr.mxu0 0.0
        %1325 = vmatpush2.msra.mxu0 0.0
        %1326 = vmatprep.subr.mxu0 0.0
        %1327 = vmatpush2.msra.mxu0 0.0
        %1328 = vmatprep.subr.mxu0 0.0
        %1329 = vmatpush2.msra.mxu0 0.0
        %1330 = vmatprep.subr.mxu0 0.0
        %1331 = vmatpush2.msra.mxu0 0.0
        %1332 = vmatprep.mubr.f32.mxu0 0.0
        %1333 = vmatmul.mubr.f32.gmra.mxu0 %v1257
        %v1334 = vpop.f32.mrf.mxu0
        %v1335 = vadd.f32 0.0, %v1334
        %v1336 = vpop.f32.mrf.mxu0
        %1337 = vmatprep.mubr.f32.mxu0 0.0
        %1338 = vmatmul.mubr.f32.gmra.mxu0 %v1260
        %v1339 = vpop.f32.mrf.mxu0
        %v1340 = vadd.f32 0.0, %v1339
        %v1341 = vpop.f32.mrf.mxu0
        %1342 = vmatprep.mubr.f32.mxu0 0.0
        %1343 = vmatmul.mubr.f32.gmra.mxu0 %v1263
        %v1344 = vpop.f32.mrf.mxu0
        %v1345 = vadd.f32 0.0, %v1344
        %v1346 = vpop.f32.mrf.mxu0
        %1347 = vmatprep.mubr.f32.mxu0 0.0
        %1348 = vmatmul.mubr.f32.gmra.mxu0 %v1266
        %v1349 = vpop.f32.mrf.mxu0
        %v1350 = vadd.f32 0.0, %v1349
        %v1351 = vpop.f32.mrf.mxu0
        %1352 = vdwg.mxu0
        %1357 = vrot.lane.b32.xlu0 %v1335, 32
        %v1358 = vpop.permute.xlu0 %1357
        %1359 = vrot.lane.b32.xlu0 %v1340, 32
        %v1360 = vpop.permute.xlu0 %1359
        %1361 = vrot.lane.b32.xlu0 %v1345, 32
        %v1362 = vpop.permute.xlu0 %1361
        %1363 = vrot.lane.b32.xlu0 %v1350, 32
        %v1364 = vpop.permute.xlu0 %1363
        %vm1369 = vcmask 523520
        %1370 = vst.msk [vmem:[#allocation5] sm:$0xff] %vm1369, %v1358
        %1371 = vst.msk [vmem:[#allocation5 + $0x8] sm:$0xff] %vm1369, %v1360
        %1372 = vst.msk [vmem:[#allocation5 + $0x10] sm:$0xff] %vm1369, %v1362
        %1373 = vst.msk [vmem:[#allocation5 + $0x18] sm:$0xff] %vm1369, %v1364
        %1374 = vrot.lane.b32.xlu0 %v838, 64
        %v1375 = vpop.permute.xlu0 %1374
        %1376 = vrot.lane.b32.xlu0 %v839, 64
        %v1377 = vpop.permute.xlu0 %1376
        %1378 = vrot.lane.b32.xlu0 %v840, 64
        %v1379 = vpop.permute.xlu0 %1378
        %1380 = vrot.lane.b32.xlu0 %v841, 64
        %v1381 = vpop.permute.xlu0 %1380
        %v1382 = vsel %vm860, %v1375, 0
        %v1384 = vsel %vm860, %v1377, 0
        %v1386 = vsel %vm860, %v1379, 0
        %v1388 = vsel %vm860, %v1381, 0
        %1390 = vmatprep.subr.mxu0 0.0
        %1391 = vmatpush1.msra.mxu0 0.0
        %1392 = vmatprep.subr.mxu0 0.0
        %1393 = vmatpush1.msra.mxu0 0.0
        %1394 = vmatprep.subr.mxu0 0.0
        %1395 = vmatpush1.msra.mxu0 0.0
        %1396 = vmatprep.subr.mxu0 0.0
        %1397 = vmatpush1.msra.mxu0 0.0
        %1398 = vmatprep.subr.mxu0 0.0
        %1399 = vmatpush1.msra.mxu0 0.0
        %1400 = vmatprep.subr.mxu0 0.0
        %1401 = vmatpush1.msra.mxu0 0.0
        %1402 = vmatprep.subr.mxu0 0.0
        %1403 = vmatpush1.msra.mxu0 0.0
        %1404 = vmatprep.subr.mxu0 0.0
        %1405 = vmatpush1.msra.mxu0 0.0
        %1406 = vmatprep.subr.mxu0 0.0
        %1407 = vmatpush1.msra.mxu0 0.0
        %1408 = vmatprep.subr.mxu0 0.0
        %1409 = vmatpush1.msra.mxu0 0.0
        %1410 = vmatprep.subr.mxu0 0.0
        %1411 = vmatpush1.msra.mxu0 0.0
        %1412 = vmatprep.subr.mxu0 0.0
        %1413 = vmatpush1.msra.mxu0 0.0
        %1414 = vmatprep.subr.mxu0 0.0
        %1415 = vmatpush1.msra.mxu0 %v853
        %1416 = vmatprep.subr.mxu0 0.0
        %1417 = vmatpush1.msra.mxu0 %v852
        %1418 = vmatprep.subr.mxu0 0.0
        %1419 = vmatpush1.msra.mxu0 %v851
        %1420 = vmatprep.subr.mxu0 0.0
        %1421 = vmatpush1.msra.mxu0 %v850
        %1422 = vmatprep.subr.mxu0 0.0
        %1423 = vmatpush2.msra.mxu0 0.0
        %1424 = vmatprep.subr.mxu0 0.0
        %1425 = vmatpush2.msra.mxu0 0.0
        %1426 = vmatprep.subr.mxu0 0.0
        %1427 = vmatpush2.msra.mxu0 0.0
        %1428 = vmatprep.subr.mxu0 0.0
        %1429 = vmatpush2.msra.mxu0 0.0
        %1430 = vmatprep.subr.mxu0 0.0
        %1431 = vmatpush2.msra.mxu0 0.0
        %1432 = vmatprep.subr.mxu0 0.0
        %1433 = vmatpush2.msra.mxu0 0.0
        %1434 = vmatprep.subr.mxu0 0.0
        %1435 = vmatpush2.msra.mxu0 0.0
        %1436 = vmatprep.subr.mxu0 0.0
        %1437 = vmatpush2.msra.mxu0 0.0
        %1438 = vmatprep.subr.mxu0 0.0
        %1439 = vmatpush2.msra.mxu0 0.0
        %1440 = vmatprep.subr.mxu0 0.0
        %1441 = vmatpush2.msra.mxu0 0.0
        %1442 = vmatprep.subr.mxu0 0.0
        %1443 = vmatpush2.msra.mxu0 0.0
        %1444 = vmatprep.subr.mxu0 0.0
        %1445 = vmatpush2.msra.mxu0 0.0
        %1446 = vmatprep.subr.mxu0 0.0
        %1447 = vmatpush2.msra.mxu0 0.0
        %1448 = vmatprep.subr.mxu0 0.0
        %1449 = vmatpush2.msra.mxu0 0.0
        %1450 = vmatprep.subr.mxu0 0.0
        %1451 = vmatpush2.msra.mxu0 0.0
        %1452 = vmatprep.subr.mxu0 0.0
        %1453 = vmatpush2.msra.mxu0 0.0
        %1454 = vmatprep.mubr.f32.mxu0 0.0
        %1455 = vmatmul.mubr.f32.gmra.mxu0 %v1382
        %v1456 = vpop.f32.mrf.mxu0
        %v1457 = vadd.f32 0.0, %v1456
        %v1458 = vpop.f32.mrf.mxu0
        %1459 = vmatprep.mubr.f32.mxu0 0.0
        %1460 = vmatmul.mubr.f32.gmra.mxu0 %v1384
        %v1461 = vpop.f32.mrf.mxu0
        %v1462 = vadd.f32 0.0, %v1461
        %v1463 = vpop.f32.mrf.mxu0
        %1464 = vmatprep.mubr.f32.mxu0 0.0
        %1465 = vmatmul.mubr.f32.gmra.mxu0 %v1386
        %v1466 = vpop.f32.mrf.mxu0
        %v1467 = vadd.f32 0.0, %v1466
        %v1468 = vpop.f32.mrf.mxu0
        %1469 = vmatprep.mubr.f32.mxu0 0.0
        %1470 = vmatmul.mubr.f32.gmra.mxu0 %v1388
        %v1471 = vpop.f32.mrf.mxu0
        %v1472 = vadd.f32 0.0, %v1471
        %v1473 = vpop.f32.mrf.mxu0
        %1474 = vdwg.mxu0
        %v1475 = vsel %vm635, %v1457, -inf
        %1476 = vmax.xlane.f32.xlu0 %v1475
        %v1477 = vpop.xlane.xlu0 %1476
        %v1478 = vsel %vm635, %v1462, -inf
        %1479 = vmax.xlane.f32.xlu0 %v1478
        %v1480 = vpop.xlane.xlu0 %1479
        %v1481 = vsel %vm635, %v1467, -inf
        %1482 = vmax.xlane.f32.xlu0 %v1481
        %v1483 = vpop.xlane.xlu0 %1482
        %v1484 = vsel %vm635, %v1472, -inf
        %1485 = vmax.xlane.f32.xlu0 %v1484
        %v1486 = vpop.xlane.xlu0 %1485
        %v1487 = vsub.f32 %v1457, %v1477
        %v1488 = vsub.f32 %v1462, %v1480
        %v1489 = vsub.f32 %v1467, %v1483
        %v1490 = vsub.f32 %v1472, %v1486
        %v1491 = vmul.f32 %v1487, 1.442695
        %v1492 = vpow.pop %v1491
        %v1493 = vmul.f32 %v1488, 1.442695
        %v1494 = vpow.pop %v1493
        %v1495 = vmul.f32 %v1489, 1.442695
        %v1496 = vpow.pop %v1495
        %v1497 = vmul.f32 %v1490, 1.442695
        %v1498 = vpow.pop %v1497
        %v1499 = vsel %vm635, %v1492, 0.0
        %1500 = vadd.xlane.f32.xlu0 %v1499
        %v1501 = vpop.xlane.xlu0 %1500
        %v1502 = vsel %vm635, %v1494, 0.0
        %1503 = vadd.xlane.f32.xlu0 %v1502
        %v1504 = vpop.xlane.xlu0 %1503
        %v1505 = vsel %vm635, %v1496, 0.0
        %1506 = vadd.xlane.f32.xlu0 %v1505
        %v1507 = vpop.xlane.xlu0 %1506
        %v1508 = vsel %vm635, %v1498, 0.0
        %1509 = vadd.xlane.f32.xlu0 %v1508
        %v1510 = vpop.xlane.xlu0 %1509
        %v1511 = vrcp.pop %v1501
        %v1512 = vrcp.pop %v1504
        %v1513 = vrcp.pop %v1507
        %v1514 = vrcp.pop %v1510
        %v1515 = vmul.f32 %v1492, %v1511
        %v1516 = vmul.f32 %v1494, %v1512
        %v1517 = vmul.f32 %v1496, %v1513
        %v1518 = vmul.f32 %v1498, %v1514
        %1519 = vrot.lane.b32.xlu0 %v858, 64
        %v1520 = vpop.permute.xlu0 %1519
        %1521 = vrot.lane.b32.xlu0 %v859, 64
        %v1522 = vpop.permute.xlu0 %1521
        %v1526 = vsel %vm635, %v1515, 0
        %v1529 = vsel %vm635, %v1516, 0
        %v1532 = vsel %vm635, %v1517, 0
        %v1535 = vsel %vm635, %v1518, 0
        %1537 = vmatprep.subr.mxu0 0.0
        %1538 = vmatpush1.msra.mxu0 0.0
        %1539 = vmatprep.subr.mxu0 0.0
        %1540 = vmatpush1.msra.mxu0 0.0
        %1541 = vmatprep.subr.mxu0 0.0
        %1542 = vmatpush1.msra.mxu0 0.0
        %1543 = vmatprep.subr.mxu0 0.0
        %1544 = vmatpush1.msra.mxu0 0.0
        %1545 = vmatprep.subr.mxu0 0.0
        %1546 = vmatpush1.msra.mxu0 0.0
        %1547 = vmatprep.subr.mxu0 0.0
        %1548 = vmatpush1.msra.mxu0 0.0
        %1549 = vmatprep.subr.mxu0 0.0
        %1550 = vmatpush1.msra.mxu0 0.0
        %1551 = vmatprep.subr.mxu0 0.0
        %1552 = vmatpush1.msra.mxu0 0.0
        %1553 = vmatprep.subr.mxu0 0.0
        %1554 = vmatpush1.msra.mxu0 0.0
        %1555 = vmatprep.subr.mxu0 0.0
        %1556 = vmatpush1.msra.mxu0 0.0
        %1557 = vmatprep.subr.mxu0 0.0
        %1558 = vmatpush1.msra.mxu0 0.0
        %1559 = vmatprep.subr.mxu0 0.0
        %1560 = vmatpush1.msra.mxu0 0.0
        %1561 = vmatprep.subr.mxu0 0.0
        %1562 = vmatpush1.msra.mxu0 0.0
        %1563 = vmatprep.subr.mxu0 0.0
        %1564 = vmatpush1.msra.mxu0 0.0
        %1565 = vmatprep.subr.mxu0 0.0
        %1566 = vmatpush1.msra.mxu0 %v1522
        %1567 = vmatprep.subr.mxu0 0.0
        %1568 = vmatpush1.msra.mxu0 %v1520
        %1569 = vmatprep.subr.mxu0 0.0
        %1570 = vmatpush2.msra.mxu0 0.0
        %1571 = vmatprep.subr.mxu0 0.0
        %1572 = vmatpush2.msra.mxu0 0.0
        %1573 = vmatprep.subr.mxu0 0.0
        %1574 = vmatpush2.msra.mxu0 0.0
        %1575 = vmatprep.subr.mxu0 0.0
        %1576 = vmatpush2.msra.mxu0 0.0
        %1577 = vmatprep.subr.mxu0 0.0
        %1578 = vmatpush2.msra.mxu0 0.0
        %1579 = vmatprep.subr.mxu0 0.0
        %1580 = vmatpush2.msra.mxu0 0.0
        %1581 = vmatprep.subr.mxu0 0.0
        %1582 = vmatpush2.msra.mxu0 0.0
        %1583 = vmatprep.subr.mxu0 0.0
        %1584 = vmatpush2.msra.mxu0 0.0
        %1585 = vmatprep.subr.mxu0 0.0
        %1586 = vmatpush2.msra.mxu0 0.0
        %1587 = vmatprep.subr.mxu0 0.0
        %1588 = vmatpush2.msra.mxu0 0.0
        %1589 = vmatprep.subr.mxu0 0.0
        %1590 = vmatpush2.msra.mxu0 0.0
        %1591 = vmatprep.subr.mxu0 0.0
        %1592 = vmatpush2.msra.mxu0 0.0
        %1593 = vmatprep.subr.mxu0 0.0
        %1594 = vmatpush2.msra.mxu0 0.0
        %1595 = vmatprep.subr.mxu0 0.0
        %1596 = vmatpush2.msra.mxu0 0.0
        %1597 = vmatprep.subr.mxu0 0.0
        %1598 = vmatpush2.msra.mxu0 0.0
        %1599 = vmatprep.subr.mxu0 0.0
        %1600 = vmatpush2.msra.mxu0 0.0
        %1601 = vmatprep.mubr.f32.mxu0 0.0
        %1602 = vmatmul.mubr.f32.gmra.mxu0 %v1526
        %v1603 = vpop.f32.mrf.mxu0
        %v1604 = vadd.f32 0.0, %v1603
        %v1605 = vpop.f32.mrf.mxu0
        %1606 = vmatprep.mubr.f32.mxu0 0.0
        %1607 = vmatmul.mubr.f32.gmra.mxu0 %v1529
        %v1608 = vpop.f32.mrf.mxu0
        %v1609 = vadd.f32 0.0, %v1608
        %v1610 = vpop.f32.mrf.mxu0
        %1611 = vmatprep.mubr.f32.mxu0 0.0
        %1612 = vmatmul.mubr.f32.gmra.mxu0 %v1532
        %v1613 = vpop.f32.mrf.mxu0
        %v1614 = vadd.f32 0.0, %v1613
        %v1615 = vpop.f32.mrf.mxu0
        %1616 = vmatprep.mubr.f32.mxu0 0.0
        %1617 = vmatmul.mubr.f32.gmra.mxu0 %v1535
        %v1618 = vpop.f32.mrf.mxu0
        %v1619 = vadd.f32 0.0, %v1618
        %v1620 = vpop.f32.mrf.mxu0
        %1621 = vdwg.mxu0
        %1626 = vrot.lane.b32.xlu0 %v1604, 64
        %v1627 = vpop.permute.xlu0 %1626
        %1628 = vrot.lane.b32.xlu0 %v1609, 64
        %v1629 = vpop.permute.xlu0 %1628
        %1630 = vrot.lane.b32.xlu0 %v1614, 64
        %v1631 = vpop.permute.xlu0 %1630
        %1632 = vrot.lane.b32.xlu0 %v1619, 64
        %v1633 = vpop.permute.xlu0 %1632
        %vm1638 = vcmask 785920
        %1639 = vst.msk [vmem:[#allocation5] sm:$0xff] %vm1638, %v1627
        %1640 = vst.msk [vmem:[#allocation5 + $0x8] sm:$0xff] %vm1638, %v1629
        %1641 = vst.msk [vmem:[#allocation5 + $0x10] sm:$0xff] %vm1638, %v1631
        %1642 = vst.msk [vmem:[#allocation5 + $0x18] sm:$0xff] %vm1638, %v1633
        %1643 = vrot.lane.b32.xlu0 %v838, 32
        %v1644 = vpop.permute.xlu0 %1643
        %1645 = vrot.lane.b32.xlu0 %v839, 32
        %v1646 = vpop.permute.xlu0 %1645
        %1647 = vrot.lane.b32.xlu0 %v840, 32
        %v1648 = vpop.permute.xlu0 %1647
        %1649 = vrot.lane.b32.xlu0 %v841, 32
        %v1650 = vpop.permute.xlu0 %1649
        %v1651 = vsel %vm860, %v1644, 0
        %v1653 = vsel %vm860, %v1646, 0
        %v1655 = vsel %vm860, %v1648, 0
        %v1657 = vsel %vm860, %v1650, 0
        %1659 = vmatprep.subr.mxu0 0.0
        %1660 = vmatpush1.msra.mxu0 0.0
        %1661 = vmatprep.subr.mxu0 0.0
        %1662 = vmatpush1.msra.mxu0 0.0
        %1663 = vmatprep.subr.mxu0 0.0
        %1664 = vmatpush1.msra.mxu0 0.0
        %1665 = vmatprep.subr.mxu0 0.0
        %1666 = vmatpush1.msra.mxu0 0.0
        %1667 = vmatprep.subr.mxu0 0.0
        %1668 = vmatpush1.msra.mxu0 0.0
        %1669 = vmatprep.subr.mxu0 0.0
        %1670 = vmatpush1.msra.mxu0 0.0
        %1671 = vmatprep.subr.mxu0 0.0
        %1672 = vmatpush1.msra.mxu0 0.0
        %1673 = vmatprep.subr.mxu0 0.0
        %1674 = vmatpush1.msra.mxu0 0.0
        %1675 = vmatprep.subr.mxu0 0.0
        %1676 = vmatpush1.msra.mxu0 0.0
        %1677 = vmatprep.subr.mxu0 0.0
        %1678 = vmatpush1.msra.mxu0 0.0
        %1679 = vmatprep.subr.mxu0 0.0
        %1680 = vmatpush1.msra.mxu0 0.0
        %1681 = vmatprep.subr.mxu0 0.0
        %1682 = vmatpush1.msra.mxu0 0.0
        %1683 = vmatprep.subr.mxu0 0.0
        %1684 = vmatpush1.msra.mxu0 %v857
        %1685 = vmatprep.subr.mxu0 0.0
        %1686 = vmatpush1.msra.mxu0 %v856
        %1687 = vmatprep.subr.mxu0 0.0
        %1688 = vmatpush1.msra.mxu0 %v855
        %1689 = vmatprep.subr.mxu0 0.0
        %1690 = vmatpush1.msra.mxu0 %v854
        %1691 = vmatprep.subr.mxu0 0.0
        %1692 = vmatpush2.msra.mxu0 0.0
        %1693 = vmatprep.subr.mxu0 0.0
        %1694 = vmatpush2.msra.mxu0 0.0
        %1695 = vmatprep.subr.mxu0 0.0
        %1696 = vmatpush2.msra.mxu0 0.0
        %1697 = vmatprep.subr.mxu0 0.0
        %1698 = vmatpush2.msra.mxu0 0.0
        %1699 = vmatprep.subr.mxu0 0.0
        %1700 = vmatpush2.msra.mxu0 0.0
        %1701 = vmatprep.subr.mxu0 0.0
        %1702 = vmatpush2.msra.mxu0 0.0
        %1703 = vmatprep.subr.mxu0 0.0
        %1704 = vmatpush2.msra.mxu0 0.0
        %1705 = vmatprep.subr.mxu0 0.0
        %1706 = vmatpush2.msra.mxu0 0.0
        %1707 = vmatprep.subr.mxu0 0.0
        %1708 = vmatpush2.msra.mxu0 0.0
        %1709 = vmatprep.subr.mxu0 0.0
        %1710 = vmatpush2.msra.mxu0 0.0
        %1711 = vmatprep.subr.mxu0 0.0
        %1712 = vmatpush2.msra.mxu0 0.0
        %1713 = vmatprep.subr.mxu0 0.0
        %1714 = vmatpush2.msra.mxu0 0.0
        %1715 = vmatprep.subr.mxu0 0.0
        %1716 = vmatpush2.msra.mxu0 0.0
        %1717 = vmatprep.subr.mxu0 0.0
        %1718 = vmatpush2.msra.mxu0 0.0
        %1719 = vmatprep.subr.mxu0 0.0
        %1720 = vmatpush2.msra.mxu0 0.0
        %1721 = vmatprep.subr.mxu0 0.0
        %1722 = vmatpush2.msra.mxu0 0.0
        %1723 = vmatprep.mubr.f32.mxu0 0.0
        %1724 = vmatmul.mubr.f32.gmra.mxu0 %v1651
        %v1725 = vpop.f32.mrf.mxu0
        %v1726 = vadd.f32 0.0, %v1725
        %v1727 = vpop.f32.mrf.mxu0
        %1728 = vmatprep.mubr.f32.mxu0 0.0
        %1729 = vmatmul.mubr.f32.gmra.mxu0 %v1653
        %v1730 = vpop.f32.mrf.mxu0
        %v1731 = vadd.f32 0.0, %v1730
        %v1732 = vpop.f32.mrf.mxu0
        %1733 = vmatprep.mubr.f32.mxu0 0.0
        %1734 = vmatmul.mubr.f32.gmra.mxu0 %v1655
        %v1735 = vpop.f32.mrf.mxu0
        %v1736 = vadd.f32 0.0, %v1735
        %v1737 = vpop.f32.mrf.mxu0
        %1738 = vmatprep.mubr.f32.mxu0 0.0
        %1739 = vmatmul.mubr.f32.gmra.mxu0 %v1657
        %v1740 = vpop.f32.mrf.mxu0
        %v1741 = vadd.f32 0.0, %v1740
        %v1742 = vpop.f32.mrf.mxu0
        %1743 = vdwg.mxu0
        %v1744 = vsel %vm635, %v1726, -inf
        %1745 = vmax.xlane.f32.xlu0 %v1744
        %v1746 = vpop.xlane.xlu0 %1745
        %v1747 = vsel %vm635, %v1731, -inf
        %1748 = vmax.xlane.f32.xlu0 %v1747
        %v1749 = vpop.xlane.xlu0 %1748
        %v1750 = vsel %vm635, %v1736, -inf
        %1751 = vmax.xlane.f32.xlu0 %v1750
        %v1752 = vpop.xlane.xlu0 %1751
        %v1753 = vsel %vm635, %v1741, -inf
        %1754 = vmax.xlane.f32.xlu0 %v1753
        %v1755 = vpop.xlane.xlu0 %1754
        %v1756 = vsub.f32 %v1726, %v1746
        %v1757 = vsub.f32 %v1731, %v1749
        %v1758 = vsub.f32 %v1736, %v1752
        %v1759 = vsub.f32 %v1741, %v1755
        %v1760 = vmul.f32 %v1756, 1.442695
        %v1761 = vpow.pop %v1760
        %v1762 = vmul.f32 %v1757, 1.442695
        %v1763 = vpow.pop %v1762
        %v1764 = vmul.f32 %v1758, 1.442695
        %v1765 = vpow.pop %v1764
        %v1766 = vmul.f32 %v1759, 1.442695
        %v1767 = vpow.pop %v1766
        %v1768 = vsel %vm635, %v1761, 0.0
        %1769 = vadd.xlane.f32.xlu0 %v1768
        %v1770 = vpop.xlane.xlu0 %1769
        %v1771 = vsel %vm635, %v1763, 0.0
        %1772 = vadd.xlane.f32.xlu0 %v1771
        %v1773 = vpop.xlane.xlu0 %1772
        %v1774 = vsel %vm635, %v1765, 0.0
        %1775 = vadd.xlane.f32.xlu0 %v1774
        %v1776 = vpop.xlane.xlu0 %1775
        %v1777 = vsel %vm635, %v1767, 0.0
        %1778 = vadd.xlane.f32.xlu0 %v1777
        %v1779 = vpop.xlane.xlu0 %1778
        %v1780 = vrcp.pop %v1770
        %v1781 = vrcp.pop %v1773
        %v1782 = vrcp.pop %v1776
        %v1783 = vrcp.pop %v1779
        %v1784 = vmul.f32 %v1761, %v1780
        %v1785 = vmul.f32 %v1763, %v1781
        %v1786 = vmul.f32 %v1765, %v1782
        %v1787 = vmul.f32 %v1767, %v1783
        %1788 = vrot.lane.b32.xlu0 %v858, 32
        %v1789 = vpop.permute.xlu0 %1788
        %1790 = vrot.lane.b32.xlu0 %v859, 32
        %v1791 = vpop.permute.xlu0 %1790
        %v1795 = vsel %vm635, %v1784, 0
        %v1798 = vsel %vm635, %v1785, 0
        %v1801 = vsel %vm635, %v1786, 0
        %v1804 = vsel %vm635, %v1787, 0
        %1806 = vmatprep.subr.mxu0 0.0
        %1807 = vmatpush1.msra.mxu0 0.0
        %1808 = vmatprep.subr.mxu0 0.0
        %1809 = vmatpush1.msra.mxu0 0.0
        %1810 = vmatprep.subr.mxu0 0.0
        %1811 = vmatpush1.msra.mxu0 0.0
        %1812 = vmatprep.subr.mxu0 0.0
        %1813 = vmatpush1.msra.mxu0 0.0
        %1814 = vmatprep.subr.mxu0 0.0
        %1815 = vmatpush1.msra.mxu0 0.0
        %1816 = vmatprep.subr.mxu0 0.0
        %1817 = vmatpush1.msra.mxu0 0.0
        %1818 = vmatprep.subr.mxu0 0.0
        %1819 = vmatpush1.msra.mxu0 0.0
        %1820 = vmatprep.subr.mxu0 0.0
        %1821 = vmatpush1.msra.mxu0 0.0
        %1822 = vmatprep.subr.mxu0 0.0
        %1823 = vmatpush1.msra.mxu0 0.0
        %1824 = vmatprep.subr.mxu0 0.0
        %1825 = vmatpush1.msra.mxu0 0.0
        %1826 = vmatprep.subr.mxu0 0.0
        %1827 = vmatpush1.msra.mxu0 0.0
        %1828 = vmatprep.subr.mxu0 0.0
        %1829 = vmatpush1.msra.mxu0 0.0
        %1830 = vmatprep.subr.mxu0 0.0
        %1831 = vmatpush1.msra.mxu0 0.0
        %1832 = vmatprep.subr.mxu0 0.0
        %1833 = vmatpush1.msra.mxu0 0.0
        %1834 = vmatprep.subr.mxu0 0.0
        %1835 = vmatpush1.msra.mxu0 %v1791
        %1836 = vmatprep.subr.mxu0 0.0
        %1837 = vmatpush1.msra.mxu0 %v1789
        %1838 = vmatprep.subr.mxu0 0.0
        %1839 = vmatpush2.msra.mxu0 0.0
        %1840 = vmatprep.subr.mxu0 0.0
        %1841 = vmatpush2.msra.mxu0 0.0
        %1842 = vmatprep.subr.mxu0 0.0
        %1843 = vmatpush2.msra.mxu0 0.0
        %1844 = vmatprep.subr.mxu0 0.0
        %1845 = vmatpush2.msra.mxu0 0.0
        %1846 = vmatprep.subr.mxu0 0.0
        %1847 = vmatpush2.msra.mxu0 0.0
        %1848 = vmatprep.subr.mxu0 0.0
        %1849 = vmatpush2.msra.mxu0 0.0
        %1850 = vmatprep.subr.mxu0 0.0
        %1851 = vmatpush2.msra.mxu0 0.0
        %1852 = vmatprep.subr.mxu0 0.0
        %1853 = vmatpush2.msra.mxu0 0.0
        %1854 = vmatprep.subr.mxu0 0.0
        %1855 = vmatpush2.msra.mxu0 0.0
        %1856 = vmatprep.subr.mxu0 0.0
        %1857 = vmatpush2.msra.mxu0 0.0
        %1858 = vmatprep.subr.mxu0 0.0
        %1859 = vmatpush2.msra.mxu0 0.0
        %1860 = vmatprep.subr.mxu0 0.0
        %1861 = vmatpush2.msra.mxu0 0.0
        %1862 = vmatprep.subr.mxu0 0.0
        %1863 = vmatpush2.msra.mxu0 0.0
        %1864 = vmatprep.subr.mxu0 0.0
        %1865 = vmatpush2.msra.mxu0 0.0
        %1866 = vmatprep.subr.mxu0 0.0
        %1867 = vmatpush2.msra.mxu0 0.0
        %1868 = vmatprep.subr.mxu0 0.0
        %1869 = vmatpush2.msra.mxu0 0.0
        %1870 = vmatprep.mubr.f32.mxu0 0.0
        %1871 = vmatmul.mubr.f32.gmra.mxu0 %v1795
        %v1872 = vpop.f32.mrf.mxu0
        %v1873 = vadd.f32 0.0, %v1872
        %v1874 = vpop.f32.mrf.mxu0
        %1875 = vmatprep.mubr.f32.mxu0 0.0
        %1876 = vmatmul.mubr.f32.gmra.mxu0 %v1798
        %v1877 = vpop.f32.mrf.mxu0
        %v1878 = vadd.f32 0.0, %v1877
        %v1879 = vpop.f32.mrf.mxu0
        %1880 = vmatprep.mubr.f32.mxu0 0.0
        %1881 = vmatmul.mubr.f32.gmra.mxu0 %v1801
        %v1882 = vpop.f32.mrf.mxu0
        %v1883 = vadd.f32 0.0, %v1882
        %v1884 = vpop.f32.mrf.mxu0
        %1885 = vmatprep.mubr.f32.mxu0 0.0
        %1886 = vmatmul.mubr.f32.gmra.mxu0 %v1804
        %v1887 = vpop.f32.mrf.mxu0
        %v1888 = vadd.f32 0.0, %v1887
        %v1889 = vpop.f32.mrf.mxu0
        %1890 = vdwg.mxu0
        %1895 = vrot.lane.b32.xlu0 %v1873, 96
        %v1896 = vpop.permute.xlu0 %1895
        %1897 = vrot.lane.b32.xlu0 %v1878, 96
        %v1898 = vpop.permute.xlu0 %1897
        %1899 = vrot.lane.b32.xlu0 %v1883, 96
        %v1900 = vpop.permute.xlu0 %1899
        %1901 = vrot.lane.b32.xlu0 %v1888, 96
        %v1902 = vpop.permute.xlu0 %1901
        %vm1907 = vcmask 1048320
        %1908 = vst.msk [vmem:[#allocation5] sm:$0xff] %vm1907, %v1896
        %1909 = vst.msk [vmem:[#allocation5 + $0x8] sm:$0xff] %vm1907, %v1898
        %1910 = vst.msk [vmem:[#allocation5 + $0x10] sm:$0xff] %vm1907, %v1900
        %1911 = vst.msk [vmem:[#allocation5 + $0x18] sm:$0xff] %vm1907, %v1902
        %s1912 = scalar_lea.vmem [#allocation2], 32
        %v1913 = vld [vmem:[%s1912] sm:$0xff]
        %v1914 = vld [vmem:[%s1912 + $0x8] sm:$0xff]
        %v1915 = vld [vmem:[%s1912 + $0x10] sm:$0xff]
        %v1916 = vld [vmem:[%s1912 + $0x18] sm:$0xff]
        %v1917 = vld [vmem:[%s684] sm:$0xff]
        %v1918 = vld [vmem:[%s684 + $0x8] sm:$0xff]
        %v1919 = vld [vmem:[%s684 + $0x10] sm:$0xff]
        %v1920 = vld [vmem:[%s684 + $0x18] sm:$0xff]
        %v1921 = vld [vmem:[%s684 + $0x20] sm:$0xff]
        %v1922 = vld [vmem:[%s684 + $0x28] sm:$0xff]
        %v1923 = vld [vmem:[%s684 + $0x30] sm:$0xff]
        %v1924 = vld [vmem:[%s684 + $0x38] sm:$0xff]
        %v1925 = vld [vmem:[%s684 + $0x40] sm:$0xff]
        %v1926 = vld [vmem:[%s684 + $0x48] sm:$0xff]
        %v1927 = vld [vmem:[%s684 + $0x50] sm:$0xff]
        %v1928 = vld [vmem:[%s684 + $0x58] sm:$0xff]
        %v1929 = vld [vmem:[%s684 + $0x60] sm:$0xff]
        %v1930 = vld [vmem:[%s684 + $0x68] sm:$0xff]
        %v1931 = vld [vmem:[%s684 + $0x70] sm:$0xff]
        %v1932 = vld [vmem:[%s684 + $0x78] sm:$0xff]
        %s1933 = scalar_lea.vmem [#allocation4], 16
        %v1934 = vld [vmem:[%s1933] sm:$0xff]
        %v1935 = vld [vmem:[%s1933 + $0x8] sm:$0xff]
        %v1937 = vsel %vm860, %v1913, 0
        %v1940 = vsel %vm860, %v1914, 0
        %v1943 = vsel %vm860, %v1915, 0
        %v1946 = vsel %vm860, %v1916, 0
        %1948 = vmatprep.subr.mxu0 0.0
        %1949 = vmatpush1.msra.mxu0 0.0
        %1950 = vmatprep.subr.mxu0 0.0
        %1951 = vmatpush1.msra.mxu0 0.0
        %1952 = vmatprep.subr.mxu0 0.0
        %1953 = vmatpush1.msra.mxu0 0.0
        %1954 = vmatprep.subr.mxu0 0.0
        %1955 = vmatpush1.msra.mxu0 0.0
        %1956 = vmatprep.subr.mxu0 0.0
        %1957 = vmatpush1.msra.mxu0 0.0
        %1958 = vmatprep.subr.mxu0 0.0
        %1959 = vmatpush1.msra.mxu0 0.0
        %1960 = vmatprep.subr.mxu0 0.0
        %1961 = vmatpush1.msra.mxu0 0.0
        %1962 = vmatprep.subr.mxu0 0.0
        %1963 = vmatpush1.msra.mxu0 0.0
        %1964 = vmatprep.subr.mxu0 0.0
        %1965 = vmatpush1.msra.mxu0 0.0
        %1966 = vmatprep.subr.mxu0 0.0
        %1967 = vmatpush1.msra.mxu0 0.0
        %1968 = vmatprep.subr.mxu0 0.0
        %1969 = vmatpush1.msra.mxu0 0.0
        %1970 = vmatprep.subr.mxu0 0.0
        %1971 = vmatpush1.msra.mxu0 0.0
        %1972 = vmatprep.subr.mxu0 0.0
        %1973 = vmatpush1.msra.mxu0 %v1920
        %1974 = vmatprep.subr.mxu0 0.0
        %1975 = vmatpush1.msra.mxu0 %v1919
        %1976 = vmatprep.subr.mxu0 0.0
        %1977 = vmatpush1.msra.mxu0 %v1918
        %1978 = vmatprep.subr.mxu0 0.0
        %1979 = vmatpush1.msra.mxu0 %v1917
        %1980 = vmatprep.subr.mxu0 0.0
        %1981 = vmatpush2.msra.mxu0 0.0
        %1982 = vmatprep.subr.mxu0 0.0
        %1983 = vmatpush2.msra.mxu0 0.0
        %1984 = vmatprep.subr.mxu0 0.0
        %1985 = vmatpush2.msra.mxu0 0.0
        %1986 = vmatprep.subr.mxu0 0.0
        %1987 = vmatpush2.msra.mxu0 0.0
        %1988 = vmatprep.subr.mxu0 0.0
        %1989 = vmatpush2.msra.mxu0 0.0
        %1990 = vmatprep.subr.mxu0 0.0
        %1991 = vmatpush2.msra.mxu0 0.0
        %1992 = vmatprep.subr.mxu0 0.0
        %1993 = vmatpush2.msra.mxu0 0.0
        %1994 = vmatprep.subr.mxu0 0.0
        %1995 = vmatpush2.msra.mxu0 0.0
        %1996 = vmatprep.subr.mxu0 0.0
        %1997 = vmatpush2.msra.mxu0 0.0
        %1998 = vmatprep.subr.mxu0 0.0
        %1999 = vmatpush2.msra.mxu0 0.0
        %2000 = vmatprep.subr.mxu0 0.0
        %2001 = vmatpush2.msra.mxu0 0.0
        %2002 = vmatprep.subr.mxu0 0.0
        %2003 = vmatpush2.msra.mxu0 0.0
        %2004 = vmatprep.subr.mxu0 0.0
        %2005 = vmatpush2.msra.mxu0 0.0
        %2006 = vmatprep.subr.mxu0 0.0
        %2007 = vmatpush2.msra.mxu0 0.0
        %2008 = vmatprep.subr.mxu0 0.0
        %2009 = vmatpush2.msra.mxu0 0.0
        %2010 = vmatprep.subr.mxu0 0.0
        %2011 = vmatpush2.msra.mxu0 0.0
        %2012 = vmatprep.mubr.f32.mxu0 0.0
        %2013 = vmatmul.mubr.f32.gmra.mxu0 %v1937
        %v2014 = vpop.f32.mrf.mxu0
        %v2015 = vadd.f32 0.0, %v2014
        %v2016 = vpop.f32.mrf.mxu0
        %2017 = vmatprep.mubr.f32.mxu0 0.0
        %2018 = vmatmul.mubr.f32.gmra.mxu0 %v1940
        %v2019 = vpop.f32.mrf.mxu0
        %v2020 = vadd.f32 0.0, %v2019
        %v2021 = vpop.f32.mrf.mxu0
        %2022 = vmatprep.mubr.f32.mxu0 0.0
        %2023 = vmatmul.mubr.f32.gmra.mxu0 %v1943
        %v2024 = vpop.f32.mrf.mxu0
        %v2025 = vadd.f32 0.0, %v2024
        %v2026 = vpop.f32.mrf.mxu0
        %2027 = vmatprep.mubr.f32.mxu0 0.0
        %2028 = vmatmul.mubr.f32.gmra.mxu0 %v1946
        %v2029 = vpop.f32.mrf.mxu0
        %v2030 = vadd.f32 0.0, %v2029
        %v2031 = vpop.f32.mrf.mxu0
        %2032 = vdwg.mxu0
        %v2033 = vsel %vm635, %v2015, -inf
        %2034 = vmax.xlane.f32.xlu0 %v2033
        %v2035 = vpop.xlane.xlu0 %2034
        %v2036 = vsel %vm635, %v2020, -inf
        %2037 = vmax.xlane.f32.xlu0 %v2036
        %v2038 = vpop.xlane.xlu0 %2037
        %v2039 = vsel %vm635, %v2025, -inf
        %2040 = vmax.xlane.f32.xlu0 %v2039
        %v2041 = vpop.xlane.xlu0 %2040
        %v2042 = vsel %vm635, %v2030, -inf
        %2043 = vmax.xlane.f32.xlu0 %v2042
        %v2044 = vpop.xlane.xlu0 %2043
        %v2045 = vsub.f32 %v2015, %v2035
        %v2046 = vsub.f32 %v2020, %v2038
        %v2047 = vsub.f32 %v2025, %v2041
        %v2048 = vsub.f32 %v2030, %v2044
        %v2049 = vmul.f32 %v2045, 1.442695
        %v2050 = vpow.pop %v2049
        %v2051 = vmul.f32 %v2046, 1.442695
        %v2052 = vpow.pop %v2051
        %v2053 = vmul.f32 %v2047, 1.442695
        %v2054 = vpow.pop %v2053
        %v2055 = vmul.f32 %v2048, 1.442695
        %v2056 = vpow.pop %v2055
        %v2057 = vsel %vm635, %v2050, 0.0
        %2058 = vadd.xlane.f32.xlu0 %v2057
        %v2059 = vpop.xlane.xlu0 %2058
        %v2060 = vsel %vm635, %v2052, 0.0
        %2061 = vadd.xlane.f32.xlu0 %v2060
        %v2062 = vpop.xlane.xlu0 %2061
        %v2063 = vsel %vm635, %v2054, 0.0
        %2064 = vadd.xlane.f32.xlu0 %v2063
        %v2065 = vpop.xlane.xlu0 %2064
        %v2066 = vsel %vm635, %v2056, 0.0
        %2067 = vadd.xlane.f32.xlu0 %v2066
        %v2068 = vpop.xlane.xlu0 %2067
        %v2069 = vrcp.pop %v2059
        %v2070 = vrcp.pop %v2062
        %v2071 = vrcp.pop %v2065
        %v2072 = vrcp.pop %v2068
        %v2073 = vmul.f32 %v2050, %v2069
        %v2074 = vmul.f32 %v2052, %v2070
        %v2075 = vmul.f32 %v2054, %v2071
        %v2076 = vmul.f32 %v2056, %v2072
        %v2078 = vsel %vm635, %v2073, 0
        %v2081 = vsel %vm635, %v2074, 0
        %v2084 = vsel %vm635, %v2075, 0
        %v2087 = vsel %vm635, %v2076, 0
        %2089 = vmatprep.subr.mxu0 0.0
        %2090 = vmatpush1.msra.mxu0 0.0
        %2091 = vmatprep.subr.mxu0 0.0
        %2092 = vmatpush1.msra.mxu0 0.0
        %2093 = vmatprep.subr.mxu0 0.0
        %2094 = vmatpush1.msra.mxu0 0.0
        %2095 = vmatprep.subr.mxu0 0.0
        %2096 = vmatpush1.msra.mxu0 0.0
        %2097 = vmatprep.subr.mxu0 0.0
        %2098 = vmatpush1.msra.mxu0 0.0
        %2099 = vmatprep.subr.mxu0 0.0
        %2100 = vmatpush1.msra.mxu0 0.0
        %2101 = vmatprep.subr.mxu0 0.0
        %2102 = vmatpush1.msra.mxu0 0.0
        %2103 = vmatprep.subr.mxu0 0.0
        %2104 = vmatpush1.msra.mxu0 0.0
        %2105 = vmatprep.subr.mxu0 0.0
        %2106 = vmatpush1.msra.mxu0 0.0
        %2107 = vmatprep.subr.mxu0 0.0
        %2108 = vmatpush1.msra.mxu0 0.0
        %2109 = vmatprep.subr.mxu0 0.0
        %2110 = vmatpush1.msra.mxu0 0.0
        %2111 = vmatprep.subr.mxu0 0.0
        %2112 = vmatpush1.msra.mxu0 0.0
        %2113 = vmatprep.subr.mxu0 0.0
        %2114 = vmatpush1.msra.mxu0 0.0
        %2115 = vmatprep.subr.mxu0 0.0
        %2116 = vmatpush1.msra.mxu0 0.0
        %2117 = vmatprep.subr.mxu0 0.0
        %2118 = vmatpush1.msra.mxu0 %v1935
        %2119 = vmatprep.subr.mxu0 0.0
        %2120 = vmatpush1.msra.mxu0 %v1934
        %2121 = vmatprep.subr.mxu0 0.0
        %2122 = vmatpush2.msra.mxu0 0.0
        %2123 = vmatprep.subr.mxu0 0.0
        %2124 = vmatpush2.msra.mxu0 0.0
        %2125 = vmatprep.subr.mxu0 0.0
        %2126 = vmatpush2.msra.mxu0 0.0
        %2127 = vmatprep.subr.mxu0 0.0
        %2128 = vmatpush2.msra.mxu0 0.0
        %2129 = vmatprep.subr.mxu0 0.0
        %2130 = vmatpush2.msra.mxu0 0.0
        %2131 = vmatprep.subr.mxu0 0.0
        %2132 = vmatpush2.msra.mxu0 0.0
        %2133 = vmatprep.subr.mxu0 0.0
        %2134 = vmatpush2.msra.mxu0 0.0
        %2135 = vmatprep.subr.mxu0 0.0
        %2136 = vmatpush2.msra.mxu0 0.0
        %2137 = vmatprep.subr.mxu0 0.0
        %2138 = vmatpush2.msra.mxu0 0.0
        %2139 = vmatprep.subr.mxu0 0.0
        %2140 = vmatpush2.msra.mxu0 0.0
        %2141 = vmatprep.subr.mxu0 0.0
        %2142 = vmatpush2.msra.mxu0 0.0
        %2143 = vmatprep.subr.mxu0 0.0
        %2144 = vmatpush2.msra.mxu0 0.0
        %2145 = vmatprep.subr.mxu0 0.0
        %2146 = vmatpush2.msra.mxu0 0.0
        %2147 = vmatprep.subr.mxu0 0.0
        %2148 = vmatpush2.msra.mxu0 0.0
        %2149 = vmatprep.subr.mxu0 0.0
        %2150 = vmatpush2.msra.mxu0 0.0
        %2151 = vmatprep.subr.mxu0 0.0
        %2152 = vmatpush2.msra.mxu0 0.0
        %2153 = vmatprep.mubr.f32.mxu0 0.0
        %2154 = vmatmul.mubr.f32.gmra.mxu0 %v2078
        %v2155 = vpop.f32.mrf.mxu0
        %v2156 = vadd.f32 0.0, %v2155
        %v2157 = vpop.f32.mrf.mxu0
        %2158 = vmatprep.mubr.f32.mxu0 0.0
        %2159 = vmatmul.mubr.f32.gmra.mxu0 %v2081
        %v2160 = vpop.f32.mrf.mxu0
        %v2161 = vadd.f32 0.0, %v2160
        %v2162 = vpop.f32.mrf.mxu0
        %2163 = vmatprep.mubr.f32.mxu0 0.0
        %2164 = vmatmul.mubr.f32.gmra.mxu0 %v2084
        %v2165 = vpop.f32.mrf.mxu0
        %v2166 = vadd.f32 0.0, %v2165
        %v2167 = vpop.f32.mrf.mxu0
        %2168 = vmatprep.mubr.f32.mxu0 0.0
        %2169 = vmatmul.mubr.f32.gmra.mxu0 %v2087
        %v2170 = vpop.f32.mrf.mxu0
        %v2171 = vadd.f32 0.0, %v2170
        %v2172 = vpop.f32.mrf.mxu0
        %2173 = vdwg.mxu0
        %s2174 = scalar_lea.vmem [#allocation5], 32
        %2175 = vst.msk [vmem:[%s2174] sm:$0xff] %vm860, %v2156
        %2176 = vst.msk [vmem:[%s2174 + $0x8] sm:$0xff] %vm860, %v2161
        %2177 = vst.msk [vmem:[%s2174 + $0x10] sm:$0xff] %vm860, %v2166
        %2178 = vst.msk [vmem:[%s2174 + $0x18] sm:$0xff] %vm860, %v2171
        %2179 = vrot.lane.b32.xlu0 %v1913, 96
        %v2180 = vpop.permute.xlu0 %2179
        %2181 = vrot.lane.b32.xlu0 %v1914, 96
        %v2182 = vpop.permute.xlu0 %2181
        %2183 = vrot.lane.b32.xlu0 %v1915, 96
        %v2184 = vpop.permute.xlu0 %2183
        %2185 = vrot.lane.b32.xlu0 %v1916, 96
        %v2186 = vpop.permute.xlu0 %2185
        %v2187 = vsel %vm860, %v2180, 0
        %v2189 = vsel %vm860, %v2182, 0
        %v2191 = vsel %vm860, %v2184, 0
        %v2193 = vsel %vm860, %v2186, 0
        %2195 = vmatprep.subr.mxu0 0.0
        %2196 = vmatpush1.msra.mxu0 0.0
        %2197 = vmatprep.subr.mxu0 0.0
        %2198 = vmatpush1.msra.mxu0 0.0
        %2199 = vmatprep.subr.mxu0 0.0
        %2200 = vmatpush1.msra.mxu0 0.0
        %2201 = vmatprep.subr.mxu0 0.0
        %2202 = vmatpush1.msra.mxu0 0.0
        %2203 = vmatprep.subr.mxu0 0.0
        %2204 = vmatpush1.msra.mxu0 0.0
        %2205 = vmatprep.subr.mxu0 0.0
        %2206 = vmatpush1.msra.mxu0 0.0
        %2207 = vmatprep.subr.mxu0 0.0
        %2208 = vmatpush1.msra.mxu0 0.0
        %2209 = vmatprep.subr.mxu0 0.0
        %2210 = vmatpush1.msra.mxu0 0.0
        %2211 = vmatprep.subr.mxu0 0.0
        %2212 = vmatpush1.msra.mxu0 0.0
        %2213 = vmatprep.subr.mxu0 0.0
        %2214 = vmatpush1.msra.mxu0 0.0
        %2215 = vmatprep.subr.mxu0 0.0
        %2216 = vmatpush1.msra.mxu0 0.0
        %2217 = vmatprep.subr.mxu0 0.0
        %2218 = vmatpush1.msra.mxu0 0.0
        %2219 = vmatprep.subr.mxu0 0.0
        %2220 = vmatpush1.msra.mxu0 %v1924
        %2221 = vmatprep.subr.mxu0 0.0
        %2222 = vmatpush1.msra.mxu0 %v1923
        %2223 = vmatprep.subr.mxu0 0.0
        %2224 = vmatpush1.msra.mxu0 %v1922
        %2225 = vmatprep.subr.mxu0 0.0
        %2226 = vmatpush1.msra.mxu0 %v1921
        %2227 = vmatprep.subr.mxu0 0.0
        %2228 = vmatpush2.msra.mxu0 0.0
        %2229 = vmatprep.subr.mxu0 0.0
        %2230 = vmatpush2.msra.mxu0 0.0
        %2231 = vmatprep.subr.mxu0 0.0
        %2232 = vmatpush2.msra.mxu0 0.0
        %2233 = vmatprep.subr.mxu0 0.0
        %2234 = vmatpush2.msra.mxu0 0.0
        %2235 = vmatprep.subr.mxu0 0.0
        %2236 = vmatpush2.msra.mxu0 0.0
        %2237 = vmatprep.subr.mxu0 0.0
        %2238 = vmatpush2.msra.mxu0 0.0
        %2239 = vmatprep.subr.mxu0 0.0
        %2240 = vmatpush2.msra.mxu0 0.0
        %2241 = vmatprep.subr.mxu0 0.0
        %2242 = vmatpush2.msra.mxu0 0.0
        %2243 = vmatprep.subr.mxu0 0.0
        %2244 = vmatpush2.msra.mxu0 0.0
        %2245 = vmatprep.subr.mxu0 0.0
        %2246 = vmatpush2.msra.mxu0 0.0
        %2247 = vmatprep.subr.mxu0 0.0
        %2248 = vmatpush2.msra.mxu0 0.0
        %2249 = vmatprep.subr.mxu0 0.0
        %2250 = vmatpush2.msra.mxu0 0.0
        %2251 = vmatprep.subr.mxu0 0.0
        %2252 = vmatpush2.msra.mxu0 0.0
        %2253 = vmatprep.subr.mxu0 0.0
        %2254 = vmatpush2.msra.mxu0 0.0
        %2255 = vmatprep.subr.mxu0 0.0
        %2256 = vmatpush2.msra.mxu0 0.0
        %2257 = vmatprep.subr.mxu0 0.0
        %2258 = vmatpush2.msra.mxu0 0.0
        %2259 = vmatprep.mubr.f32.mxu0 0.0
        %2260 = vmatmul.mubr.f32.gmra.mxu0 %v2187
        %v2261 = vpop.f32.mrf.mxu0
        %v2262 = vadd.f32 0.0, %v2261
        %v2263 = vpop.f32.mrf.mxu0
        %2264 = vmatprep.mubr.f32.mxu0 0.0
        %2265 = vmatmul.mubr.f32.gmra.mxu0 %v2189
        %v2266 = vpop.f32.mrf.mxu0
        %v2267 = vadd.f32 0.0, %v2266
        %v2268 = vpop.f32.mrf.mxu0
        %2269 = vmatprep.mubr.f32.mxu0 0.0
        %2270 = vmatmul.mubr.f32.gmra.mxu0 %v2191
        %v2271 = vpop.f32.mrf.mxu0
        %v2272 = vadd.f32 0.0, %v2271
        %v2273 = vpop.f32.mrf.mxu0
        %2274 = vmatprep.mubr.f32.mxu0 0.0
        %2275 = vmatmul.mubr.f32.gmra.mxu0 %v2193
        %v2276 = vpop.f32.mrf.mxu0
        %v2277 = vadd.f32 0.0, %v2276
        %v2278 = vpop.f32.mrf.mxu0
        %2279 = vdwg.mxu0
        %v2280 = vsel %vm635, %v2262, -inf
        %2281 = vmax.xlane.f32.xlu0 %v2280
        %v2282 = vpop.xlane.xlu0 %2281
        %v2283 = vsel %vm635, %v2267, -inf
        %2284 = vmax.xlane.f32.xlu0 %v2283
        %v2285 = vpop.xlane.xlu0 %2284
        %v2286 = vsel %vm635, %v2272, -inf
        %2287 = vmax.xlane.f32.xlu0 %v2286
        %v2288 = vpop.xlane.xlu0 %2287
        %v2289 = vsel %vm635, %v2277, -inf
        %2290 = vmax.xlane.f32.xlu0 %v2289
        %v2291 = vpop.xlane.xlu0 %2290
        %v2292 = vsub.f32 %v2262, %v2282
        %v2293 = vsub.f32 %v2267, %v2285
        %v2294 = vsub.f32 %v2272, %v2288
        %v2295 = vsub.f32 %v2277, %v2291
        %v2296 = vmul.f32 %v2292, 1.442695
        %v2297 = vpow.pop %v2296
        %v2298 = vmul.f32 %v2293, 1.442695
        %v2299 = vpow.pop %v2298
        %v2300 = vmul.f32 %v2294, 1.442695
        %v2301 = vpow.pop %v2300
        %v2302 = vmul.f32 %v2295, 1.442695
        %v2303 = vpow.pop %v2302
        %v2304 = vsel %vm635, %v2297, 0.0
        %2305 = vadd.xlane.f32.xlu0 %v2304
        %v2306 = vpop.xlane.xlu0 %2305
        %v2307 = vsel %vm635, %v2299, 0.0
        %2308 = vadd.xlane.f32.xlu0 %v2307
        %v2309 = vpop.xlane.xlu0 %2308
        %v2310 = vsel %vm635, %v2301, 0.0
        %2311 = vadd.xlane.f32.xlu0 %v2310
        %v2312 = vpop.xlane.xlu0 %2311
        %v2313 = vsel %vm635, %v2303, 0.0
        %2314 = vadd.xlane.f32.xlu0 %v2313
        %v2315 = vpop.xlane.xlu0 %2314
        %v2316 = vrcp.pop %v2306
        %v2317 = vrcp.pop %v2309
        %v2318 = vrcp.pop %v2312
        %v2319 = vrcp.pop %v2315
        %v2320 = vmul.f32 %v2297, %v2316
        %v2321 = vmul.f32 %v2299, %v2317
        %v2322 = vmul.f32 %v2301, %v2318
        %v2323 = vmul.f32 %v2303, %v2319
        %2326 = vrot.lane.b32.xlu0 %v1934, 96
        %v2327 = vpop.permute.xlu0 %2326
        %2328 = vrot.lane.b32.xlu0 %v1935, 96
        %v2329 = vpop.permute.xlu0 %2328
        %v2333 = vsel %vm635, %v2320, 0
        %v2336 = vsel %vm635, %v2321, 0
        %v2339 = vsel %vm635, %v2322, 0
        %v2342 = vsel %vm635, %v2323, 0
        %2344 = vmatprep.subr.mxu0 0.0
        %2345 = vmatpush1.msra.mxu0 0.0
        %2346 = vmatprep.subr.mxu0 0.0
        %2347 = vmatpush1.msra.mxu0 0.0
        %2348 = vmatprep.subr.mxu0 0.0
        %2349 = vmatpush1.msra.mxu0 0.0
        %2350 = vmatprep.subr.mxu0 0.0
        %2351 = vmatpush1.msra.mxu0 0.0
        %2352 = vmatprep.subr.mxu0 0.0
        %2353 = vmatpush1.msra.mxu0 0.0
        %2354 = vmatprep.subr.mxu0 0.0
        %2355 = vmatpush1.msra.mxu0 0.0
        %2356 = vmatprep.subr.mxu0 0.0
        %2357 = vmatpush1.msra.mxu0 0.0
        %2358 = vmatprep.subr.mxu0 0.0
        %2359 = vmatpush1.msra.mxu0 0.0
        %2360 = vmatprep.subr.mxu0 0.0
        %2361 = vmatpush1.msra.mxu0 0.0
        %2362 = vmatprep.subr.mxu0 0.0
        %2363 = vmatpush1.msra.mxu0 0.0
        %2364 = vmatprep.subr.mxu0 0.0
        %2365 = vmatpush1.msra.mxu0 0.0
        %2366 = vmatprep.subr.mxu0 0.0
        %2367 = vmatpush1.msra.mxu0 0.0
        %2368 = vmatprep.subr.mxu0 0.0
        %2369 = vmatpush1.msra.mxu0 0.0
        %2370 = vmatprep.subr.mxu0 0.0
        %2371 = vmatpush1.msra.mxu0 0.0
        %2372 = vmatprep.subr.mxu0 0.0
        %2373 = vmatpush1.msra.mxu0 %v2329
        %2374 = vmatprep.subr.mxu0 0.0
        %2375 = vmatpush1.msra.mxu0 %v2327
        %2376 = vmatprep.subr.mxu0 0.0
        %2377 = vmatpush2.msra.mxu0 0.0
        %2378 = vmatprep.subr.mxu0 0.0
        %2379 = vmatpush2.msra.mxu0 0.0
        %2380 = vmatprep.subr.mxu0 0.0
        %2381 = vmatpush2.msra.mxu0 0.0
        %2382 = vmatprep.subr.mxu0 0.0
        %2383 = vmatpush2.msra.mxu0 0.0
        %2384 = vmatprep.subr.mxu0 0.0
        %2385 = vmatpush2.msra.mxu0 0.0
        %2386 = vmatprep.subr.mxu0 0.0
        %2387 = vmatpush2.msra.mxu0 0.0
        %2388 = vmatprep.subr.mxu0 0.0
        %2389 = vmatpush2.msra.mxu0 0.0
        %2390 = vmatprep.subr.mxu0 0.0
        %2391 = vmatpush2.msra.mxu0 0.0
        %2392 = vmatprep.subr.mxu0 0.0
        %2393 = vmatpush2.msra.mxu0 0.0
        %2394 = vmatprep.subr.mxu0 0.0
        %2395 = vmatpush2.msra.mxu0 0.0
        %2396 = vmatprep.subr.mxu0 0.0
        %2397 = vmatpush2.msra.mxu0 0.0
        %2398 = vmatprep.subr.mxu0 0.0
        %2399 = vmatpush2.msra.mxu0 0.0
        %2400 = vmatprep.subr.mxu0 0.0
        %2401 = vmatpush2.msra.mxu0 0.0
        %2402 = vmatprep.subr.mxu0 0.0
        %2403 = vmatpush2.msra.mxu0 0.0
        %2404 = vmatprep.subr.mxu0 0.0
        %2405 = vmatpush2.msra.mxu0 0.0
        %2406 = vmatprep.subr.mxu0 0.0
        %2407 = vmatpush2.msra.mxu0 0.0
        %2408 = vmatprep.mubr.f32.mxu0 0.0
        %2409 = vmatmul.mubr.f32.gmra.mxu0 %v2333
        %v2410 = vpop.f32.mrf.mxu0
        %v2411 = vadd.f32 0.0, %v2410
        %v2412 = vpop.f32.mrf.mxu0
        %2413 = vmatprep.mubr.f32.mxu0 0.0
        %2414 = vmatmul.mubr.f32.gmra.mxu0 %v2336
        %v2415 = vpop.f32.mrf.mxu0
        %v2416 = vadd.f32 0.0, %v2415
        %v2417 = vpop.f32.mrf.mxu0
        %2418 = vmatprep.mubr.f32.mxu0 0.0
        %2419 = vmatmul.mubr.f32.gmra.mxu0 %v2339
        %v2420 = vpop.f32.mrf.mxu0
        %v2421 = vadd.f32 0.0, %v2420
        %v2422 = vpop.f32.mrf.mxu0
        %2423 = vmatprep.mubr.f32.mxu0 0.0
        %2424 = vmatmul.mubr.f32.gmra.mxu0 %v2342
        %v2425 = vpop.f32.mrf.mxu0
        %v2426 = vadd.f32 0.0, %v2425
        %v2427 = vpop.f32.mrf.mxu0
        %2428 = vdwg.mxu0
        %2433 = vrot.lane.b32.xlu0 %v2411, 32
        %v2434 = vpop.permute.xlu0 %2433
        %2435 = vrot.lane.b32.xlu0 %v2416, 32
        %v2436 = vpop.permute.xlu0 %2435
        %2437 = vrot.lane.b32.xlu0 %v2421, 32
        %v2438 = vpop.permute.xlu0 %2437
        %2439 = vrot.lane.b32.xlu0 %v2426, 32
        %v2440 = vpop.permute.xlu0 %2439
        %2445 = vst.msk [vmem:[%s2174] sm:$0xff] %vm1369, %v2434
        %2446 = vst.msk [vmem:[%s2174 + $0x8] sm:$0xff] %vm1369, %v2436
        %2447 = vst.msk [vmem:[%s2174 + $0x10] sm:$0xff] %vm1369, %v2438
        %2448 = vst.msk [vmem:[%s2174 + $0x18] sm:$0xff] %vm1369, %v2440
        %2449 = vrot.lane.b32.xlu0 %v1913, 64
        %v2450 = vpop.permute.xlu0 %2449
        %2451 = vrot.lane.b32.xlu0 %v1914, 64
        %v2452 = vpop.permute.xlu0 %2451
        %2453 = vrot.lane.b32.xlu0 %v1915, 64
        %v2454 = vpop.permute.xlu0 %2453
        %2455 = vrot.lane.b32.xlu0 %v1916, 64
        %v2456 = vpop.permute.xlu0 %2455
        %v2457 = vsel %vm860, %v2450, 0
        %v2459 = vsel %vm860, %v2452, 0
        %v2461 = vsel %vm860, %v2454, 0
        %v2463 = vsel %vm860, %v2456, 0
        %2465 = vmatprep.subr.mxu0 0.0
        %2466 = vmatpush1.msra.mxu0 0.0
        %2467 = vmatprep.subr.mxu0 0.0
        %2468 = vmatpush1.msra.mxu0 0.0
        %2469 = vmatprep.subr.mxu0 0.0
        %2470 = vmatpush1.msra.mxu0 0.0
        %2471 = vmatprep.subr.mxu0 0.0
        %2472 = vmatpush1.msra.mxu0 0.0
        %2473 = vmatprep.subr.mxu0 0.0
        %2474 = vmatpush1.msra.mxu0 0.0
        %2475 = vmatprep.subr.mxu0 0.0
        %2476 = vmatpush1.msra.mxu0 0.0
        %2477 = vmatprep.subr.mxu0 0.0
        %2478 = vmatpush1.msra.mxu0 0.0
        %2479 = vmatprep.subr.mxu0 0.0
        %2480 = vmatpush1.msra.mxu0 0.0
        %2481 = vmatprep.subr.mxu0 0.0
        %2482 = vmatpush1.msra.mxu0 0.0
        %2483 = vmatprep.subr.mxu0 0.0
        %2484 = vmatpush1.msra.mxu0 0.0
        %2485 = vmatprep.subr.mxu0 0.0
        %2486 = vmatpush1.msra.mxu0 0.0
        %2487 = vmatprep.subr.mxu0 0.0
        %2488 = vmatpush1.msra.mxu0 0.0
        %2489 = vmatprep.subr.mxu0 0.0
        %2490 = vmatpush1.msra.mxu0 %v1928
        %2491 = vmatprep.subr.mxu0 0.0
        %2492 = vmatpush1.msra.mxu0 %v1927
        %2493 = vmatprep.subr.mxu0 0.0
        %2494 = vmatpush1.msra.mxu0 %v1926
        %2495 = vmatprep.subr.mxu0 0.0
        %2496 = vmatpush1.msra.mxu0 %v1925
        %2497 = vmatprep.subr.mxu0 0.0
        %2498 = vmatpush2.msra.mxu0 0.0
        %2499 = vmatprep.subr.mxu0 0.0
        %2500 = vmatpush2.msra.mxu0 0.0
        %2501 = vmatprep.subr.mxu0 0.0
        %2502 = vmatpush2.msra.mxu0 0.0
        %2503 = vmatprep.subr.mxu0 0.0
        %2504 = vmatpush2.msra.mxu0 0.0
        %2505 = vmatprep.subr.mxu0 0.0
        %2506 = vmatpush2.msra.mxu0 0.0
        %2507 = vmatprep.subr.mxu0 0.0
        %2508 = vmatpush2.msra.mxu0 0.0
        %2509 = vmatprep.subr.mxu0 0.0
        %2510 = vmatpush2.msra.mxu0 0.0
        %2511 = vmatprep.subr.mxu0 0.0
        %2512 = vmatpush2.msra.mxu0 0.0
        %2513 = vmatprep.subr.mxu0 0.0
        %2514 = vmatpush2.msra.mxu0 0.0
        %2515 = vmatprep.subr.mxu0 0.0
        %2516 = vmatpush2.msra.mxu0 0.0
        %2517 = vmatprep.subr.mxu0 0.0
        %2518 = vmatpush2.msra.mxu0 0.0
        %2519 = vmatprep.subr.mxu0 0.0
        %2520 = vmatpush2.msra.mxu0 0.0
        %2521 = vmatprep.subr.mxu0 0.0
        %2522 = vmatpush2.msra.mxu0 0.0
        %2523 = vmatprep.subr.mxu0 0.0
        %2524 = vmatpush2.msra.mxu0 0.0
        %2525 = vmatprep.subr.mxu0 0.0
        %2526 = vmatpush2.msra.mxu0 0.0
        %2527 = vmatprep.subr.mxu0 0.0
        %2528 = vmatpush2.msra.mxu0 0.0
        %2529 = vmatprep.mubr.f32.mxu0 0.0
        %2530 = vmatmul.mubr.f32.gmra.mxu0 %v2457
        %v2531 = vpop.f32.mrf.mxu0
        %v2532 = vadd.f32 0.0, %v2531
        %v2533 = vpop.f32.mrf.mxu0
        %2534 = vmatprep.mubr.f32.mxu0 0.0
        %2535 = vmatmul.mubr.f32.gmra.mxu0 %v2459
        %v2536 = vpop.f32.mrf.mxu0
        %v2537 = vadd.f32 0.0, %v2536
        %v2538 = vpop.f32.mrf.mxu0
        %2539 = vmatprep.mubr.f32.mxu0 0.0
        %2540 = vmatmul.mubr.f32.gmra.mxu0 %v2461
        %v2541 = vpop.f32.mrf.mxu0
        %v2542 = vadd.f32 0.0, %v2541
        %v2543 = vpop.f32.mrf.mxu0
        %2544 = vmatprep.mubr.f32.mxu0 0.0
        %2545 = vmatmul.mubr.f32.gmra.mxu0 %v2463
        %v2546 = vpop.f32.mrf.mxu0
        %v2547 = vadd.f32 0.0, %v2546
        %v2548 = vpop.f32.mrf.mxu0
        %2549 = vdwg.mxu0
        %v2550 = vsel %vm635, %v2532, -inf
        %2551 = vmax.xlane.f32.xlu0 %v2550
        %v2552 = vpop.xlane.xlu0 %2551
        %v2553 = vsel %vm635, %v2537, -inf
        %2554 = vmax.xlane.f32.xlu0 %v2553
        %v2555 = vpop.xlane.xlu0 %2554
        %v2556 = vsel %vm635, %v2542, -inf
        %2557 = vmax.xlane.f32.xlu0 %v2556
        %v2558 = vpop.xlane.xlu0 %2557
        %v2559 = vsel %vm635, %v2547, -inf
        %2560 = vmax.xlane.f32.xlu0 %v2559
        %v2561 = vpop.xlane.xlu0 %2560
        %v2562 = vsub.f32 %v2532, %v2552
        %v2563 = vsub.f32 %v2537, %v2555
        %v2564 = vsub.f32 %v2542, %v2558
        %v2565 = vsub.f32 %v2547, %v2561
        %v2566 = vmul.f32 %v2562, 1.442695
        %v2567 = vpow.pop %v2566
        %v2568 = vmul.f32 %v2563, 1.442695
        %v2569 = vpow.pop %v2568
        %v2570 = vmul.f32 %v2564, 1.442695
        %v2571 = vpow.pop %v2570
        %v2572 = vmul.f32 %v2565, 1.442695
        %v2573 = vpow.pop %v2572
        %v2574 = vsel %vm635, %v2567, 0.0
        %2575 = vadd.xlane.f32.xlu0 %v2574
        %v2576 = vpop.xlane.xlu0 %2575
        %v2577 = vsel %vm635, %v2569, 0.0
        %2578 = vadd.xlane.f32.xlu0 %v2577
        %v2579 = vpop.xlane.xlu0 %2578
        %v2580 = vsel %vm635, %v2571, 0.0
        %2581 = vadd.xlane.f32.xlu0 %v2580
        %v2582 = vpop.xlane.xlu0 %2581
        %v2583 = vsel %vm635, %v2573, 0.0
        %2584 = vadd.xlane.f32.xlu0 %v2583
        %v2585 = vpop.xlane.xlu0 %2584
        %v2586 = vrcp.pop %v2576
        %v2587 = vrcp.pop %v2579
        %v2588 = vrcp.pop %v2582
        %v2589 = vrcp.pop %v2585
        %v2590 = vmul.f32 %v2567, %v2586
        %v2591 = vmul.f32 %v2569, %v2587
        %v2592 = vmul.f32 %v2571, %v2588
        %v2593 = vmul.f32 %v2573, %v2589
        %2594 = vrot.lane.b32.xlu0 %v1934, 64
        %v2595 = vpop.permute.xlu0 %2594
        %2596 = vrot.lane.b32.xlu0 %v1935, 64
        %v2597 = vpop.permute.xlu0 %2596
        %v2601 = vsel %vm635, %v2590, 0
        %v2604 = vsel %vm635, %v2591, 0
        %v2607 = vsel %vm635, %v2592, 0
        %v2610 = vsel %vm635, %v2593, 0
        %2612 = vmatprep.subr.mxu0 0.0
        %2613 = vmatpush1.msra.mxu0 0.0
        %2614 = vmatprep.subr.mxu0 0.0
        %2615 = vmatpush1.msra.mxu0 0.0
        %2616 = vmatprep.subr.mxu0 0.0
        %2617 = vmatpush1.msra.mxu0 0.0
        %2618 = vmatprep.subr.mxu0 0.0
        %2619 = vmatpush1.msra.mxu0 0.0
        %2620 = vmatprep.subr.mxu0 0.0
        %2621 = vmatpush1.msra.mxu0 0.0
        %2622 = vmatprep.subr.mxu0 0.0
        %2623 = vmatpush1.msra.mxu0 0.0
        %2624 = vmatprep.subr.mxu0 0.0
        %2625 = vmatpush1.msra.mxu0 0.0
        %2626 = vmatprep.subr.mxu0 0.0
        %2627 = vmatpush1.msra.mxu0 0.0
        %2628 = vmatprep.subr.mxu0 0.0
        %2629 = vmatpush1.msra.mxu0 0.0
        %2630 = vmatprep.subr.mxu0 0.0
        %2631 = vmatpush1.msra.mxu0 0.0
        %2632 = vmatprep.subr.mxu0 0.0
        %2633 = vmatpush1.msra.mxu0 0.0
        %2634 = vmatprep.subr.mxu0 0.0
        %2635 = vmatpush1.msra.mxu0 0.0
        %2636 = vmatprep.subr.mxu0 0.0
        %2637 = vmatpush1.msra.mxu0 0.0
        %2638 = vmatprep.subr.mxu0 0.0
        %2639 = vmatpush1.msra.mxu0 0.0
        %2640 = vmatprep.subr.mxu0 0.0
        %2641 = vmatpush1.msra.mxu0 %v2597
        %2642 = vmatprep.subr.mxu0 0.0
        %2643 = vmatpush1.msra.mxu0 %v2595
        %2644 = vmatprep.subr.mxu0 0.0
        %2645 = vmatpush2.msra.mxu0 0.0
        %2646 = vmatprep.subr.mxu0 0.0
        %2647 = vmatpush2.msra.mxu0 0.0
        %2648 = vmatprep.subr.mxu0 0.0
        %2649 = vmatpush2.msra.mxu0 0.0
        %2650 = vmatprep.subr.mxu0 0.0
        %2651 = vmatpush2.msra.mxu0 0.0
        %2652 = vmatprep.subr.mxu0 0.0
        %2653 = vmatpush2.msra.mxu0 0.0
        %2654 = vmatprep.subr.mxu0 0.0
        %2655 = vmatpush2.msra.mxu0 0.0
        %2656 = vmatprep.subr.mxu0 0.0
        %2657 = vmatpush2.msra.mxu0 0.0
        %2658 = vmatprep.subr.mxu0 0.0
        %2659 = vmatpush2.msra.mxu0 0.0
        %2660 = vmatprep.subr.mxu0 0.0
        %2661 = vmatpush2.msra.mxu0 0.0
        %2662 = vmatprep.subr.mxu0 0.0
        %2663 = vmatpush2.msra.mxu0 0.0
        %2664 = vmatprep.subr.mxu0 0.0
        %2665 = vmatpush2.msra.mxu0 0.0
        %2666 = vmatprep.subr.mxu0 0.0
        %2667 = vmatpush2.msra.mxu0 0.0
        %2668 = vmatprep.subr.mxu0 0.0
        %2669 = vmatpush2.msra.mxu0 0.0
        %2670 = vmatprep.subr.mxu0 0.0
        %2671 = vmatpush2.msra.mxu0 0.0
        %2672 = vmatprep.subr.mxu0 0.0
        %2673 = vmatpush2.msra.mxu0 0.0
        %2674 = vmatprep.subr.mxu0 0.0
        %2675 = vmatpush2.msra.mxu0 0.0
        %2676 = vmatprep.mubr.f32.mxu0 0.0
        %2677 = vmatmul.mubr.f32.gmra.mxu0 %v2601
        %v2678 = vpop.f32.mrf.mxu0
        %v2679 = vadd.f32 0.0, %v2678
        %v2680 = vpop.f32.mrf.mxu0
        %2681 = vmatprep.mubr.f32.mxu0 0.0
        %2682 = vmatmul.mubr.f32.gmra.mxu0 %v2604
        %v2683 = vpop.f32.mrf.mxu0
        %v2684 = vadd.f32 0.0, %v2683
        %v2685 = vpop.f32.mrf.mxu0
        %2686 = vmatprep.mubr.f32.mxu0 0.0
        %2687 = vmatmul.mubr.f32.gmra.mxu0 %v2607
        %v2688 = vpop.f32.mrf.mxu0
        %v2689 = vadd.f32 0.0, %v2688
        %v2690 = vpop.f32.mrf.mxu0
        %2691 = vmatprep.mubr.f32.mxu0 0.0
        %2692 = vmatmul.mubr.f32.gmra.mxu0 %v2610
        %v2693 = vpop.f32.mrf.mxu0
        %v2694 = vadd.f32 0.0, %v2693
        %v2695 = vpop.f32.mrf.mxu0
        %2696 = vdwg.mxu0
        %2701 = vrot.lane.b32.xlu0 %v2679, 64
        %v2702 = vpop.permute.xlu0 %2701
        %2703 = vrot.lane.b32.xlu0 %v2684, 64
        %v2704 = vpop.permute.xlu0 %2703
        %2705 = vrot.lane.b32.xlu0 %v2689, 64
        %v2706 = vpop.permute.xlu0 %2705
        %2707 = vrot.lane.b32.xlu0 %v2694, 64
        %v2708 = vpop.permute.xlu0 %2707
        %2713 = vst.msk [vmem:[%s2174] sm:$0xff] %vm1638, %v2702
        %2714 = vst.msk [vmem:[%s2174 + $0x8] sm:$0xff] %vm1638, %v2704
        %2715 = vst.msk [vmem:[%s2174 + $0x10] sm:$0xff] %vm1638, %v2706
        %2716 = vst.msk [vmem:[%s2174 + $0x18] sm:$0xff] %vm1638, %v2708
        %2717 = vrot.lane.b32.xlu0 %v1913, 32
        %v2718 = vpop.permute.xlu0 %2717
        %2719 = vrot.lane.b32.xlu0 %v1914, 32
        %v2720 = vpop.permute.xlu0 %2719
        %2721 = vrot.lane.b32.xlu0 %v1915, 32
        %v2722 = vpop.permute.xlu0 %2721
        %2723 = vrot.lane.b32.xlu0 %v1916, 32
        %v2724 = vpop.permute.xlu0 %2723
        %v2725 = vsel %vm860, %v2718, 0
        %v2727 = vsel %vm860, %v2720, 0
        %v2729 = vsel %vm860, %v2722, 0
        %v2731 = vsel %vm860, %v2724, 0
        %2733 = vmatprep.subr.mxu0 0.0
        %2734 = vmatpush1.msra.mxu0 0.0
        %2735 = vmatprep.subr.mxu0 0.0
        %2736 = vmatpush1.msra.mxu0 0.0
        %2737 = vmatprep.subr.mxu0 0.0
        %2738 = vmatpush1.msra.mxu0 0.0
        %2739 = vmatprep.subr.mxu0 0.0
        %2740 = vmatpush1.msra.mxu0 0.0
        %2741 = vmatprep.subr.mxu0 0.0
        %2742 = vmatpush1.msra.mxu0 0.0
        %2743 = vmatprep.subr.mxu0 0.0
        %2744 = vmatpush1.msra.mxu0 0.0
        %2745 = vmatprep.subr.mxu0 0.0
        %2746 = vmatpush1.msra.mxu0 0.0
        %2747 = vmatprep.subr.mxu0 0.0
        %2748 = vmatpush1.msra.mxu0 0.0
        %2749 = vmatprep.subr.mxu0 0.0
        %2750 = vmatpush1.msra.mxu0 0.0
        %2751 = vmatprep.subr.mxu0 0.0
        %2752 = vmatpush1.msra.mxu0 0.0
        %2753 = vmatprep.subr.mxu0 0.0
        %2754 = vmatpush1.msra.mxu0 0.0
        %2755 = vmatprep.subr.mxu0 0.0
        %2756 = vmatpush1.msra.mxu0 0.0
        %2757 = vmatprep.subr.mxu0 0.0
        %2758 = vmatpush1.msra.mxu0 %v1932
        %2759 = vmatprep.subr.mxu0 0.0
        %2760 = vmatpush1.msra.mxu0 %v1931
        %2761 = vmatprep.subr.mxu0 0.0
        %2762 = vmatpush1.msra.mxu0 %v1930
        %2763 = vmatprep.subr.mxu0 0.0
        %2764 = vmatpush1.msra.mxu0 %v1929
        %2765 = vmatprep.subr.mxu0 0.0
        %2766 = vmatpush2.msra.mxu0 0.0
        %2767 = vmatprep.subr.mxu0 0.0
        %2768 = vmatpush2.msra.mxu0 0.0
        %2769 = vmatprep.subr.mxu0 0.0
        %2770 = vmatpush2.msra.mxu0 0.0
        %2771 = vmatprep.subr.mxu0 0.0
        %2772 = vmatpush2.msra.mxu0 0.0
        %2773 = vmatprep.subr.mxu0 0.0
        %2774 = vmatpush2.msra.mxu0 0.0
        %2775 = vmatprep.subr.mxu0 0.0
        %2776 = vmatpush2.msra.mxu0 0.0
        %2777 = vmatprep.subr.mxu0 0.0
        %2778 = vmatpush2.msra.mxu0 0.0
        %2779 = vmatprep.subr.mxu0 0.0
        %2780 = vmatpush2.msra.mxu0 0.0
        %2781 = vmatprep.subr.mxu0 0.0
        %2782 = vmatpush2.msra.mxu0 0.0
        %2783 = vmatprep.subr.mxu0 0.0
        %2784 = vmatpush2.msra.mxu0 0.0
        %2785 = vmatprep.subr.mxu0 0.0
        %2786 = vmatpush2.msra.mxu0 0.0
        %2787 = vmatprep.subr.mxu0 0.0
        %2788 = vmatpush2.msra.mxu0 0.0
        %2789 = vmatprep.subr.mxu0 0.0
        %2790 = vmatpush2.msra.mxu0 0.0
        %2791 = vmatprep.subr.mxu0 0.0
        %2792 = vmatpush2.msra.mxu0 0.0
        %2793 = vmatprep.subr.mxu0 0.0
        %2794 = vmatpush2.msra.mxu0 0.0
        %2795 = vmatprep.subr.mxu0 0.0
        %2796 = vmatpush2.msra.mxu0 0.0
        %2797 = vmatprep.mubr.f32.mxu0 0.0
        %2798 = vmatmul.mubr.f32.gmra.mxu0 %v2725
        %v2799 = vpop.f32.mrf.mxu0
        %v2800 = vadd.f32 0.0, %v2799
        %v2801 = vpop.f32.mrf.mxu0
        %2802 = vmatprep.mubr.f32.mxu0 0.0
        %2803 = vmatmul.mubr.f32.gmra.mxu0 %v2727
        %v2804 = vpop.f32.mrf.mxu0
        %v2805 = vadd.f32 0.0, %v2804
        %v2806 = vpop.f32.mrf.mxu0
        %2807 = vmatprep.mubr.f32.mxu0 0.0
        %2808 = vmatmul.mubr.f32.gmra.mxu0 %v2729
        %v2809 = vpop.f32.mrf.mxu0
        %v2810 = vadd.f32 0.0, %v2809
        %v2811 = vpop.f32.mrf.mxu0
        %2812 = vmatprep.mubr.f32.mxu0 0.0
        %2813 = vmatmul.mubr.f32.gmra.mxu0 %v2731
        %v2814 = vpop.f32.mrf.mxu0
        %v2815 = vadd.f32 0.0, %v2814
        %v2816 = vpop.f32.mrf.mxu0
        %2817 = vdwg.mxu0
        %v2818 = vsel %vm635, %v2800, -inf
        %2819 = vmax.xlane.f32.xlu0 %v2818
        %v2820 = vpop.xlane.xlu0 %2819
        %v2821 = vsel %vm635, %v2805, -inf
        %2822 = vmax.xlane.f32.xlu0 %v2821
        %v2823 = vpop.xlane.xlu0 %2822
        %v2824 = vsel %vm635, %v2810, -inf
        %2825 = vmax.xlane.f32.xlu0 %v2824
        %v2826 = vpop.xlane.xlu0 %2825
        %v2827 = vsel %vm635, %v2815, -inf
        %2828 = vmax.xlane.f32.xlu0 %v2827
        %v2829 = vpop.xlane.xlu0 %2828
        %v2830 = vsub.f32 %v2800, %v2820
        %v2831 = vsub.f32 %v2805, %v2823
        %v2832 = vsub.f32 %v2810, %v2826
        %v2833 = vsub.f32 %v2815, %v2829
        %v2834 = vmul.f32 %v2830, 1.442695
        %v2835 = vpow.pop %v2834
        %v2836 = vmul.f32 %v2831, 1.442695
        %v2837 = vpow.pop %v2836
        %v2838 = vmul.f32 %v2832, 1.442695
        %v2839 = vpow.pop %v2838
        %v2840 = vmul.f32 %v2833, 1.442695
        %v2841 = vpow.pop %v2840
        %v2842 = vsel %vm635, %v2835, 0.0
        %2843 = vadd.xlane.f32.xlu0 %v2842
        %v2844 = vpop.xlane.xlu0 %2843
        %v2845 = vsel %vm635, %v2837, 0.0
        %2846 = vadd.xlane.f32.xlu0 %v2845
        %v2847 = vpop.xlane.xlu0 %2846
        %v2848 = vsel %vm635, %v2839, 0.0
        %2849 = vadd.xlane.f32.xlu0 %v2848
        %v2850 = vpop.xlane.xlu0 %2849
        %v2851 = vsel %vm635, %v2841, 0.0
        %2852 = vadd.xlane.f32.xlu0 %v2851
        %v2853 = vpop.xlane.xlu0 %2852
        %v2854 = vrcp.pop %v2844
        %v2855 = vrcp.pop %v2847
        %v2856 = vrcp.pop %v2850
        %v2857 = vrcp.pop %v2853
        %v2858 = vmul.f32 %v2835, %v2854
        %v2859 = vmul.f32 %v2837, %v2855
        %v2860 = vmul.f32 %v2839, %v2856
        %v2861 = vmul.f32 %v2841, %v2857
        %2862 = vrot.lane.b32.xlu0 %v1934, 32
        %v2863 = vpop.permute.xlu0 %2862
        %2864 = vrot.lane.b32.xlu0 %v1935, 32
        %v2865 = vpop.permute.xlu0 %2864
        %v2869 = vsel %vm635, %v2858, 0
        %v2872 = vsel %vm635, %v2859, 0
        %v2875 = vsel %vm635, %v2860, 0
        %v2878 = vsel %vm635, %v2861, 0
        %2880 = vmatprep.subr.mxu0 0.0
        %2881 = vmatpush1.msra.mxu0 0.0
        %2882 = vmatprep.subr.mxu0 0.0
        %2883 = vmatpush1.msra.mxu0 0.0
        %2884 = vmatprep.subr.mxu0 0.0
        %2885 = vmatpush1.msra.mxu0 0.0
        %2886 = vmatprep.subr.mxu0 0.0
        %2887 = vmatpush1.msra.mxu0 0.0
        %2888 = vmatprep.subr.mxu0 0.0
        %2889 = vmatpush1.msra.mxu0 0.0
        %2890 = vmatprep.subr.mxu0 0.0
        %2891 = vmatpush1.msra.mxu0 0.0
        %2892 = vmatprep.subr.mxu0 0.0
        %2893 = vmatpush1.msra.mxu0 0.0
        %2894 = vmatprep.subr.mxu0 0.0
        %2895 = vmatpush1.msra.mxu0 0.0
        %2896 = vmatprep.subr.mxu0 0.0
        %2897 = vmatpush1.msra.mxu0 0.0
        %2898 = vmatprep.subr.mxu0 0.0
        %2899 = vmatpush1.msra.mxu0 0.0
        %2900 = vmatprep.subr.mxu0 0.0
        %2901 = vmatpush1.msra.mxu0 0.0
        %2902 = vmatprep.subr.mxu0 0.0
        %2903 = vmatpush1.msra.mxu0 0.0
        %2904 = vmatprep.subr.mxu0 0.0
        %2905 = vmatpush1.msra.mxu0 0.0
        %2906 = vmatprep.subr.mxu0 0.0
        %2907 = vmatpush1.msra.mxu0 0.0
        %2908 = vmatprep.subr.mxu0 0.0
        %2909 = vmatpush1.msra.mxu0 %v2865
        %2910 = vmatprep.subr.mxu0 0.0
        %2911 = vmatpush1.msra.mxu0 %v2863
        %2912 = vmatprep.subr.mxu0 0.0
        %2913 = vmatpush2.msra.mxu0 0.0
        %2914 = vmatprep.subr.mxu0 0.0
        %2915 = vmatpush2.msra.mxu0 0.0
        %2916 = vmatprep.subr.mxu0 0.0
        %2917 = vmatpush2.msra.mxu0 0.0
        %2918 = vmatprep.subr.mxu0 0.0
        %2919 = vmatpush2.msra.mxu0 0.0
        %2920 = vmatprep.subr.mxu0 0.0
        %2921 = vmatpush2.msra.mxu0 0.0
        %2922 = vmatprep.subr.mxu0 0.0
        %2923 = vmatpush2.msra.mxu0 0.0
        %2924 = vmatprep.subr.mxu0 0.0
        %2925 = vmatpush2.msra.mxu0 0.0
        %2926 = vmatprep.subr.mxu0 0.0
        %2927 = vmatpush2.msra.mxu0 0.0
        %2928 = vmatprep.subr.mxu0 0.0
        %2929 = vmatpush2.msra.mxu0 0.0
        %2930 = vmatprep.subr.mxu0 0.0
        %2931 = vmatpush2.msra.mxu0 0.0
        %2932 = vmatprep.subr.mxu0 0.0
        %2933 = vmatpush2.msra.mxu0 0.0
        %2934 = vmatprep.subr.mxu0 0.0
        %2935 = vmatpush2.msra.mxu0 0.0
        %2936 = vmatprep.subr.mxu0 0.0
        %2937 = vmatpush2.msra.mxu0 0.0
        %2938 = vmatprep.subr.mxu0 0.0
        %2939 = vmatpush2.msra.mxu0 0.0
        %2940 = vmatprep.subr.mxu0 0.0
        %2941 = vmatpush2.msra.mxu0 0.0
        %2942 = vmatprep.subr.mxu0 0.0
        %2943 = vmatpush2.msra.mxu0 0.0
        %2944 = vmatprep.mubr.f32.mxu0 0.0
        %2945 = vmatmul.mubr.f32.gmra.mxu0 %v2869
        %v2946 = vpop.f32.mrf.mxu0
        %v2947 = vadd.f32 0.0, %v2946
        %v2948 = vpop.f32.mrf.mxu0
        %2949 = vmatprep.mubr.f32.mxu0 0.0
        %2950 = vmatmul.mubr.f32.gmra.mxu0 %v2872
        %v2951 = vpop.f32.mrf.mxu0
        %v2952 = vadd.f32 0.0, %v2951
        %v2953 = vpop.f32.mrf.mxu0
        %2954 = vmatprep.mubr.f32.mxu0 0.0
        %2955 = vmatmul.mubr.f32.gmra.mxu0 %v2875
        %v2956 = vpop.f32.mrf.mxu0
        %v2957 = vadd.f32 0.0, %v2956
        %v2958 = vpop.f32.mrf.mxu0
        %2959 = vmatprep.mubr.f32.mxu0 0.0
        %2960 = vmatmul.mubr.f32.gmra.mxu0 %v2878
        %v2961 = vpop.f32.mrf.mxu0
        %v2962 = vadd.f32 0.0, %v2961
        %v2963 = vpop.f32.mrf.mxu0
        %2964 = vdwg.mxu0
        %2969 = vrot.lane.b32.xlu0 %v2947, 96
        %v2970 = vpop.permute.xlu0 %2969
        %2971 = vrot.lane.b32.xlu0 %v2952, 96
        %v2972 = vpop.permute.xlu0 %2971
        %2973 = vrot.lane.b32.xlu0 %v2957, 96
        %v2974 = vpop.permute.xlu0 %2973
        %2975 = vrot.lane.b32.xlu0 %v2962, 96
        %v2976 = vpop.permute.xlu0 %2975
        %2981 = vst.msk [vmem:[%s2174] sm:$0xff] %vm1907, %v2970
        %2982 = vst.msk [vmem:[%s2174 + $0x8] sm:$0xff] %vm1907, %v2972
        %2983 = vst.msk [vmem:[%s2174 + $0x10] sm:$0xff] %vm1907, %v2974
        %2984 = vst.msk [vmem:[%s2174 + $0x18] sm:$0xff] %vm1907, %v2976
        %v2985 = vld [vmem:[#allocation5] sm:$0xff]
        %v2986 = vld [vmem:[#allocation5 + $0x8] sm:$0xff]
        %v2987 = vld [vmem:[#allocation5 + $0x10] sm:$0xff]
        %v2988 = vld [vmem:[#allocation5 + $0x18] sm:$0xff]
        %v2989 = vld [vmem:[#allocation5 + $0x20] sm:$0xff]
        %v2990 = vld [vmem:[#allocation5 + $0x28] sm:$0xff]
        %v2991 = vld [vmem:[#allocation5 + $0x30] sm:$0xff]
        %v2992 = vld [vmem:[#allocation5 + $0x38] sm:$0xff]
        %v2993 = vld [vmem:[#allocation15] sm:$0xff]
        %v2994 = vld [vmem:[#allocation15 + $0x8] sm:$0xff]
        %v2995 = vld [vmem:[#allocation15 + $0x10] sm:$0xff]
        %v2996 = vld [vmem:[#allocation15 + $0x18] sm:$0xff]
        %v2997 = vld [vmem:[#allocation15 + $0x20] sm:$0xff]
        %v2998 = vld [vmem:[#allocation15 + $0x28] sm:$0xff]
        %v2999 = vld [vmem:[#allocation15 + $0x30] sm:$0xff]
        %v3000 = vld [vmem:[#allocation15 + $0x38] sm:$0xff]
        %v3001 = vld [vmem:[#allocation15 + $0x40] sm:$0xff]
        %v3002 = vld [vmem:[#allocation15 + $0x48] sm:$0xff]
        %v3003 = vld [vmem:[#allocation15 + $0x50] sm:$0xff]
        %v3004 = vld [vmem:[#allocation15 + $0x58] sm:$0xff]
        %v3005 = vld [vmem:[#allocation15 + $0x60] sm:$0xff]
        %v3006 = vld [vmem:[#allocation15 + $0x68] sm:$0xff]
        %v3007 = vld [vmem:[#allocation15 + $0x70] sm:$0xff]
        %v3008 = vld [vmem:[#allocation15 + $0x78] sm:$0xff]
        %3009 = vmatprep.subr.mxu0 0.0
        %3010 = vmatpush1.msra.mxu0 %v3008
        %3011 = vmatprep.subr.mxu0 0.0
        %3012 = vmatpush1.msra.mxu0 %v3007
        %3013 = vmatprep.subr.mxu0 0.0
        %3014 = vmatpush1.msra.mxu0 %v3006
        %3015 = vmatprep.subr.mxu0 0.0
        %3016 = vmatpush1.msra.mxu0 %v3005
        %3017 = vmatprep.subr.mxu0 0.0
        %3018 = vmatpush1.msra.mxu0 %v3004
        %3019 = vmatprep.subr.mxu0 0.0
        %3020 = vmatpush1.msra.mxu0 %v3003
        %3021 = vmatprep.subr.mxu0 0.0
        %3022 = vmatpush1.msra.mxu0 %v3002
        %3023 = vmatprep.subr.mxu0 0.0
        %3024 = vmatpush1.msra.mxu0 %v3001
        %3025 = vmatprep.subr.mxu0 0.0
        %3026 = vmatpush1.msra.mxu0 %v3000
        %3027 = vmatprep.subr.mxu0 0.0
        %3028 = vmatpush1.msra.mxu0 %v2999
        %3029 = vmatprep.subr.mxu0 0.0
        %3030 = vmatpush1.msra.mxu0 %v2998
        %3031 = vmatprep.subr.mxu0 0.0
        %3032 = vmatpush1.msra.mxu0 %v2997
        %3033 = vmatprep.subr.mxu0 0.0
        %3034 = vmatpush1.msra.mxu0 %v2996
        %3035 = vmatprep.subr.mxu0 0.0
        %3036 = vmatpush1.msra.mxu0 %v2995
        %3037 = vmatprep.subr.mxu0 0.0
        %3038 = vmatpush1.msra.mxu0 %v2994
        %3039 = vmatprep.subr.mxu0 0.0
        %3040 = vmatpush1.msra.mxu0 %v2993
        %3041 = vmatprep.subr.mxu0 0.0
        %3042 = vmatpush2.msra.mxu0 0.0
        %3043 = vmatprep.subr.mxu0 0.0
        %3044 = vmatpush2.msra.mxu0 0.0
        %3045 = vmatprep.subr.mxu0 0.0
        %3046 = vmatpush2.msra.mxu0 0.0
        %3047 = vmatprep.subr.mxu0 0.0
        %3048 = vmatpush2.msra.mxu0 0.0
        %3049 = vmatprep.subr.mxu0 0.0
        %3050 = vmatpush2.msra.mxu0 0.0
        %3051 = vmatprep.subr.mxu0 0.0
        %3052 = vmatpush2.msra.mxu0 0.0
        %3053 = vmatprep.subr.mxu0 0.0
        %3054 = vmatpush2.msra.mxu0 0.0
        %3055 = vmatprep.subr.mxu0 0.0
        %3056 = vmatpush2.msra.mxu0 0.0
        %3057 = vmatprep.subr.mxu0 0.0
        %3058 = vmatpush2.msra.mxu0 0.0
        %3059 = vmatprep.subr.mxu0 0.0
        %3060 = vmatpush2.msra.mxu0 0.0
        %3061 = vmatprep.subr.mxu0 0.0
        %3062 = vmatpush2.msra.mxu0 0.0
        %3063 = vmatprep.subr.mxu0 0.0
        %3064 = vmatpush2.msra.mxu0 0.0
        %3065 = vmatprep.subr.mxu0 0.0
        %3066 = vmatpush2.msra.mxu0 0.0
        %3067 = vmatprep.subr.mxu0 0.0
        %3068 = vmatpush2.msra.mxu0 0.0
        %3069 = vmatprep.subr.mxu0 0.0
        %3070 = vmatpush2.msra.mxu0 0.0
        %3071 = vmatprep.subr.mxu0 0.0
        %3072 = vmatpush2.msra.mxu0 0.0
        %3073 = vmatprep.mubr.f32.mxu0 0.0
        %3074 = vmatmul.mubr.f32.gmra.mxu0 %v2985
        %v3075 = vpop.f32.mrf.mxu0
        %v3076 = vadd.f32 0.0, %v3075
        %v3077 = vpop.f32.mrf.mxu0
        %3078 = vmatprep.mubr.f32.mxu0 0.0
        %3079 = vmatmul.mubr.f32.gmra.mxu0 %v2986
        %v3080 = vpop.f32.mrf.mxu0
        %v3081 = vadd.f32 0.0, %v3080
        %v3082 = vpop.f32.mrf.mxu0
        %3083 = vmatprep.mubr.f32.mxu0 0.0
        %3084 = vmatmul.mubr.f32.gmra.mxu0 %v2987
        %v3085 = vpop.f32.mrf.mxu0
        %v3086 = vadd.f32 0.0, %v3085
        %v3087 = vpop.f32.mrf.mxu0
        %3088 = vmatprep.mubr.f32.mxu0 0.0
        %3089 = vmatmul.mubr.f32.gmra.mxu0 %v2988
        %v3090 = vpop.f32.mrf.mxu0
        %v3091 = vadd.f32 0.0, %v3090
        %v3092 = vpop.f32.mrf.mxu0
        %3093 = vmatprep.mubr.f32.mxu0 0.0
        %3094 = vmatmul.mubr.f32.gmra.mxu0 %v2989
        %v3095 = vpop.f32.mrf.mxu0
        %v3096 = vadd.f32 0.0, %v3095
        %v3097 = vpop.f32.mrf.mxu0
        %3098 = vmatprep.mubr.f32.mxu0 0.0
        %3099 = vmatmul.mubr.f32.gmra.mxu0 %v2990
        %v3100 = vpop.f32.mrf.mxu0
        %v3101 = vadd.f32 0.0, %v3100
        %v3102 = vpop.f32.mrf.mxu0
        %3103 = vmatprep.mubr.f32.mxu0 0.0
        %3104 = vmatmul.mubr.f32.gmra.mxu0 %v2991
        %v3105 = vpop.f32.mrf.mxu0
        %v3106 = vadd.f32 0.0, %v3105
        %v3107 = vpop.f32.mrf.mxu0
        %3108 = vmatprep.mubr.f32.mxu0 0.0
        %3109 = vmatmul.mubr.f32.gmra.mxu0 %v2992
        %v3110 = vpop.f32.mrf.mxu0
        %v3111 = vadd.f32 0.0, %v3110
        %v3112 = vpop.f32.mrf.mxu0
        %3113 = vdwg.mxu0
        %3114 = vst [vmem:[%s387] sm:$0xff] %v3076
        %3115 = vst [vmem:[%s387 + $0x8] sm:$0xff] %v3081
        %3116 = vst [vmem:[%s387 + $0x10] sm:$0xff] %v3086
        %3117 = vst [vmem:[%s387 + $0x18] sm:$0xff] %v3091
        %3118 = vst [vmem:[%s387 + $0x20] sm:$0xff] %v3096
        %3119 = vst [vmem:[%s387 + $0x28] sm:$0xff] %v3101
        %3120 = vst [vmem:[%s387 + $0x30] sm:$0xff] %v3106
        %3121 = vst [vmem:[%s387 + $0x38] sm:$0xff] %v3111
        %s3122 = sand.u32 %s188, 1
        %s3123 = scalar_lea.sflag [#allocation8], %s3122
        %s3124 = sand.u32 %s188, 1
        %s3125 = smul.addr %s3124, 64
        %s3126 = scalar_lea.vmem [#allocation17], %s3125
        // Predicated region
        $region69: #{tpu_custom_call.1} parent=43 // pred_check
          %p3127 = pneg %p198
        $region70: #{tpu_custom_call.1} parent=43 // pred_check_branch
          %3129 = sbr.rel (%p3127) target = $region72
        $region71: #{tpu_custom_call.1} parent=43 // pred_region
          %s3130 = smul.u32 2, %s32
          %s3131 = smul.u32 4, %s33
          %s3133 = ssub.s32 1024, 1024
          %3134 = vsyncadd %s3123, %s3133
          %s3135 = smul.addr %s3130, 4
          %s3136 = sadd.s32 %s3131, %s3135
          %s3137 = smul.addr %s3136, 128
          %s3138 = scalar_lea.hbm %s6, %s3137
          %s3139 = sshll.u32 %s3126, 4
          %s3140 = int_to_ptr.vmem [resolvable:$true] %s3139
          %3145 = dma.vmem_to_hbm [thread:$0]  %s3140, 1024, %s3138, %s3123, 128, 128, 8
        $region72: #{tpu_custom_call.1} parent=43 // pred_fallthru
          _
      $region44: #{tpu_custom_call.1} parent=5 // pred_fallthru
        _
      %p3146 = scmp.le.s32.totalorder 2, %s23
      // Predicated region
      $region73: #{tpu_custom_call.1} parent=5 // pred_check
        %p3147 = pneg %p3146
      $region74: #{tpu_custom_call.1} parent=5 // pred_check_branch
        %3149 = sbr.rel (%p3147) target = $region76
      $region75: #{tpu_custom_call.1} parent=5 // pred_region
        %s3150 = ssub.s32 %s23, 2
        // Predicated region
        $region77: #{tpu_custom_call.1} parent=75 // pred_check
          %p3151 = pneg %p204
        $region78: #{tpu_custom_call.1} parent=75 // pred_check_branch
          %3153 = sbr.rel (%p3151) target = $region80
        $region79: #{tpu_custom_call.1} parent=75 // pred_region
          %s3154 = sand.u32 %s189, 1
          %s3155 = scalar_lea.sflag [#allocation8], %s3154
          %s3156 = sand.u32 %s189, 1
          %s3157 = smul.addr %s3156, 64
          %s3158 = scalar_lea.vmem [#allocation17], %s3157
          %3159 = dma.done %s3155, 1024
        $region80: #{tpu_custom_call.1} parent=75 // pred_fallthru
          _
      $region76: #{tpu_custom_call.1} parent=5 // pred_fallthru
        _
    $region6: #{tpu_custom_call.1} parent=1 // loop_footer
      %s27 = sadd.s32 1, %s23
    $region7: #{tpu_custom_call.1} parent=1 // loop_footer_branch
      %22 = sbr.rel target = $region3
    $region8: #{tpu_custom_call.1} parent=1 // loop_exit
      _
    %3160 = vsyncpa [#allocation7], 1
    %s3161 = scalar_lea.sflag [#allocation7], 1
    %3162 = vsyncpa %s3161, 1
    %3163 = vsyncpa [#allocation10], 1
    %s3164 = scalar_lea.sflag [#allocation10], 1
    %3165 = vsyncpa %s3164, 1
    %3166 = vsyncpa [#allocation13], 1
    %3167 = vsyncpa [#allocation16], 1
    %3168 = vsyncpa [#allocation8], 1
    %s3169 = scalar_lea.sflag [#allocation8], 1
    %3170 = vsyncpa %s3169, 1

</llo_original>
